<compile_context>
chip_gen: v7x
topology: tpu7x:2x2x1
jax: 0.10.0
libtpu: 0.0.40
codegen_flags: <defaults>
</compile_context>

<pallas_src>
import jax
import jax.numpy as jnp
from jax.experimental import pallas as pl
from jax.experimental.pallas import tpu as pltpu


# ----------------------------------------------------------------------------
# Fused Pallas kernel (all layers + residual-folded decode)
# ----------------------------------------------------------------------------
def _make_fused_kernel(num_layers, tb, bb, hidden, residual):
    """Grid is (batch_blocks ["parallel"], time_blocks ["arbitrary"]).

    Ref order:
      x_ref (TB,BB,C),
      per layer: w_ih^T (Cin_l,4H), w_hh^T (H,4H), bias (1,4H), h0 (1,H), c0 (1,H),
      [w_res_dec (1,C)]  (if residual),
      w_dec_row (1,H), b_dec_total (1,1),
      y_ref (1,BB,TB)                         <- lane-dense output block
      h_scr, c_scr (L,BB,H) f32               <- recurrent state, persists across t
      gx_scr (TB,BB,4H) f32                   <- hoisted input-projection for the block
      seq_scr (TB,BB,H) f32                   <- layer output sequence for the block
    """
    H = hidden

    def kernel(*refs):
        x_ref = refs[0]
        pos = 1
        layers = []
        for _ in range(num_layers):
            layers.append(refs[pos:pos + 5])
            pos += 5
        if residual:
            wrd_ref = refs[pos]
            pos += 1
        wd_ref, bd_ref = refs[pos:pos + 2]
        pos += 2
        y_ref = refs[pos]
        h_scr, c_scr, gx_scr, seq_scr = refs[pos + 1:pos + 5]

        C = x_ref.shape[-1]
        t = pl.program_id(1)   # time-block index (sequential)

        # (Re-)initialise the recurrent state from the learned (h0, c0) at the start
        # of every batch block's time sweep.
        @pl.when(t == 0)
        def _init():
            for l in range(num_layers):
                h_scr[l] = jnp.broadcast_to(layers[l][3][...], (bb, H))
                c_scr[l] = jnp.broadcast_to(layers[l][4][...], (bb, H))

        # Whole time block as one (TB*BB, C) matrix (free leading-dim reshape; BB is a
        # multiple of 8 so sublane tiles stay aligned) -> one MXU GEMM per layer for the
        # non-recurrent projection.
        cur = x_ref[...].reshape(tb * bb, C)

        for l in range(num_layers):
            wih_ref, whh_ref, b_ref, _, _ = layers[l]
            w_dt = wih_ref.dtype
            # Hoisted input projection for the whole block (one GEMM), parked in VMEM
            # scratch so the unrolled recurrence reads small static slabs per step.
            gx = (jnp.dot(cur.astype(w_dt), wih_ref[...],
                          preferred_element_type=jnp.float32)
                  + b_ref[...])                                   # (TB*BB, 4H) f32
            gx_scr[...] = gx.reshape(tb, bb, 4 * H)
            whh = whh_ref[...]
            h = h_scr[l]
            c = c_scr[l]
            # Fully unrolled serial recurrence (static python loop -> static,
            # sublane-aligned scratch slabs, LLO-visible scheduling).
            for i in range(tb):
                gates = gx_scr[i] + jnp.dot(h.astype(w_dt), whh,
                                            preferred_element_type=jnp.float32)
                # gate order pre-permuted offline to [i, f, o, g]:
                sig = jax.nn.sigmoid(gates[:, :3 * H])            # one EUP launch
                gg = jnp.tanh(gates[:, 3 * H:])                   # one EUP launch
                ig = sig[:, 0 * H:1 * H]
                fg = sig[:, 1 * H:2 * H]
                og = sig[:, 2 * H:3 * H]
                c = fg * c + ig * gg
                h = og * jnp.tanh(c)
                seq_scr[i] = h
            h_scr[l] = h
            c_scr[l] = c
            cur = seq_scr[...].reshape(tb * bb, H)                # next layer's input

        # Decode: VPU broadcast-multiply + lane reduction (no N=1 MXU matmul).
        wd = wd_ref[...].reshape(1, 1, H)
        y_tb = jnp.sum(seq_scr[...] * wd, axis=-1)                # (TB, BB) f32
        if residual:
            # Residual Linear folded through decode offline -> just an extra (1,C) dot.
            wrd = wrd_ref[...].reshape(1, 1, C)
            y_tb = y_tb + jnp.sum(x_ref[...] * wrd, axis=-1)
        y_tb = y_tb + bd_ref[...]                                 # broadcast scalar bias
        # Single lane-dense store for the whole block (transpose via XLU, which has slack).
        y_ref[0] = jnp.transpose(y_tb).astype(y_ref.dtype)        # (BB, TB)

    return kernel


# ----------------------------------------------------------------------------
# Parameter preparation (done once, not per forward call)
# ----------------------------------------------------------------------------
def prepare_params(params, residule_add=False, mm_dtype=jnp.bfloat16):
    num_layers, _, H = params['h0'].shape

    def reorder_gates(w):   # last axis blocks [i|f|g|o] -> [i|f|o|g]
        return jnp.concatenate([w[..., :2 * H], w[..., 3 * H:], w[..., 2 * H:3 * H]],
                               axis=-1)

    prep = dict(
        wih=[reorder_gates(jnp.transpose(params['w_ih'][l])).astype(mm_dtype)
             for l in range(num_layers)],
        whh=[reorder_gates(jnp.transpose(params['w_hh'][l])).astype(mm_dtype)
             for l in range(num_layers)],
        bias=[reorder_gates(params['b_ih'][l] + params['b_hh'][l])[None, :].astype(jnp.float32)
              for l in range(num_layers)],
        h0=params['h0'].astype(jnp.float32),                    # (L, 1, H)
        c0=params['c0'].astype(jnp.float32),                    # (L, 1, H)
        w_dec_row=params['w_dec'].astype(jnp.float32),          # (1, H)
    )
    b_total = params['b_dec']                                   # (1,)
    if residule_add:
        # Fold residual Linear through decode: x@Wr^T@wd^T + br@wd^T
        prep['w_res_dec'] = jnp.transpose(
            jnp.transpose(params['w_res']) @ jnp.transpose(params['w_dec'])
        ).astype(jnp.float32)                                   # (1, C)
        b_total = b_total + params['b_res'] @ jnp.transpose(params['w_dec'])
    prep['b_dec_total'] = b_total[None, :].astype(jnp.float32)  # (1, 1)
    return prep


# ----------------------------------------------------------------------------
# Module forward: [B, T, C] -> [B, T] (logits), matching LSTMDecoderV1.forward
# ----------------------------------------------------------------------------
def lstm_decoder_v1_forward(x_btc, prep, residule_add=False, *, block_t=16, block_b=64):
    x = jnp.asarray(x_btc, jnp.float32)
    B, T, C = x.shape
    L = len(prep['wih'])
    H = prep['whh'][0].shape[0]

    # Batch block: big (default 64), rounded to a multiple of 8 sublanes, capped at B.
    # On v7x consider block_b ~ ceil(B/2) so the parallel axis has exactly 2 blocks.
    BB = max(8, ((min(int(block_b), B) + 7) // 8) * 8)
    TB = max(1, min(int(block_t), T))
    B_pad = ((B + BB - 1) // BB) * BB
    T_pad = ((T + TB - 1) // TB) * TB
    nB, nT = B_pad // BB, T_pad // TB

    # time-major [T, B, C], padded to full blocks (extra rows/steps discarded later)
    x_tm = jnp.transpose(x, (1, 0, 2))
    x_tm = jnp.pad(x_tm, ((0, T_pad - T), (0, B_pad - B), (0, 0)))

    grid = (nB, nT)

    in_specs = [pl.BlockSpec((TB, BB, C), lambda b, t: (t, b, 0))]
    args = [x_tm]
    for l in range(L):
        cin_l = C if l == 0 else H
        in_specs += [
            pl.BlockSpec((cin_l, 4 * H), lambda b, t: (0, 0)),
            pl.BlockSpec((H, 4 * H), lambda b, t: (0, 0)),
            pl.BlockSpec((1, 4 * H), lambda b, t: (0, 0)),
            pl.BlockSpec((1, H), lambda b, t: (0, 0)),
            pl.BlockSpec((1, H), lambda b, t: (0, 0)),
        ]
        args += [prep['wih'][l], prep['whh'][l], prep['bias'][l],
                 prep['h0'][l], prep['c0'][l]]
    if residule_add:
        in_specs += [pl.BlockSpec((1, C), lambda b, t: (0, 0))]
        args += [prep['w_res_dec']]
    in_specs += [pl.BlockSpec((1, H), lambda b, t: (0, 0)),
                 pl.BlockSpec((1, 1), lambda b, t: (0, 0))]
    args += [prep['w_dec_row'], prep['b_dec_total']]

    kernel = _make_fused_kernel(L, TB, BB, H, residule_add)

    y = pl.pallas_call(
        kernel,
        # lane-dense output: last block dim == full array dim TB -> one dense store/block
        out_shape=jax.ShapeDtypeStruct((nT, B_pad, TB), jnp.float32),
        grid=grid,
        in_specs=in_specs,
        out_specs=pl.BlockSpec((1, BB, TB), lambda b, t: (t, b, 0)),
        scratch_shapes=[pltpu.VMEM((L, BB, H), jnp.float32),       # h state
                        pltpu.VMEM((L, BB, H), jnp.float32),       # c state
                        pltpu.VMEM((TB, BB, 4 * H), jnp.float32),  # hoisted gate proj
                        pltpu.VMEM((TB, BB, H), jnp.float32)],     # layer output seq
        compiler_params=pltpu.CompilerParams(
            # batch blocks are independent -> "parallel"; the time-block axis carries
            # the recurrence (VMEM state) -> must stay "arbitrary".
            dimension_semantics=("parallel", "arbitrary"),
            # budgeted against v7x's 64 MiB VMEM (actual working set is << this)
            vmem_limit_bytes=48 * 1024 * 1024),
    )(*args)

    # (nT, B_pad, TB) -> (B_pad, T_pad) -> [B, T]
    y = jnp.transpose(y, (1, 0, 2)).reshape(B_pad, T_pad)
    return y[:B, :T]


# ----------------------------------------------------------------------------
# Deterministic synthetic parameter init (mirrors the PyTorch module's params)
# ----------------------------------------------------------------------------
def init_params(key, in_ch, hidden, num_layers, residule_add):
    ks = list(jax.random.split(key, 4 * num_layers + 6))
    nk = lambda: ks.pop()
    s = 0.2
    w_ih, w_hh, b_ih, b_hh = [], [], [], []
    for l in range(num_layers):
        in_sz = in_ch if l == 0 else hidden
        w_ih.append(s * jax.random.normal(nk(), (4 * hidden, in_sz), jnp.float32))
        w_hh.append(s * jax.random.normal(nk(), (4 * hidden, hidden), jnp.float32))
        b_ih.append(s * jax.random.normal(nk(), (4 * hidden,), jnp.float32))
        b_hh.append(s * jax.random.normal(nk(), (4 * hidden,), jnp.float32))
    params = dict(
        w_ih=w_ih, w_hh=w_hh, b_ih=b_ih, b_hh=b_hh,
        h0=s * jax.random.normal(nk(), (num_layers, 1, hidden), jnp.float32),
        c0=s * jax.random.normal(nk(), (num_layers, 1, hidden), jnp.float32),
        w_dec=s * jax.random.normal(nk(), (1, hidden), jnp.float32),
        b_dec=s * jax.random.normal(nk(), (1,), jnp.float32),
    )
    if residule_add:
        params['w_res'] = s * jax.random.normal(nk(), (hidden, in_ch), jnp.float32)
        params['b_res'] = s * jax.random.normal(nk(), (hidden,), jnp.float32)
    return params


# ----------------------------------------------------------------------------
# Pure-JAX reference (mirrors PyTorch nn.LSTM semantics) for verification
# ----------------------------------------------------------------------------
def reference_forward(x_btc, params, residule_add=False):
    B, T, _ = x_btc.shape
    num_layers, _, H = params['h0'].shape
    layer_in = x_btc
    for l in range(num_layers):
        h = jnp.broadcast_to(params['h0'][l], (B, H))
        c = jnp.broadcast_to(params['c0'][l], (B, H))
        outs = []
        for t in range(T):
            xt = layer_in[:, t, :]
            gates = (xt @ params['w_ih'][l].T + params['b_ih'][l]
                     + h @ params['w_hh'][l].T + params['b_hh'][l])
            i = jax.nn.sigmoid(gates[:, 0 * H:1 * H])
            f = jax.nn.sigmoid(gates[:, 1 * H:2 * H])
            g = jnp.tanh(gates[:, 2 * H:3 * H])
            o = jax.nn.sigmoid(gates[:, 3 * H:4 * H])
            c = f * c + i * g
            h = o * jnp.tanh(c)
            outs.append(h)
        layer_in = jnp.stack(outs, axis=1)
    out = layer_in
    if residule_add:
        out = out + x_btc @ params['w_res'].T + params['b_res']
    y = out @ params['w_dec'].T + params['b_dec']
    return y[..., 0]


if __name__ == "__main__":
    key = jax.random.PRNGKey(0)
    kx, kp = jax.random.split(key)

    configs = [
        # small shapes per spec; f32 matmuls -> tight tolerance; single block each axis
        dict(B=2, T=8, C=4, H=32, L=2, residual=False, mm=jnp.float32,
             bt=16, bb=64, atol=1e-3, rtol=1e-3),
        # non-multiple B/T exercise the padding path + residual fold
        dict(B=6, T=13, C=4, H=32, L=2, residual=True, mm=jnp.float32,
             bt=16, bb=64, atol=1e-3, rtol=1e-3),
        # multiple batch & time blocks (grid 2x3): state persistence + per-block reinit
        dict(B=16, T=24, C=4, H=32, L=2, residual=True, mm=jnp.float32,
             bt=8, bb=8, atol=1e-3, rtol=1e-3),
        # bf16 MXU operands + time padding (T_pad=32) with default big blocks
        dict(B=16, T=24, C=4, H=32, L=2, residual=True, mm=jnp.bfloat16,
             bt=16, bb=64, atol=1e-1, rtol=1e-1),
    ]

    for cfg in configs:
        B, T, C, H, L = cfg['B'], cfg['T'], cfg['C'], cfg['H'], cfg['L']
        x = jax.random.normal(kx, (B, T, C), jnp.float32)
        params = init_params(kp, C, H, L, cfg['residual'])
        prep = prepare_params(params, cfg['residual'], mm_dtype=cfg['mm'])

        y = lstm_decoder_v1_forward(x, prep, cfg['residual'],
                                    block_t=cfg['bt'], block_b=cfg['bb'])
        y = jax.block_until_ready(y)

        y_expected = reference_forward(x, params, cfg['residual'])
        assert y.shape == (B, T), y.shape
        max_err = float(jnp.max(jnp.abs(y - y_expected)))
        assert jnp.allclose(y, y_expected, atol=cfg['atol'], rtol=cfg['rtol']), (
            f"mismatch (B={B}, T={T}, residual={cfg['residual']}, "
            f"mm={cfg['mm'].__name__}): max err {max_err}")

    print("KERNEL_OK")
</pallas_src>

<mosaic_0001>
module attributes {stable_mosaic.version = 11 : i64} {
  func.func @kernel(%arg0: i32, %arg1: i32, %arg2: memref<8x8x4xf32, #tpu.memory_space<vmem>>, %arg3: memref<4x128xf32, #tpu.memory_space<vmem>>, %arg4: memref<32x128xf32, #tpu.memory_space<vmem>>, %arg5: memref<1x128xf32, #tpu.memory_space<vmem>>, %arg6: memref<1x32xf32, #tpu.memory_space<vmem>>, %arg7: memref<1x32xf32, #tpu.memory_space<vmem>>, %arg8: memref<32x128xf32, #tpu.memory_space<vmem>>, %arg9: memref<32x128xf32, #tpu.memory_space<vmem>>, %arg10: memref<1x128xf32, #tpu.memory_space<vmem>>, %arg11: memref<1x32xf32, #tpu.memory_space<vmem>>, %arg12: memref<1x32xf32, #tpu.memory_space<vmem>>, %arg13: memref<1x32xf32, #tpu.memory_space<vmem>>, %arg14: memref<1x1xf32, #tpu.memory_space<vmem>>, %arg15: memref<1x8x8xf32, #tpu.memory_space<vmem>>, %arg16: memref<2x8x32xf32, #tpu.memory_space<vmem>>, %arg17: memref<2x8x32xf32, #tpu.memory_space<vmem>>, %arg18: memref<8x8x128xf32, #tpu.memory_space<vmem>>, %arg19: memref<8x8x32xf32, #tpu.memory_space<vmem>>) attributes {dimension_semantics = [#tpu.dimension_semantics<parallel>, #tpu.dimension_semantics<arbitrary>], iteration_bounds = array<i64: 1, 1>, scalar_prefetch = 0 : i64, scratch_operands = 4 : i64, tpu.core_type = #tpu.core_type<tc>, window_params = [{transform_indices = @transform_0, window_bounds = array<i64: 8, 8, 4>}, {pipeline_mode = #tpu.pipeline_mode<synchronous>, transform_indices = @transform_1, window_bounds = array<i64: 4, 128>}, {pipeline_mode = #tpu.pipeline_mode<synchronous>, transform_indices = @transform_2, window_bounds = array<i64: 32, 128>}, {pipeline_mode = #tpu.pipeline_mode<synchronous>, transform_indices = @transform_3, window_bounds = array<i64: 1, 128>}, {pipeline_mode = #tpu.pipeline_mode<synchronous>, transform_indices = @transform_4, window_bounds = array<i64: 1, 32>}, {pipeline_mode = #tpu.pipeline_mode<synchronous>, transform_indices = @transform_5, window_bounds = array<i64: 1, 32>}, {pipeline_mode = #tpu.pipeline_mode<synchronous>, transform_indices = @transform_6, window_bounds = array<i64: 32, 128>}, {pipeline_mode = #tpu.pipeline_mode<synchronous>, transform_indices = @transform_7, window_bounds = array<i64: 32, 128>}, {pipeline_mode = #tpu.pipeline_mode<synchronous>, transform_indices = @transform_8, window_bounds = array<i64: 1, 128>}, {pipeline_mode = #tpu.pipeline_mode<synchronous>, transform_indices = @transform_9, window_bounds = array<i64: 1, 32>}, {pipeline_mode = #tpu.pipeline_mode<synchronous>, transform_indices = @transform_10, window_bounds = array<i64: 1, 32>}, {pipeline_mode = #tpu.pipeline_mode<synchronous>, transform_indices = @transform_11, window_bounds = array<i64: 1, 32>}, {pipeline_mode = #tpu.pipeline_mode<synchronous>, transform_indices = @transform_12, window_bounds = array<i64: 1, 1>}, {transform_indices = @transform_13, window_bounds = array<i64: 1, 8, 8>}]} {
    %c0_i32 = arith.constant 0 : i32
    %0 = arith.cmpi eq, %arg1, %c0_i32 : i32
    %1 = arith.extui %0 : i1 to i32
    %c0_i32_0 = arith.constant 0 : i32
    %2 = arith.cmpi ne, %1, %c0_i32_0 : i32
    scf.if %2 {
      %c0_181 = arith.constant 0 : index
      %c0_182 = arith.constant 0 : index
      %424 = vector.load %arg6[%c0_181, %c0_182] : memref<1x32xf32, #tpu.memory_space<vmem>>, vector<1x32xf32>
      %425 = vector.shape_cast %424 : vector<1x32xf32> to vector<1x32xf32>
      %426 = vector.broadcast %425 : vector<1x32xf32> to vector<8x32xf32>
      %c0_183 = arith.constant 0 : index
      %c0_184 = arith.constant 0 : index
      %c0_185 = arith.constant 0 : index
      %427 = vector.load %arg16[%c0_183, %c0_184, %c0_185] : memref<2x8x32xf32, #tpu.memory_space<vmem>>, vector<1x8x32xf32>
      %428 = vector.shape_cast %427 : vector<1x8x32xf32> to vector<8x32xf32>
      %429 = vector.shape_cast %426 : vector<8x32xf32> to vector<1x8x32xf32>
      tpu.vector_store %arg16[%c0_183, %c0_184, %c0_185], %429 {strides = array<i32>} : memref<2x8x32xf32, #tpu.memory_space<vmem>>, vector<1x8x32xf32>,
      %c0_186 = arith.constant 0 : index
      %c0_187 = arith.constant 0 : index
      %430 = vector.load %arg7[%c0_186, %c0_187] : memref<1x32xf32, #tpu.memory_space<vmem>>, vector<1x32xf32>
      %431 = vector.shape_cast %430 : vector<1x32xf32> to vector<1x32xf32>
      %432 = vector.broadcast %431 : vector<1x32xf32> to vector<8x32xf32>
      %c0_188 = arith.constant 0 : index
      %c0_189 = arith.constant 0 : index
      %c0_190 = arith.constant 0 : index
      %433 = vector.load %arg17[%c0_188, %c0_189, %c0_190] : memref<2x8x32xf32, #tpu.memory_space<vmem>>, vector<1x8x32xf32>
      %434 = vector.shape_cast %433 : vector<1x8x32xf32> to vector<8x32xf32>
      %435 = vector.shape_cast %432 : vector<8x32xf32> to vector<1x8x32xf32>
      tpu.vector_store %arg17[%c0_188, %c0_189, %c0_190], %435 {strides = array<i32>} : memref<2x8x32xf32, #tpu.memory_space<vmem>>, vector<1x8x32xf32>,
      %c0_191 = arith.constant 0 : index
      %c0_192 = arith.constant 0 : index
      %436 = vector.load %arg11[%c0_191, %c0_192] : memref<1x32xf32, #tpu.memory_space<vmem>>, vector<1x32xf32>
      %437 = vector.shape_cast %436 : vector<1x32xf32> to vector<1x32xf32>
      %438 = vector.broadcast %437 : vector<1x32xf32> to vector<8x32xf32>
      %c1_193 = arith.constant 1 : index
      %c0_194 = arith.constant 0 : index
      %c0_195 = arith.constant 0 : index
      %439 = vector.load %arg16[%c1_193, %c0_194, %c0_195] : memref<2x8x32xf32, #tpu.memory_space<vmem>>, vector<1x8x32xf32>
      %440 = vector.shape_cast %439 : vector<1x8x32xf32> to vector<8x32xf32>
      %441 = vector.shape_cast %438 : vector<8x32xf32> to vector<1x8x32xf32>
      tpu.vector_store %arg16[%c1_193, %c0_194, %c0_195], %441 {strides = array<i32>} : memref<2x8x32xf32, #tpu.memory_space<vmem>>, vector<1x8x32xf32>,
      %c0_196 = arith.constant 0 : index
      %c0_197 = arith.constant 0 : index
      %442 = vector.load %arg12[%c0_196, %c0_197] : memref<1x32xf32, #tpu.memory_space<vmem>>, vector<1x32xf32>
      %443 = vector.shape_cast %442 : vector<1x32xf32> to vector<1x32xf32>
      %444 = vector.broadcast %443 : vector<1x32xf32> to vector<8x32xf32>
      %c1_198 = arith.constant 1 : index
      %c0_199 = arith.constant 0 : index
      %c0_200 = arith.constant 0 : index
      %445 = vector.load %arg17[%c1_198, %c0_199, %c0_200] : memref<2x8x32xf32, #tpu.memory_space<vmem>>, vector<1x8x32xf32>
      %446 = vector.shape_cast %445 : vector<1x8x32xf32> to vector<8x32xf32>
      %447 = vector.shape_cast %444 : vector<8x32xf32> to vector<1x8x32xf32>
      tpu.vector_store %arg17[%c1_198, %c0_199, %c0_200], %447 {strides = array<i32>} : memref<2x8x32xf32, #tpu.memory_space<vmem>>, vector<1x8x32xf32>,
    } else {
    }
    %c0 = arith.constant 0 : index
    %c0_1 = arith.constant 0 : index
    %c0_2 = arith.constant 0 : index
    %3 = vector.load %arg2[%c0, %c0_1, %c0_2] : memref<8x8x4xf32, #tpu.memory_space<vmem>>, vector<8x8x4xf32>
    %4 = vector.shape_cast %3 : vector<8x8x4xf32> to vector<64x4xf32>
    %c0_3 = arith.constant 0 : index
    %c0_4 = arith.constant 0 : index
    %5 = vector.load %arg3[%c0_3, %c0_4] : memref<4x128xf32, #tpu.memory_space<vmem>>, vector<4x128xf32>
    %cst = arith.constant dense<0.000000e+00> : vector<64x128xf32>
    %6 = tpu.matmul %4, %5, %cst {dimension_numbers = #tpu.dot_dimension_numbers<[1], [0], [0], [1], [0, 0, 1, 1], [], []>} : vector<64x4xf32>, vector<4x128xf32>, vector<64x128xf32> -> vector<64x128xf32>
    %c0_5 = arith.constant 0 : index
    %c0_6 = arith.constant 0 : index
    %7 = vector.load %arg5[%c0_5, %c0_6] : memref<1x128xf32, #tpu.memory_space<vmem>>, vector<1x128xf32>
    %8 = vector.broadcast %7 : vector<1x128xf32> to vector<64x128xf32>
    %9 = arith.addf %6, %8 : vector<64x128xf32>
    %10 = vector.shape_cast %9 : vector<64x128xf32> to vector<8x8x128xf32>
    %c0_7 = arith.constant 0 : index
    %c0_8 = arith.constant 0 : index
    %c0_9 = arith.constant 0 : index
    %11 = vector.load %arg18[%c0_7, %c0_8, %c0_9] : memref<8x8x128xf32, #tpu.memory_space<vmem>>, vector<8x8x128xf32>
    tpu.vector_store %arg18[%c0_7, %c0_8, %c0_9], %10 {strides = array<i32>} : memref<8x8x128xf32, #tpu.memory_space<vmem>>, vector<8x8x128xf32>,
    %c0_10 = arith.constant 0 : index
    %c0_11 = arith.constant 0 : index
    %12 = vector.load %arg4[%c0_10, %c0_11] : memref<32x128xf32, #tpu.memory_space<vmem>>, vector<32x128xf32>
    %c0_12 = arith.constant 0 : index
    %c0_13 = arith.constant 0 : index
    %c0_14 = arith.constant 0 : index
    %13 = vector.load %arg16[%c0_12, %c0_13, %c0_14] : memref<2x8x32xf32, #tpu.memory_space<vmem>>, vector<1x8x32xf32>
    %14 = vector.shape_cast %13 : vector<1x8x32xf32> to vector<8x32xf32>
    %c0_15 = arith.constant 0 : index
    %c0_16 = arith.constant 0 : index
    %c0_17 = arith.constant 0 : index
    %15 = vector.load %arg17[%c0_15, %c0_16, %c0_17] : memref<2x8x32xf32, #tpu.memory_space<vmem>>, vector<1x8x32xf32>
    %16 = vector.shape_cast %15 : vector<1x8x32xf32> to vector<8x32xf32>
    %c0_18 = arith.constant 0 : index
    %c0_19 = arith.constant 0 : index
    %c0_20 = arith.constant 0 : index
    %17 = vector.load %arg18[%c0_18, %c0_19, %c0_20] : memref<8x8x128xf32, #tpu.memory_space<vmem>>, vector<1x8x128xf32>
    %18 = vector.shape_cast %17 : vector<1x8x128xf32> to vector<8x128xf32>
    %cst_21 = arith.constant dense<0.000000e+00> : vector<8x128xf32>
    %19 = tpu.matmul %14, %12, %cst_21 {dimension_numbers = #tpu.dot_dimension_numbers<[1], [0], [0], [1], [0, 0, 1, 1], [], []>} : vector<8x32xf32>, vector<32x128xf32>, vector<8x128xf32> -> vector<8x128xf32>
    %20 = arith.addf %18, %19 : vector<8x128xf32>
    %21 = vector.extract_strided_slice %20 {offsets = [0, 0], sizes = [8, 96], strides = [1, 1]} : vector<8x128xf32> to vector<8x96xf32>
    %22 = arith.negf %21 : vector<8x96xf32>
    %23 = math.exp %22 : vector<8x96xf32>
    %cst_22 = arith.constant 1.000000e+00 : f32
    %24 = vector.broadcast %cst_22 : f32 to vector<8x96xf32>
    %25 = arith.addf %24, %23 : vector<8x96xf32>
    %26 = arith.divf %24, %25 : vector<8x96xf32>
    %27 = vector.extract_strided_slice %20 {offsets = [0, 96], sizes = [8, 32], strides = [1, 1]} : vector<8x128xf32> to vector<8x32xf32>
    %28 = math.tanh %27 : vector<8x32xf32>
    %29 = vector.extract_strided_slice %26 {offsets = [0, 0], sizes = [8, 32], strides = [1, 1]} : vector<8x96xf32> to vector<8x32xf32>
    %30 = vector.extract_strided_slice %26 {offsets = [0, 32], sizes = [8, 32], strides = [1, 1]} : vector<8x96xf32> to vector<8x32xf32>
    %31 = vector.extract_strided_slice %26 {offsets = [0, 64], sizes = [8, 32], strides = [1, 1]} : vector<8x96xf32> to vector<8x32xf32>
    %32 = arith.mulf %30, %16 : vector<8x32xf32>
    %33 = arith.mulf %29, %28 : vector<8x32xf32>
    %34 = arith.addf %32, %33 : vector<8x32xf32>
    %35 = math.tanh %34 : vector<8x32xf32>
    %36 = arith.mulf %31, %35 : vector<8x32xf32>
    %c0_23 = arith.constant 0 : index
    %c0_24 = arith.constant 0 : index
    %c0_25 = arith.constant 0 : index
    %37 = vector.load %arg19[%c0_23, %c0_24, %c0_25] : memref<8x8x32xf32, #tpu.memory_space<vmem>>, vector<1x8x32xf32>
    %38 = vector.shape_cast %37 : vector<1x8x32xf32> to vector<8x32xf32>
    %39 = vector.shape_cast %36 : vector<8x32xf32> to vector<1x8x32xf32>
    tpu.vector_store %arg19[%c0_23, %c0_24, %c0_25], %39 {strides = array<i32>} : memref<8x8x32xf32, #tpu.memory_space<vmem>>, vector<1x8x32xf32>,
    %c1 = arith.constant 1 : index
    %c0_26 = arith.constant 0 : index
    %c0_27 = arith.constant 0 : index
    %40 = vector.load %arg18[%c1, %c0_26, %c0_27] : memref<8x8x128xf32, #tpu.memory_space<vmem>>, vector<1x8x128xf32>
    %41 = vector.shape_cast %40 : vector<1x8x128xf32> to vector<8x128xf32>
    %cst_28 = arith.constant dense<0.000000e+00> : vector<8x128xf32>
    %42 = tpu.matmul %36, %12, %cst_28 {dimension_numbers = #tpu.dot_dimension_numbers<[1], [0], [0], [1], [0, 0, 1, 1], [], []>} : vector<8x32xf32>, vector<32x128xf32>, vector<8x128xf32> -> vector<8x128xf32>
    %43 = arith.addf %41, %42 : vector<8x128xf32>
    %44 = vector.extract_strided_slice %43 {offsets = [0, 0], sizes = [8, 96], strides = [1, 1]} : vector<8x128xf32> to vector<8x96xf32>
    %45 = arith.negf %44 : vector<8x96xf32>
    %46 = math.exp %45 : vector<8x96xf32>
    %cst_29 = arith.constant 1.000000e+00 : f32
    %47 = vector.broadcast %cst_29 : f32 to vector<8x96xf32>
    %48 = arith.addf %47, %46 : vector<8x96xf32>
    %49 = arith.divf %47, %48 : vector<8x96xf32>
    %50 = vector.extract_strided_slice %43 {offsets = [0, 96], sizes = [8, 32], strides = [1, 1]} : vector<8x128xf32> to vector<8x32xf32>
    %51 = math.tanh %50 : vector<8x32xf32>
    %52 = vector.extract_strided_slice %49 {offsets = [0, 0], sizes = [8, 32], strides = [1, 1]} : vector<8x96xf32> to vector<8x32xf32>
    %53 = vector.extract_strided_slice %49 {offsets = [0, 32], sizes = [8, 32], strides = [1, 1]} : vector<8x96xf32> to vector<8x32xf32>
    %54 = vector.extract_strided_slice %49 {offsets = [0, 64], sizes = [8, 32], strides = [1, 1]} : vector<8x96xf32> to vector<8x32xf32>
    %55 = arith.mulf %53, %34 : vector<8x32xf32>
    %56 = arith.mulf %52, %51 : vector<8x32xf32>
    %57 = arith.addf %55, %56 : vector<8x32xf32>
    %58 = math.tanh %57 : vector<8x32xf32>
    %59 = arith.mulf %54, %58 : vector<8x32xf32>
    %c1_30 = arith.constant 1 : index
    %c0_31 = arith.constant 0 : index
    %c0_32 = arith.constant 0 : index
    %60 = vector.load %arg19[%c1_30, %c0_31, %c0_32] : memref<8x8x32xf32, #tpu.memory_space<vmem>>, vector<1x8x32xf32>
    %61 = vector.shape_cast %60 : vector<1x8x32xf32> to vector<8x32xf32>
    %62 = vector.shape_cast %59 : vector<8x32xf32> to vector<1x8x32xf32>
    tpu.vector_store %arg19[%c1_30, %c0_31, %c0_32], %62 {strides = array<i32>} : memref<8x8x32xf32, #tpu.memory_space<vmem>>, vector<1x8x32xf32>,
    %c2 = arith.constant 2 : index
    %c0_33 = arith.constant 0 : index
    %c0_34 = arith.constant 0 : index
    %63 = vector.load %arg18[%c2, %c0_33, %c0_34] : memref<8x8x128xf32, #tpu.memory_space<vmem>>, vector<1x8x128xf32>
    %64 = vector.shape_cast %63 : vector<1x8x128xf32> to vector<8x128xf32>
    %cst_35 = arith.constant dense<0.000000e+00> : vector<8x128xf32>
    %65 = tpu.matmul %59, %12, %cst_35 {dimension_numbers = #tpu.dot_dimension_numbers<[1], [0], [0], [1], [0, 0, 1, 1], [], []>} : vector<8x32xf32>, vector<32x128xf32>, vector<8x128xf32> -> vector<8x128xf32>
    %66 = arith.addf %64, %65 : vector<8x128xf32>
    %67 = vector.extract_strided_slice %66 {offsets = [0, 0], sizes = [8, 96], strides = [1, 1]} : vector<8x128xf32> to vector<8x96xf32>
    %68 = arith.negf %67 : vector<8x96xf32>
    %69 = math.exp %68 : vector<8x96xf32>
    %cst_36 = arith.constant 1.000000e+00 : f32
    %70 = vector.broadcast %cst_36 : f32 to vector<8x96xf32>
    %71 = arith.addf %70, %69 : vector<8x96xf32>
    %72 = arith.divf %70, %71 : vector<8x96xf32>
    %73 = vector.extract_strided_slice %66 {offsets = [0, 96], sizes = [8, 32], strides = [1, 1]} : vector<8x128xf32> to vector<8x32xf32>
    %74 = math.tanh %73 : vector<8x32xf32>
    %75 = vector.extract_strided_slice %72 {offsets = [0, 0], sizes = [8, 32], strides = [1, 1]} : vector<8x96xf32> to vector<8x32xf32>
    %76 = vector.extract_strided_slice %72 {offsets = [0, 32], sizes = [8, 32], strides = [1, 1]} : vector<8x96xf32> to vector<8x32xf32>
    %77 = vector.extract_strided_slice %72 {offsets = [0, 64], sizes = [8, 32], strides = [1, 1]} : vector<8x96xf32> to vector<8x32xf32>
    %78 = arith.mulf %76, %57 : vector<8x32xf32>
    %79 = arith.mulf %75, %74 : vector<8x32xf32>
    %80 = arith.addf %78, %79 : vector<8x32xf32>
    %81 = math.tanh %80 : vector<8x32xf32>
    %82 = arith.mulf %77, %81 : vector<8x32xf32>
    %c2_37 = arith.constant 2 : index
    %c0_38 = arith.constant 0 : index
    %c0_39 = arith.constant 0 : index
    %83 = vector.load %arg19[%c2_37, %c0_38, %c0_39] : memref<8x8x32xf32, #tpu.memory_space<vmem>>, vector<1x8x32xf32>
    %84 = vector.shape_cast %83 : vector<1x8x32xf32> to vector<8x32xf32>
    %85 = vector.shape_cast %82 : vector<8x32xf32> to vector<1x8x32xf32>
    tpu.vector_store %arg19[%c2_37, %c0_38, %c0_39], %85 {strides = array<i32>} : memref<8x8x32xf32, #tpu.memory_space<vmem>>, vector<1x8x32xf32>,
    %c3 = arith.constant 3 : index
    %c0_40 = arith.constant 0 : index
    %c0_41 = arith.constant 0 : index
    %86 = vector.load %arg18[%c3, %c0_40, %c0_41] : memref<8x8x128xf32, #tpu.memory_space<vmem>>, vector<1x8x128xf32>
    %87 = vector.shape_cast %86 : vector<1x8x128xf32> to vector<8x128xf32>
    %cst_42 = arith.constant dense<0.000000e+00> : vector<8x128xf32>
    %88 = tpu.matmul %82, %12, %cst_42 {dimension_numbers = #tpu.dot_dimension_numbers<[1], [0], [0], [1], [0, 0, 1, 1], [], []>} : vector<8x32xf32>, vector<32x128xf32>, vector<8x128xf32> -> vector<8x128xf32>
    %89 = arith.addf %87, %88 : vector<8x128xf32>
    %90 = vector.extract_strided_slice %89 {offsets = [0, 0], sizes = [8, 96], strides = [1, 1]} : vector<8x128xf32> to vector<8x96xf32>
    %91 = arith.negf %90 : vector<8x96xf32>
    %92 = math.exp %91 : vector<8x96xf32>
    %cst_43 = arith.constant 1.000000e+00 : f32
    %93 = vector.broadcast %cst_43 : f32 to vector<8x96xf32>
    %94 = arith.addf %93, %92 : vector<8x96xf32>
    %95 = arith.divf %93, %94 : vector<8x96xf32>
    %96 = vector.extract_strided_slice %89 {offsets = [0, 96], sizes = [8, 32], strides = [1, 1]} : vector<8x128xf32> to vector<8x32xf32>
    %97 = math.tanh %96 : vector<8x32xf32>
    %98 = vector.extract_strided_slice %95 {offsets = [0, 0], sizes = [8, 32], strides = [1, 1]} : vector<8x96xf32> to vector<8x32xf32>
    %99 = vector.extract_strided_slice %95 {offsets = [0, 32], sizes = [8, 32], strides = [1, 1]} : vector<8x96xf32> to vector<8x32xf32>
    %100 = vector.extract_strided_slice %95 {offsets = [0, 64], sizes = [8, 32], strides = [1, 1]} : vector<8x96xf32> to vector<8x32xf32>
    %101 = arith.mulf %99, %80 : vector<8x32xf32>
    %102 = arith.mulf %98, %97 : vector<8x32xf32>
    %103 = arith.addf %101, %102 : vector<8x32xf32>
    %104 = math.tanh %103 : vector<8x32xf32>
    %105 = arith.mulf %100, %104 : vector<8x32xf32>
    %c3_44 = arith.constant 3 : index
    %c0_45 = arith.constant 0 : index
    %c0_46 = arith.constant 0 : index
    %106 = vector.load %arg19[%c3_44, %c0_45, %c0_46] : memref<8x8x32xf32, #tpu.memory_space<vmem>>, vector<1x8x32xf32>
    %107 = vector.shape_cast %106 : vector<1x8x32xf32> to vector<8x32xf32>
    %108 = vector.shape_cast %105 : vector<8x32xf32> to vector<1x8x32xf32>
    tpu.vector_store %arg19[%c3_44, %c0_45, %c0_46], %108 {strides = array<i32>} : memref<8x8x32xf32, #tpu.memory_space<vmem>>, vector<1x8x32xf32>,
    %c4 = arith.constant 4 : index
    %c0_47 = arith.constant 0 : index
    %c0_48 = arith.constant 0 : index
    %109 = vector.load %arg18[%c4, %c0_47, %c0_48] : memref<8x8x128xf32, #tpu.memory_space<vmem>>, vector<1x8x128xf32>
    %110 = vector.shape_cast %109 : vector<1x8x128xf32> to vector<8x128xf32>
    %cst_49 = arith.constant dense<0.000000e+00> : vector<8x128xf32>
    %111 = tpu.matmul %105, %12, %cst_49 {dimension_numbers = #tpu.dot_dimension_numbers<[1], [0], [0], [1], [0, 0, 1, 1], [], []>} : vector<8x32xf32>, vector<32x128xf32>, vector<8x128xf32> -> vector<8x128xf32>
    %112 = arith.addf %110, %111 : vector<8x128xf32>
    %113 = vector.extract_strided_slice %112 {offsets = [0, 0], sizes = [8, 96], strides = [1, 1]} : vector<8x128xf32> to vector<8x96xf32>
    %114 = arith.negf %113 : vector<8x96xf32>
    %115 = math.exp %114 : vector<8x96xf32>
    %cst_50 = arith.constant 1.000000e+00 : f32
    %116 = vector.broadcast %cst_50 : f32 to vector<8x96xf32>
    %117 = arith.addf %116, %115 : vector<8x96xf32>
    %118 = arith.divf %116, %117 : vector<8x96xf32>
    %119 = vector.extract_strided_slice %112 {offsets = [0, 96], sizes = [8, 32], strides = [1, 1]} : vector<8x128xf32> to vector<8x32xf32>
    %120 = math.tanh %119 : vector<8x32xf32>
    %121 = vector.extract_strided_slice %118 {offsets = [0, 0], sizes = [8, 32], strides = [1, 1]} : vector<8x96xf32> to vector<8x32xf32>
    %122 = vector.extract_strided_slice %118 {offsets = [0, 32], sizes = [8, 32], strides = [1, 1]} : vector<8x96xf32> to vector<8x32xf32>
    %123 = vector.extract_strided_slice %118 {offsets = [0, 64], sizes = [8, 32], strides = [1, 1]} : vector<8x96xf32> to vector<8x32xf32>
    %124 = arith.mulf %122, %103 : vector<8x32xf32>
    %125 = arith.mulf %121, %120 : vector<8x32xf32>
    %126 = arith.addf %124, %125 : vector<8x32xf32>
    %127 = math.tanh %126 : vector<8x32xf32>
    %128 = arith.mulf %123, %127 : vector<8x32xf32>
    %c4_51 = arith.constant 4 : index
    %c0_52 = arith.constant 0 : index
    %c0_53 = arith.constant 0 : index
    %129 = vector.load %arg19[%c4_51, %c0_52, %c0_53] : memref<8x8x32xf32, #tpu.memory_space<vmem>>, vector<1x8x32xf32>
    %130 = vector.shape_cast %129 : vector<1x8x32xf32> to vector<8x32xf32>
    %131 = vector.shape_cast %128 : vector<8x32xf32> to vector<1x8x32xf32>
    tpu.vector_store %arg19[%c4_51, %c0_52, %c0_53], %131 {strides = array<i32>} : memref<8x8x32xf32, #tpu.memory_space<vmem>>, vector<1x8x32xf32>,
    %c5 = arith.constant 5 : index
    %c0_54 = arith.constant 0 : index
    %c0_55 = arith.constant 0 : index
    %132 = vector.load %arg18[%c5, %c0_54, %c0_55] : memref<8x8x128xf32, #tpu.memory_space<vmem>>, vector<1x8x128xf32>
    %133 = vector.shape_cast %132 : vector<1x8x128xf32> to vector<8x128xf32>
    %cst_56 = arith.constant dense<0.000000e+00> : vector<8x128xf32>
    %134 = tpu.matmul %128, %12, %cst_56 {dimension_numbers = #tpu.dot_dimension_numbers<[1], [0], [0], [1], [0, 0, 1, 1], [], []>} : vector<8x32xf32>, vector<32x128xf32>, vector<8x128xf32> -> vector<8x128xf32>
    %135 = arith.addf %133, %134 : vector<8x128xf32>
    %136 = vector.extract_strided_slice %135 {offsets = [0, 0], sizes = [8, 96], strides = [1, 1]} : vector<8x128xf32> to vector<8x96xf32>
    %137 = arith.negf %136 : vector<8x96xf32>
    %138 = math.exp %137 : vector<8x96xf32>
    %cst_57 = arith.constant 1.000000e+00 : f32
    %139 = vector.broadcast %cst_57 : f32 to vector<8x96xf32>
    %140 = arith.addf %139, %138 : vector<8x96xf32>
    %141 = arith.divf %139, %140 : vector<8x96xf32>
    %142 = vector.extract_strided_slice %135 {offsets = [0, 96], sizes = [8, 32], strides = [1, 1]} : vector<8x128xf32> to vector<8x32xf32>
    %143 = math.tanh %142 : vector<8x32xf32>
    %144 = vector.extract_strided_slice %141 {offsets = [0, 0], sizes = [8, 32], strides = [1, 1]} : vector<8x96xf32> to vector<8x32xf32>
    %145 = vector.extract_strided_slice %141 {offsets = [0, 32], sizes = [8, 32], strides = [1, 1]} : vector<8x96xf32> to vector<8x32xf32>
    %146 = vector.extract_strided_slice %141 {offsets = [0, 64], sizes = [8, 32], strides = [1, 1]} : vector<8x96xf32> to vector<8x32xf32>
    %147 = arith.mulf %145, %126 : vector<8x32xf32>
    %148 = arith.mulf %144, %143 : vector<8x32xf32>
    %149 = arith.addf %147, %148 : vector<8x32xf32>
    %150 = math.tanh %149 : vector<8x32xf32>
    %151 = arith.mulf %146, %150 : vector<8x32xf32>
    %c5_58 = arith.constant 5 : index
    %c0_59 = arith.constant 0 : index
    %c0_60 = arith.constant 0 : index
    %152 = vector.load %arg19[%c5_58, %c0_59, %c0_60] : memref<8x8x32xf32, #tpu.memory_space<vmem>>, vector<1x8x32xf32>
    %153 = vector.shape_cast %152 : vector<1x8x32xf32> to vector<8x32xf32>
    %154 = vector.shape_cast %151 : vector<8x32xf32> to vector<1x8x32xf32>
    tpu.vector_store %arg19[%c5_58, %c0_59, %c0_60], %154 {strides = array<i32>} : memref<8x8x32xf32, #tpu.memory_space<vmem>>, vector<1x8x32xf32>,
    %c6 = arith.constant 6 : index
    %c0_61 = arith.constant 0 : index
    %c0_62 = arith.constant 0 : index
    %155 = vector.load %arg18[%c6, %c0_61, %c0_62] : memref<8x8x128xf32, #tpu.memory_space<vmem>>, vector<1x8x128xf32>
    %156 = vector.shape_cast %155 : vector<1x8x128xf32> to vector<8x128xf32>
    %cst_63 = arith.constant dense<0.000000e+00> : vector<8x128xf32>
    %157 = tpu.matmul %151, %12, %cst_63 {dimension_numbers = #tpu.dot_dimension_numbers<[1], [0], [0], [1], [0, 0, 1, 1], [], []>} : vector<8x32xf32>, vector<32x128xf32>, vector<8x128xf32> -> vector<8x128xf32>
    %158 = arith.addf %156, %157 : vector<8x128xf32>
    %159 = vector.extract_strided_slice %158 {offsets = [0, 0], sizes = [8, 96], strides = [1, 1]} : vector<8x128xf32> to vector<8x96xf32>
    %160 = arith.negf %159 : vector<8x96xf32>
    %161 = math.exp %160 : vector<8x96xf32>
    %cst_64 = arith.constant 1.000000e+00 : f32
    %162 = vector.broadcast %cst_64 : f32 to vector<8x96xf32>
    %163 = arith.addf %162, %161 : vector<8x96xf32>
    %164 = arith.divf %162, %163 : vector<8x96xf32>
    %165 = vector.extract_strided_slice %158 {offsets = [0, 96], sizes = [8, 32], strides = [1, 1]} : vector<8x128xf32> to vector<8x32xf32>
    %166 = math.tanh %165 : vector<8x32xf32>
    %167 = vector.extract_strided_slice %164 {offsets = [0, 0], sizes = [8, 32], strides = [1, 1]} : vector<8x96xf32> to vector<8x32xf32>
    %168 = vector.extract_strided_slice %164 {offsets = [0, 32], sizes = [8, 32], strides = [1, 1]} : vector<8x96xf32> to vector<8x32xf32>
    %169 = vector.extract_strided_slice %164 {offsets = [0, 64], sizes = [8, 32], strides = [1, 1]} : vector<8x96xf32> to vector<8x32xf32>
    %170 = arith.mulf %168, %149 : vector<8x32xf32>
    %171 = arith.mulf %167, %166 : vector<8x32xf32>
    %172 = arith.addf %170, %171 : vector<8x32xf32>
    %173 = math.tanh %172 : vector<8x32xf32>
    %174 = arith.mulf %169, %173 : vector<8x32xf32>
    %c6_65 = arith.constant 6 : index
    %c0_66 = arith.constant 0 : index
    %c0_67 = arith.constant 0 : index
    %175 = vector.load %arg19[%c6_65, %c0_66, %c0_67] : memref<8x8x32xf32, #tpu.memory_space<vmem>>, vector<1x8x32xf32>
    %176 = vector.shape_cast %175 : vector<1x8x32xf32> to vector<8x32xf32>
    %177 = vector.shape_cast %174 : vector<8x32xf32> to vector<1x8x32xf32>
    tpu.vector_store %arg19[%c6_65, %c0_66, %c0_67], %177 {strides = array<i32>} : memref<8x8x32xf32, #tpu.memory_space<vmem>>, vector<1x8x32xf32>,
    %c7 = arith.constant 7 : index
    %c0_68 = arith.constant 0 : index
    %c0_69 = arith.constant 0 : index
    %178 = vector.load %arg18[%c7, %c0_68, %c0_69] : memref<8x8x128xf32, #tpu.memory_space<vmem>>, vector<1x8x128xf32>
    %179 = vector.shape_cast %178 : vector<1x8x128xf32> to vector<8x128xf32>
    %cst_70 = arith.constant dense<0.000000e+00> : vector<8x128xf32>
    %180 = tpu.matmul %174, %12, %cst_70 {dimension_numbers = #tpu.dot_dimension_numbers<[1], [0], [0], [1], [0, 0, 1, 1], [], []>} : vector<8x32xf32>, vector<32x128xf32>, vector<8x128xf32> -> vector<8x128xf32>
    %181 = arith.addf %179, %180 : vector<8x128xf32>
    %182 = vector.extract_strided_slice %181 {offsets = [0, 0], sizes = [8, 96], strides = [1, 1]} : vector<8x128xf32> to vector<8x96xf32>
    %183 = arith.negf %182 : vector<8x96xf32>
    %184 = math.exp %183 : vector<8x96xf32>
    %cst_71 = arith.constant 1.000000e+00 : f32
    %185 = vector.broadcast %cst_71 : f32 to vector<8x96xf32>
    %186 = arith.addf %185, %184 : vector<8x96xf32>
    %187 = arith.divf %185, %186 : vector<8x96xf32>
    %188 = vector.extract_strided_slice %181 {offsets = [0, 96], sizes = [8, 32], strides = [1, 1]} : vector<8x128xf32> to vector<8x32xf32>
    %189 = math.tanh %188 : vector<8x32xf32>
    %190 = vector.extract_strided_slice %187 {offsets = [0, 0], sizes = [8, 32], strides = [1, 1]} : vector<8x96xf32> to vector<8x32xf32>
    %191 = vector.extract_strided_slice %187 {offsets = [0, 32], sizes = [8, 32], strides = [1, 1]} : vector<8x96xf32> to vector<8x32xf32>
    %192 = vector.extract_strided_slice %187 {offsets = [0, 64], sizes = [8, 32], strides = [1, 1]} : vector<8x96xf32> to vector<8x32xf32>
    %193 = arith.mulf %191, %172 : vector<8x32xf32>
    %194 = arith.mulf %190, %189 : vector<8x32xf32>
    %195 = arith.addf %193, %194 : vector<8x32xf32>
    %196 = math.tanh %195 : vector<8x32xf32>
    %197 = arith.mulf %192, %196 : vector<8x32xf32>
    %c7_72 = arith.constant 7 : index
    %c0_73 = arith.constant 0 : index
    %c0_74 = arith.constant 0 : index
    %198 = vector.load %arg19[%c7_72, %c0_73, %c0_74] : memref<8x8x32xf32, #tpu.memory_space<vmem>>, vector<1x8x32xf32>
    %199 = vector.shape_cast %198 : vector<1x8x32xf32> to vector<8x32xf32>
    %200 = vector.shape_cast %197 : vector<8x32xf32> to vector<1x8x32xf32>
    tpu.vector_store %arg19[%c7_72, %c0_73, %c0_74], %200 {strides = array<i32>} : memref<8x8x32xf32, #tpu.memory_space<vmem>>, vector<1x8x32xf32>,
    %c0_75 = arith.constant 0 : index
    %c0_76 = arith.constant 0 : index
    %c0_77 = arith.constant 0 : index
    %201 = vector.load %arg16[%c0_75, %c0_76, %c0_77] : memref<2x8x32xf32, #tpu.memory_space<vmem>>, vector<1x8x32xf32>
    %202 = vector.shape_cast %201 : vector<1x8x32xf32> to vector<8x32xf32>
    %203 = vector.shape_cast %197 : vector<8x32xf32> to vector<1x8x32xf32>
    tpu.vector_store %arg16[%c0_75, %c0_76, %c0_77], %203 {strides = array<i32>} : memref<2x8x32xf32, #tpu.memory_space<vmem>>, vector<1x8x32xf32>,
    %c0_78 = arith.constant 0 : index
    %c0_79 = arith.constant 0 : index
    %c0_80 = arith.constant 0 : index
    %204 = vector.load %arg17[%c0_78, %c0_79, %c0_80] : memref<2x8x32xf32, #tpu.memory_space<vmem>>, vector<1x8x32xf32>
    %205 = vector.shape_cast %204 : vector<1x8x32xf32> to vector<8x32xf32>
    %206 = vector.shape_cast %195 : vector<8x32xf32> to vector<1x8x32xf32>
    tpu.vector_store %arg17[%c0_78, %c0_79, %c0_80], %206 {strides = array<i32>} : memref<2x8x32xf32, #tpu.memory_space<vmem>>, vector<1x8x32xf32>,
    %c0_81 = arith.constant 0 : index
    %c0_82 = arith.constant 0 : index
    %c0_83 = arith.constant 0 : index
    %207 = vector.load %arg19[%c0_81, %c0_82, %c0_83] : memref<8x8x32xf32, #tpu.memory_space<vmem>>, vector<8x8x32xf32>
    %208 = vector.shape_cast %207 : vector<8x8x32xf32> to vector<64x32xf32>
    %c0_84 = arith.constant 0 : index
    %c0_85 = arith.constant 0 : index
    %209 = vector.load %arg8[%c0_84, %c0_85] : memref<32x128xf32, #tpu.memory_space<vmem>>, vector<32x128xf32>
    %cst_86 = arith.constant dense<0.000000e+00> : vector<64x128xf32>
    %210 = tpu.matmul %208, %209, %cst_86 {dimension_numbers = #tpu.dot_dimension_numbers<[1], [0], [0], [1], [0, 0, 1, 1], [], []>} : vector<64x32xf32>, vector<32x128xf32>, vector<64x128xf32> -> vector<64x128xf32>
    %c0_87 = arith.constant 0 : index
    %c0_88 = arith.constant 0 : index
    %211 = vector.load %arg10[%c0_87, %c0_88] : memref<1x128xf32, #tpu.memory_space<vmem>>, vector<1x128xf32>
    %212 = vector.broadcast %211 : vector<1x128xf32> to vector<64x128xf32>
    %213 = arith.addf %210, %212 : vector<64x128xf32>
    %214 = vector.shape_cast %213 : vector<64x128xf32> to vector<8x8x128xf32>
    %c0_89 = arith.constant 0 : index
    %c0_90 = arith.constant 0 : index
    %c0_91 = arith.constant 0 : index
    %215 = vector.load %arg18[%c0_89, %c0_90, %c0_91] : memref<8x8x128xf32, #tpu.memory_space<vmem>>, vector<8x8x128xf32>
    tpu.vector_store %arg18[%c0_89, %c0_90, %c0_91], %214 {strides = array<i32>} : memref<8x8x128xf32, #tpu.memory_space<vmem>>, vector<8x8x128xf32>,
    %c0_92 = arith.constant 0 : index
    %c0_93 = arith.constant 0 : index
    %216 = vector.load %arg9[%c0_92, %c0_93] : memref<32x128xf32, #tpu.memory_space<vmem>>, vector<32x128xf32>
    %c1_94 = arith.constant 1 : index
    %c0_95 = arith.constant 0 : index
    %c0_96 = arith.constant 0 : index
    %217 = vector.load %arg16[%c1_94, %c0_95, %c0_96] : memref<2x8x32xf32, #tpu.memory_space<vmem>>, vector<1x8x32xf32>
    %218 = vector.shape_cast %217 : vector<1x8x32xf32> to vector<8x32xf32>
    %c1_97 = arith.constant 1 : index
    %c0_98 = arith.constant 0 : index
    %c0_99 = arith.constant 0 : index
    %219 = vector.load %arg17[%c1_97, %c0_98, %c0_99] : memref<2x8x32xf32, #tpu.memory_space<vmem>>, vector<1x8x32xf32>
    %220 = vector.shape_cast %219 : vector<1x8x32xf32> to vector<8x32xf32>
    %c0_100 = arith.constant 0 : index
    %c0_101 = arith.constant 0 : index
    %c0_102 = arith.constant 0 : index
    %221 = vector.load %arg18[%c0_100, %c0_101, %c0_102] : memref<8x8x128xf32, #tpu.memory_space<vmem>>, vector<1x8x128xf32>
    %222 = vector.shape_cast %221 : vector<1x8x128xf32> to vector<8x128xf32>
    %cst_103 = arith.constant dense<0.000000e+00> : vector<8x128xf32>
    %223 = tpu.matmul %218, %216, %cst_103 {dimension_numbers = #tpu.dot_dimension_numbers<[1], [0], [0], [1], [0, 0, 1, 1], [], []>} : vector<8x32xf32>, vector<32x128xf32>, vector<8x128xf32> -> vector<8x128xf32>
    %224 = arith.addf %222, %223 : vector<8x128xf32>
    %225 = vector.extract_strided_slice %224 {offsets = [0, 0], sizes = [8, 96], strides = [1, 1]} : vector<8x128xf32> to vector<8x96xf32>
    %226 = arith.negf %225 : vector<8x96xf32>
    %227 = math.exp %226 : vector<8x96xf32>
    %cst_104 = arith.constant 1.000000e+00 : f32
    %228 = vector.broadcast %cst_104 : f32 to vector<8x96xf32>
    %229 = arith.addf %228, %227 : vector<8x96xf32>
    %230 = arith.divf %228, %229 : vector<8x96xf32>
    %231 = vector.extract_strided_slice %224 {offsets = [0, 96], sizes = [8, 32], strides = [1, 1]} : vector<8x128xf32> to vector<8x32xf32>
    %232 = math.tanh %231 : vector<8x32xf32>
    %233 = vector.extract_strided_slice %230 {offsets = [0, 0], sizes = [8, 32], strides = [1, 1]} : vector<8x96xf32> to vector<8x32xf32>
    %234 = vector.extract_strided_slice %230 {offsets = [0, 32], sizes = [8, 32], strides = [1, 1]} : vector<8x96xf32> to vector<8x32xf32>
    %235 = vector.extract_strided_slice %230 {offsets = [0, 64], sizes = [8, 32], strides = [1, 1]} : vector<8x96xf32> to vector<8x32xf32>
    %236 = arith.mulf %234, %220 : vector<8x32xf32>
    %237 = arith.mulf %233, %232 : vector<8x32xf32>
    %238 = arith.addf %236, %237 : vector<8x32xf32>
    %239 = math.tanh %238 : vector<8x32xf32>
    %240 = arith.mulf %235, %239 : vector<8x32xf32>
    %c0_105 = arith.constant 0 : index
    %c0_106 = arith.constant 0 : index
    %c0_107 = arith.constant 0 : index
    %241 = vector.load %arg19[%c0_105, %c0_106, %c0_107] : memref<8x8x32xf32, #tpu.memory_space<vmem>>, vector<1x8x32xf32>
    %242 = vector.shape_cast %241 : vector<1x8x32xf32> to vector<8x32xf32>
    %243 = vector.shape_cast %240 : vector<8x32xf32> to vector<1x8x32xf32>
    tpu.vector_store %arg19[%c0_105, %c0_106, %c0_107], %243 {strides = array<i32>} : memref<8x8x32xf32, #tpu.memory_space<vmem>>, vector<1x8x32xf32>,
    %c1_108 = arith.constant 1 : index
    %c0_109 = arith.constant 0 : index
    %c0_110 = arith.constant 0 : index
    %244 = vector.load %arg18[%c1_108, %c0_109, %c0_110] : memref<8x8x128xf32, #tpu.memory_space<vmem>>, vector<1x8x128xf32>
    %245 = vector.shape_cast %244 : vector<1x8x128xf32> to vector<8x128xf32>
    %cst_111 = arith.constant dense<0.000000e+00> : vector<8x128xf32>
    %246 = tpu.matmul %240, %216, %cst_111 {dimension_numbers = #tpu.dot_dimension_numbers<[1], [0], [0], [1], [0, 0, 1, 1], [], []>} : vector<8x32xf32>, vector<32x128xf32>, vector<8x128xf32> -> vector<8x128xf32>
    %247 = arith.addf %245, %246 : vector<8x128xf32>
    %248 = vector.extract_strided_slice %247 {offsets = [0, 0], sizes = [8, 96], strides = [1, 1]} : vector<8x128xf32> to vector<8x96xf32>
    %249 = arith.negf %248 : vector<8x96xf32>
    %250 = math.exp %249 : vector<8x96xf32>
    %cst_112 = arith.constant 1.000000e+00 : f32
    %251 = vector.broadcast %cst_112 : f32 to vector<8x96xf32>
    %252 = arith.addf %251, %250 : vector<8x96xf32>
    %253 = arith.divf %251, %252 : vector<8x96xf32>
    %254 = vector.extract_strided_slice %247 {offsets = [0, 96], sizes = [8, 32], strides = [1, 1]} : vector<8x128xf32> to vector<8x32xf32>
    %255 = math.tanh %254 : vector<8x32xf32>
    %256 = vector.extract_strided_slice %253 {offsets = [0, 0], sizes = [8, 32], strides = [1, 1]} : vector<8x96xf32> to vector<8x32xf32>
    %257 = vector.extract_strided_slice %253 {offsets = [0, 32], sizes = [8, 32], strides = [1, 1]} : vector<8x96xf32> to vector<8x32xf32>
    %258 = vector.extract_strided_slice %253 {offsets = [0, 64], sizes = [8, 32], strides = [1, 1]} : vector<8x96xf32> to vector<8x32xf32>
    %259 = arith.mulf %257, %238 : vector<8x32xf32>
    %260 = arith.mulf %256, %255 : vector<8x32xf32>
    %261 = arith.addf %259, %260 : vector<8x32xf32>
    %262 = math.tanh %261 : vector<8x32xf32>
    %263 = arith.mulf %258, %262 : vector<8x32xf32>
    %c1_113 = arith.constant 1 : index
    %c0_114 = arith.constant 0 : index
    %c0_115 = arith.constant 0 : index
    %264 = vector.load %arg19[%c1_113, %c0_114, %c0_115] : memref<8x8x32xf32, #tpu.memory_space<vmem>>, vector<1x8x32xf32>
    %265 = vector.shape_cast %264 : vector<1x8x32xf32> to vector<8x32xf32>
    %266 = vector.shape_cast %263 : vector<8x32xf32> to vector<1x8x32xf32>
    tpu.vector_store %arg19[%c1_113, %c0_114, %c0_115], %266 {strides = array<i32>} : memref<8x8x32xf32, #tpu.memory_space<vmem>>, vector<1x8x32xf32>,
    %c2_116 = arith.constant 2 : index
    %c0_117 = arith.constant 0 : index
    %c0_118 = arith.constant 0 : index
    %267 = vector.load %arg18[%c2_116, %c0_117, %c0_118] : memref<8x8x128xf32, #tpu.memory_space<vmem>>, vector<1x8x128xf32>
    %268 = vector.shape_cast %267 : vector<1x8x128xf32> to vector<8x128xf32>
    %cst_119 = arith.constant dense<0.000000e+00> : vector<8x128xf32>
    %269 = tpu.matmul %263, %216, %cst_119 {dimension_numbers = #tpu.dot_dimension_numbers<[1], [0], [0], [1], [0, 0, 1, 1], [], []>} : vector<8x32xf32>, vector<32x128xf32>, vector<8x128xf32> -> vector<8x128xf32>
    %270 = arith.addf %268, %269 : vector<8x128xf32>
    %271 = vector.extract_strided_slice %270 {offsets = [0, 0], sizes = [8, 96], strides = [1, 1]} : vector<8x128xf32> to vector<8x96xf32>
    %272 = arith.negf %271 : vector<8x96xf32>
    %273 = math.exp %272 : vector<8x96xf32>
    %cst_120 = arith.constant 1.000000e+00 : f32
    %274 = vector.broadcast %cst_120 : f32 to vector<8x96xf32>
    %275 = arith.addf %274, %273 : vector<8x96xf32>
    %276 = arith.divf %274, %275 : vector<8x96xf32>
    %277 = vector.extract_strided_slice %270 {offsets = [0, 96], sizes = [8, 32], strides = [1, 1]} : vector<8x128xf32> to vector<8x32xf32>
    %278 = math.tanh %277 : vector<8x32xf32>
    %279 = vector.extract_strided_slice %276 {offsets = [0, 0], sizes = [8, 32], strides = [1, 1]} : vector<8x96xf32> to vector<8x32xf32>
    %280 = vector.extract_strided_slice %276 {offsets = [0, 32], sizes = [8, 32], strides = [1, 1]} : vector<8x96xf32> to vector<8x32xf32>
    %281 = vector.extract_strided_slice %276 {offsets = [0, 64], sizes = [8, 32], strides = [1, 1]} : vector<8x96xf32> to vector<8x32xf32>
    %282 = arith.mulf %280, %261 : vector<8x32xf32>
    %283 = arith.mulf %279, %278 : vector<8x32xf32>
    %284 = arith.addf %282, %283 : vector<8x32xf32>
    %285 = math.tanh %284 : vector<8x32xf32>
    %286 = arith.mulf %281, %285 : vector<8x32xf32>
    %c2_121 = arith.constant 2 : index
    %c0_122 = arith.constant 0 : index
    %c0_123 = arith.constant 0 : index
    %287 = vector.load %arg19[%c2_121, %c0_122, %c0_123] : memref<8x8x32xf32, #tpu.memory_space<vmem>>, vector<1x8x32xf32>
    %288 = vector.shape_cast %287 : vector<1x8x32xf32> to vector<8x32xf32>
    %289 = vector.shape_cast %286 : vector<8x32xf32> to vector<1x8x32xf32>
    tpu.vector_store %arg19[%c2_121, %c0_122, %c0_123], %289 {strides = array<i32>} : memref<8x8x32xf32, #tpu.memory_space<vmem>>, vector<1x8x32xf32>,
    %c3_124 = arith.constant 3 : index
    %c0_125 = arith.constant 0 : index
    %c0_126 = arith.constant 0 : index
    %290 = vector.load %arg18[%c3_124, %c0_125, %c0_126] : memref<8x8x128xf32, #tpu.memory_space<vmem>>, vector<1x8x128xf32>
    %291 = vector.shape_cast %290 : vector<1x8x128xf32> to vector<8x128xf32>
    %cst_127 = arith.constant dense<0.000000e+00> : vector<8x128xf32>
    %292 = tpu.matmul %286, %216, %cst_127 {dimension_numbers = #tpu.dot_dimension_numbers<[1], [0], [0], [1], [0, 0, 1, 1], [], []>} : vector<8x32xf32>, vector<32x128xf32>, vector<8x128xf32> -> vector<8x128xf32>
    %293 = arith.addf %291, %292 : vector<8x128xf32>
    %294 = vector.extract_strided_slice %293 {offsets = [0, 0], sizes = [8, 96], strides = [1, 1]} : vector<8x128xf32> to vector<8x96xf32>
    %295 = arith.negf %294 : vector<8x96xf32>
    %296 = math.exp %295 : vector<8x96xf32>
    %cst_128 = arith.constant 1.000000e+00 : f32
    %297 = vector.broadcast %cst_128 : f32 to vector<8x96xf32>
    %298 = arith.addf %297, %296 : vector<8x96xf32>
    %299 = arith.divf %297, %298 : vector<8x96xf32>
    %300 = vector.extract_strided_slice %293 {offsets = [0, 96], sizes = [8, 32], strides = [1, 1]} : vector<8x128xf32> to vector<8x32xf32>
    %301 = math.tanh %300 : vector<8x32xf32>
    %302 = vector.extract_strided_slice %299 {offsets = [0, 0], sizes = [8, 32], strides = [1, 1]} : vector<8x96xf32> to vector<8x32xf32>
    %303 = vector.extract_strided_slice %299 {offsets = [0, 32], sizes = [8, 32], strides = [1, 1]} : vector<8x96xf32> to vector<8x32xf32>
    %304 = vector.extract_strided_slice %299 {offsets = [0, 64], sizes = [8, 32], strides = [1, 1]} : vector<8x96xf32> to vector<8x32xf32>
    %305 = arith.mulf %303, %284 : vector<8x32xf32>
    %306 = arith.mulf %302, %301 : vector<8x32xf32>
    %307 = arith.addf %305, %306 : vector<8x32xf32>
    %308 = math.tanh %307 : vector<8x32xf32>
    %309 = arith.mulf %304, %308 : vector<8x32xf32>
    %c3_129 = arith.constant 3 : index
    %c0_130 = arith.constant 0 : index
    %c0_131 = arith.constant 0 : index
    %310 = vector.load %arg19[%c3_129, %c0_130, %c0_131] : memref<8x8x32xf32, #tpu.memory_space<vmem>>, vector<1x8x32xf32>
    %311 = vector.shape_cast %310 : vector<1x8x32xf32> to vector<8x32xf32>
    %312 = vector.shape_cast %309 : vector<8x32xf32> to vector<1x8x32xf32>
    tpu.vector_store %arg19[%c3_129, %c0_130, %c0_131], %312 {strides = array<i32>} : memref<8x8x32xf32, #tpu.memory_space<vmem>>, vector<1x8x32xf32>,
    %c4_132 = arith.constant 4 : index
    %c0_133 = arith.constant 0 : index
    %c0_134 = arith.constant 0 : index
    %313 = vector.load %arg18[%c4_132, %c0_133, %c0_134] : memref<8x8x128xf32, #tpu.memory_space<vmem>>, vector<1x8x128xf32>
    %314 = vector.shape_cast %313 : vector<1x8x128xf32> to vector<8x128xf32>
    %cst_135 = arith.constant dense<0.000000e+00> : vector<8x128xf32>
    %315 = tpu.matmul %309, %216, %cst_135 {dimension_numbers = #tpu.dot_dimension_numbers<[1], [0], [0], [1], [0, 0, 1, 1], [], []>} : vector<8x32xf32>, vector<32x128xf32>, vector<8x128xf32> -> vector<8x128xf32>
    %316 = arith.addf %314, %315 : vector<8x128xf32>
    %317 = vector.extract_strided_slice %316 {offsets = [0, 0], sizes = [8, 96], strides = [1, 1]} : vector<8x128xf32> to vector<8x96xf32>
    %318 = arith.negf %317 : vector<8x96xf32>
    %319 = math.exp %318 : vector<8x96xf32>
    %cst_136 = arith.constant 1.000000e+00 : f32
    %320 = vector.broadcast %cst_136 : f32 to vector<8x96xf32>
    %321 = arith.addf %320, %319 : vector<8x96xf32>
    %322 = arith.divf %320, %321 : vector<8x96xf32>
    %323 = vector.extract_strided_slice %316 {offsets = [0, 96], sizes = [8, 32], strides = [1, 1]} : vector<8x128xf32> to vector<8x32xf32>
    %324 = math.tanh %323 : vector<8x32xf32>
    %325 = vector.extract_strided_slice %322 {offsets = [0, 0], sizes = [8, 32], strides = [1, 1]} : vector<8x96xf32> to vector<8x32xf32>
    %326 = vector.extract_strided_slice %322 {offsets = [0, 32], sizes = [8, 32], strides = [1, 1]} : vector<8x96xf32> to vector<8x32xf32>
    %327 = vector.extract_strided_slice %322 {offsets = [0, 64], sizes = [8, 32], strides = [1, 1]} : vector<8x96xf32> to vector<8x32xf32>
    %328 = arith.mulf %326, %307 : vector<8x32xf32>
    %329 = arith.mulf %325, %324 : vector<8x32xf32>
    %330 = arith.addf %328, %329 : vector<8x32xf32>
    %331 = math.tanh %330 : vector<8x32xf32>
    %332 = arith.mulf %327, %331 : vector<8x32xf32>
    %c4_137 = arith.constant 4 : index
    %c0_138 = arith.constant 0 : index
    %c0_139 = arith.constant 0 : index
    %333 = vector.load %arg19[%c4_137, %c0_138, %c0_139] : memref<8x8x32xf32, #tpu.memory_space<vmem>>, vector<1x8x32xf32>
    %334 = vector.shape_cast %333 : vector<1x8x32xf32> to vector<8x32xf32>
    %335 = vector.shape_cast %332 : vector<8x32xf32> to vector<1x8x32xf32>
    tpu.vector_store %arg19[%c4_137, %c0_138, %c0_139], %335 {strides = array<i32>} : memref<8x8x32xf32, #tpu.memory_space<vmem>>, vector<1x8x32xf32>,
    %c5_140 = arith.constant 5 : index
    %c0_141 = arith.constant 0 : index
    %c0_142 = arith.constant 0 : index
    %336 = vector.load %arg18[%c5_140, %c0_141, %c0_142] : memref<8x8x128xf32, #tpu.memory_space<vmem>>, vector<1x8x128xf32>
    %337 = vector.shape_cast %336 : vector<1x8x128xf32> to vector<8x128xf32>
    %cst_143 = arith.constant dense<0.000000e+00> : vector<8x128xf32>
    %338 = tpu.matmul %332, %216, %cst_143 {dimension_numbers = #tpu.dot_dimension_numbers<[1], [0], [0], [1], [0, 0, 1, 1], [], []>} : vector<8x32xf32>, vector<32x128xf32>, vector<8x128xf32> -> vector<8x128xf32>
    %339 = arith.addf %337, %338 : vector<8x128xf32>
    %340 = vector.extract_strided_slice %339 {offsets = [0, 0], sizes = [8, 96], strides = [1, 1]} : vector<8x128xf32> to vector<8x96xf32>
    %341 = arith.negf %340 : vector<8x96xf32>
    %342 = math.exp %341 : vector<8x96xf32>
    %cst_144 = arith.constant 1.000000e+00 : f32
    %343 = vector.broadcast %cst_144 : f32 to vector<8x96xf32>
    %344 = arith.addf %343, %342 : vector<8x96xf32>
    %345 = arith.divf %343, %344 : vector<8x96xf32>
    %346 = vector.extract_strided_slice %339 {offsets = [0, 96], sizes = [8, 32], strides = [1, 1]} : vector<8x128xf32> to vector<8x32xf32>
    %347 = math.tanh %346 : vector<8x32xf32>
    %348 = vector.extract_strided_slice %345 {offsets = [0, 0], sizes = [8, 32], strides = [1, 1]} : vector<8x96xf32> to vector<8x32xf32>
    %349 = vector.extract_strided_slice %345 {offsets = [0, 32], sizes = [8, 32], strides = [1, 1]} : vector<8x96xf32> to vector<8x32xf32>
    %350 = vector.extract_strided_slice %345 {offsets = [0, 64], sizes = [8, 32], strides = [1, 1]} : vector<8x96xf32> to vector<8x32xf32>
    %351 = arith.mulf %349, %330 : vector<8x32xf32>
    %352 = arith.mulf %348, %347 : vector<8x32xf32>
    %353 = arith.addf %351, %352 : vector<8x32xf32>
    %354 = math.tanh %353 : vector<8x32xf32>
    %355 = arith.mulf %350, %354 : vector<8x32xf32>
    %c5_145 = arith.constant 5 : index
    %c0_146 = arith.constant 0 : index
    %c0_147 = arith.constant 0 : index
    %356 = vector.load %arg19[%c5_145, %c0_146, %c0_147] : memref<8x8x32xf32, #tpu.memory_space<vmem>>, vector<1x8x32xf32>
    %357 = vector.shape_cast %356 : vector<1x8x32xf32> to vector<8x32xf32>
    %358 = vector.shape_cast %355 : vector<8x32xf32> to vector<1x8x32xf32>
    tpu.vector_store %arg19[%c5_145, %c0_146, %c0_147], %358 {strides = array<i32>} : memref<8x8x32xf32, #tpu.memory_space<vmem>>, vector<1x8x32xf32>,
    %c6_148 = arith.constant 6 : index
    %c0_149 = arith.constant 0 : index
    %c0_150 = arith.constant 0 : index
    %359 = vector.load %arg18[%c6_148, %c0_149, %c0_150] : memref<8x8x128xf32, #tpu.memory_space<vmem>>, vector<1x8x128xf32>
    %360 = vector.shape_cast %359 : vector<1x8x128xf32> to vector<8x128xf32>
    %cst_151 = arith.constant dense<0.000000e+00> : vector<8x128xf32>
    %361 = tpu.matmul %355, %216, %cst_151 {dimension_numbers = #tpu.dot_dimension_numbers<[1], [0], [0], [1], [0, 0, 1, 1], [], []>} : vector<8x32xf32>, vector<32x128xf32>, vector<8x128xf32> -> vector<8x128xf32>
    %362 = arith.addf %360, %361 : vector<8x128xf32>
    %363 = vector.extract_strided_slice %362 {offsets = [0, 0], sizes = [8, 96], strides = [1, 1]} : vector<8x128xf32> to vector<8x96xf32>
    %364 = arith.negf %363 : vector<8x96xf32>
    %365 = math.exp %364 : vector<8x96xf32>
    %cst_152 = arith.constant 1.000000e+00 : f32
    %366 = vector.broadcast %cst_152 : f32 to vector<8x96xf32>
    %367 = arith.addf %366, %365 : vector<8x96xf32>
    %368 = arith.divf %366, %367 : vector<8x96xf32>
    %369 = vector.extract_strided_slice %362 {offsets = [0, 96], sizes = [8, 32], strides = [1, 1]} : vector<8x128xf32> to vector<8x32xf32>
    %370 = math.tanh %369 : vector<8x32xf32>
    %371 = vector.extract_strided_slice %368 {offsets = [0, 0], sizes = [8, 32], strides = [1, 1]} : vector<8x96xf32> to vector<8x32xf32>
    %372 = vector.extract_strided_slice %368 {offsets = [0, 32], sizes = [8, 32], strides = [1, 1]} : vector<8x96xf32> to vector<8x32xf32>
    %373 = vector.extract_strided_slice %368 {offsets = [0, 64], sizes = [8, 32], strides = [1, 1]} : vector<8x96xf32> to vector<8x32xf32>
    %374 = arith.mulf %372, %353 : vector<8x32xf32>
    %375 = arith.mulf %371, %370 : vector<8x32xf32>
    %376 = arith.addf %374, %375 : vector<8x32xf32>
    %377 = math.tanh %376 : vector<8x32xf32>
    %378 = arith.mulf %373, %377 : vector<8x32xf32>
    %c6_153 = arith.constant 6 : index
    %c0_154 = arith.constant 0 : index
    %c0_155 = arith.constant 0 : index
    %379 = vector.load %arg19[%c6_153, %c0_154, %c0_155] : memref<8x8x32xf32, #tpu.memory_space<vmem>>, vector<1x8x32xf32>
    %380 = vector.shape_cast %379 : vector<1x8x32xf32> to vector<8x32xf32>
    %381 = vector.shape_cast %378 : vector<8x32xf32> to vector<1x8x32xf32>
    tpu.vector_store %arg19[%c6_153, %c0_154, %c0_155], %381 {strides = array<i32>} : memref<8x8x32xf32, #tpu.memory_space<vmem>>, vector<1x8x32xf32>,
    %c7_156 = arith.constant 7 : index
    %c0_157 = arith.constant 0 : index
    %c0_158 = arith.constant 0 : index
    %382 = vector.load %arg18[%c7_156, %c0_157, %c0_158] : memref<8x8x128xf32, #tpu.memory_space<vmem>>, vector<1x8x128xf32>
    %383 = vector.shape_cast %382 : vector<1x8x128xf32> to vector<8x128xf32>
    %cst_159 = arith.constant dense<0.000000e+00> : vector<8x128xf32>
    %384 = tpu.matmul %378, %216, %cst_159 {dimension_numbers = #tpu.dot_dimension_numbers<[1], [0], [0], [1], [0, 0, 1, 1], [], []>} : vector<8x32xf32>, vector<32x128xf32>, vector<8x128xf32> -> vector<8x128xf32>
    %385 = arith.addf %383, %384 : vector<8x128xf32>
    %386 = vector.extract_strided_slice %385 {offsets = [0, 0], sizes = [8, 96], strides = [1, 1]} : vector<8x128xf32> to vector<8x96xf32>
    %387 = arith.negf %386 : vector<8x96xf32>
    %388 = math.exp %387 : vector<8x96xf32>
    %cst_160 = arith.constant 1.000000e+00 : f32
    %389 = vector.broadcast %cst_160 : f32 to vector<8x96xf32>
    %390 = arith.addf %389, %388 : vector<8x96xf32>
    %391 = arith.divf %389, %390 : vector<8x96xf32>
    %392 = vector.extract_strided_slice %385 {offsets = [0, 96], sizes = [8, 32], strides = [1, 1]} : vector<8x128xf32> to vector<8x32xf32>
    %393 = math.tanh %392 : vector<8x32xf32>
    %394 = vector.extract_strided_slice %391 {offsets = [0, 0], sizes = [8, 32], strides = [1, 1]} : vector<8x96xf32> to vector<8x32xf32>
    %395 = vector.extract_strided_slice %391 {offsets = [0, 32], sizes = [8, 32], strides = [1, 1]} : vector<8x96xf32> to vector<8x32xf32>
    %396 = vector.extract_strided_slice %391 {offsets = [0, 64], sizes = [8, 32], strides = [1, 1]} : vector<8x96xf32> to vector<8x32xf32>
    %397 = arith.mulf %395, %376 : vector<8x32xf32>
    %398 = arith.mulf %394, %393 : vector<8x32xf32>
    %399 = arith.addf %397, %398 : vector<8x32xf32>
    %400 = math.tanh %399 : vector<8x32xf32>
    %401 = arith.mulf %396, %400 : vector<8x32xf32>
    %c7_161 = arith.constant 7 : index
    %c0_162 = arith.constant 0 : index
    %c0_163 = arith.constant 0 : index
    %402 = vector.load %arg19[%c7_161, %c0_162, %c0_163] : memref<8x8x32xf32, #tpu.memory_space<vmem>>, vector<1x8x32xf32>
    %403 = vector.shape_cast %402 : vector<1x8x32xf32> to vector<8x32xf32>
    %404 = vector.shape_cast %401 : vector<8x32xf32> to vector<1x8x32xf32>
    tpu.vector_store %arg19[%c7_161, %c0_162, %c0_163], %404 {strides = array<i32>} : memref<8x8x32xf32, #tpu.memory_space<vmem>>, vector<1x8x32xf32>,
    %c1_164 = arith.constant 1 : index
    %c0_165 = arith.constant 0 : index
    %c0_166 = arith.constant 0 : index
    %405 = vector.load %arg16[%c1_164, %c0_165, %c0_166] : memref<2x8x32xf32, #tpu.memory_space<vmem>>, vector<1x8x32xf32>
    %406 = vector.shape_cast %405 : vector<1x8x32xf32> to vector<8x32xf32>
    %407 = vector.shape_cast %401 : vector<8x32xf32> to vector<1x8x32xf32>
    tpu.vector_store %arg16[%c1_164, %c0_165, %c0_166], %407 {strides = array<i32>} : memref<2x8x32xf32, #tpu.memory_space<vmem>>, vector<1x8x32xf32>,
    %c1_167 = arith.constant 1 : index
    %c0_168 = arith.constant 0 : index
    %c0_169 = arith.constant 0 : index
    %408 = vector.load %arg17[%c1_167, %c0_168, %c0_169] : memref<2x8x32xf32, #tpu.memory_space<vmem>>, vector<1x8x32xf32>
    %409 = vector.shape_cast %408 : vector<1x8x32xf32> to vector<8x32xf32>
    %410 = vector.shape_cast %399 : vector<8x32xf32> to vector<1x8x32xf32>
    tpu.vector_store %arg17[%c1_167, %c0_168, %c0_169], %410 {strides = array<i32>} : memref<2x8x32xf32, #tpu.memory_space<vmem>>, vector<1x8x32xf32>,
    %c0_170 = arith.constant 0 : index
    %c0_171 = arith.constant 0 : index
    %411 = vector.load %arg13[%c0_170, %c0_171] : memref<1x32xf32, #tpu.memory_space<vmem>>, vector<1x32xf32>
    %412 = vector.shape_cast %411 : vector<1x32xf32> to vector<1x1x32xf32>
    %c0_172 = arith.constant 0 : index
    %c0_173 = arith.constant 0 : index
    %c0_174 = arith.constant 0 : index
    %413 = vector.load %arg19[%c0_172, %c0_173, %c0_174] : memref<8x8x32xf32, #tpu.memory_space<vmem>>, vector<8x8x32xf32>
    %414 = vector.broadcast %412 : vector<1x1x32xf32> to vector<8x8x32xf32>
    %415 = arith.mulf %413, %414 : vector<8x8x32xf32>
    %cst_175 = arith.constant dense<0.000000e+00> : vector<8x8xf32>
    %416 = vector.multi_reduction <add>, %415, %cst_175 [2] : vector<8x8x32xf32> to vector<8x8xf32>
    %c0_176 = arith.constant 0 : index
    %c0_177 = arith.constant 0 : index
    %417 = vector.load %arg14[%c0_176, %c0_177] : memref<1x1xf32, #tpu.memory_space<vmem>>, vector<1x1xf32>
    %418 = vector.broadcast %417 : vector<1x1xf32> to vector<8x8xf32>
    %419 = arith.addf %416, %418 : vector<8x8xf32>
    %420 = tpu.transpose %419, [1, 0] : vector<8x8xf32> -> vector<8x8xf32>
    %c0_178 = arith.constant 0 : index
    %c0_179 = arith.constant 0 : index
    %c0_180 = arith.constant 0 : index
    %421 = vector.load %arg15[%c0_178, %c0_179, %c0_180] : memref<1x8x8xf32, #tpu.memory_space<vmem>>, vector<1x8x8xf32>
    %422 = vector.shape_cast %421 : vector<1x8x8xf32> to vector<8x8xf32>
    %423 = vector.shape_cast %420 : vector<8x8xf32> to vector<1x8x8xf32>
    tpu.vector_store %arg15[%c0_178, %c0_179, %c0_180], %423 {strides = array<i32>} : memref<1x8x8xf32, #tpu.memory_space<vmem>>, vector<1x8x8xf32>,
    return
  }
  func.func @transform_0(%arg0: i32, %arg1: i32) -> (i32, i32, i32) {
    %c0_i32 = arith.constant 0 : i32
    %c0_i32_0 = arith.constant 0 : i32
    return %arg1, %arg0, %c0_i32 : i32, i32, i32
  }
  func.func @transform_1(%arg0: i32, %arg1: i32) -> (i32, i32) {
    %c0_i32 = arith.constant 0 : i32
    %c0_i32_0 = arith.constant 0 : i32
    %c0_i32_1 = arith.constant 0 : i32
    return %c0_i32, %c0_i32_0 : i32, i32
  }
  func.func @transform_2(%arg0: i32, %arg1: i32) -> (i32, i32) {
    %c0_i32 = arith.constant 0 : i32
    %c0_i32_0 = arith.constant 0 : i32
    %c0_i32_1 = arith.constant 0 : i32
    return %c0_i32, %c0_i32_0 : i32, i32
  }
  func.func @transform_3(%arg0: i32, %arg1: i32) -> (i32, i32) {
    %c0_i32 = arith.constant 0 : i32
    %c0_i32_0 = arith.constant 0 : i32
    %c0_i32_1 = arith.constant 0 : i32
    return %c0_i32, %c0_i32_0 : i32, i32
  }
  func.func @transform_4(%arg0: i32, %arg1: i32) -> (i32, i32) {
    %c0_i32 = arith.constant 0 : i32
    %c0_i32_0 = arith.constant 0 : i32
    %c0_i32_1 = arith.constant 0 : i32
    return %c0_i32, %c0_i32_0 : i32, i32
  }
  func.func @transform_5(%arg0: i32, %arg1: i32) -> (i32, i32) {
    %c0_i32 = arith.constant 0 : i32
    %c0_i32_0 = arith.constant 0 : i32
    %c0_i32_1 = arith.constant 0 : i32
    return %c0_i32, %c0_i32_0 : i32, i32
  }
  func.func @transform_6(%arg0: i32, %arg1: i32) -> (i32, i32) {
    %c0_i32 = arith.constant 0 : i32
    %c0_i32_0 = arith.constant 0 : i32
    %c0_i32_1 = arith.constant 0 : i32
    return %c0_i32, %c0_i32_0 : i32, i32
  }
  func.func @transform_7(%arg0: i32, %arg1: i32) -> (i32, i32) {
    %c0_i32 = arith.constant 0 : i32
    %c0_i32_0 = arith.constant 0 : i32
    %c0_i32_1 = arith.constant 0 : i32
    return %c0_i32, %c0_i32_0 : i32, i32
  }
  func.func @transform_8(%arg0: i32, %arg1: i32) -> (i32, i32) {
    %c0_i32 = arith.constant 0 : i32
    %c0_i32_0 = arith.constant 0 : i32
    %c0_i32_1 = arith.constant 0 : i32
    return %c0_i32, %c0_i32_0 : i32, i32
  }
  func.func @transform_9(%arg0: i32, %arg1: i32) -> (i32, i32) {
    %c0_i32 = arith.constant 0 : i32
    %c0_i32_0 = arith.constant 0 : i32
    %c0_i32_1 = arith.constant 0 : i32
    return %c0_i32, %c0_i32_0 : i32, i32
  }
  func.func @transform_10(%arg0: i32, %arg1: i32) -> (i32, i32) {
    %c0_i32 = arith.constant 0 : i32
    %c0_i32_0 = arith.constant 0 : i32
    %c0_i32_1 = arith.constant 0 : i32
    return %c0_i32, %c0_i32_0 : i32, i32
  }
  func.func @transform_11(%arg0: i32, %arg1: i32) -> (i32, i32) {
    %c0_i32 = arith.constant 0 : i32
    %c0_i32_0 = arith.constant 0 : i32
    %c0_i32_1 = arith.constant 0 : i32
    return %c0_i32, %c0_i32_0 : i32, i32
  }
  func.func @transform_12(%arg0: i32, %arg1: i32) -> (i32, i32) {
    %c0_i32 = arith.constant 0 : i32
    %c0_i32_0 = arith.constant 0 : i32
    %c0_i32_1 = arith.constant 0 : i32
    return %c0_i32, %c0_i32_0 : i32, i32
  }
  func.func @transform_13(%arg0: i32, %arg1: i32) -> (i32, i32, i32) {
    %c0_i32 = arith.constant 0 : i32
    %c0_i32_0 = arith.constant 0 : i32
    return %arg1, %arg0, %c0_i32 : i32, i32, i32
  }
}

</mosaic_0001>

<llo_original>
// kernel: tpu_custom_call.1
$region0: #{tpu_custom_call.1}
  #allocation0 [shape = 'u32[]', space=smem, size = 0x4, offset = 0x4, fixed_abs, tag = 'smem constant byte address 0x4 - core index']
  #allocation1 [shape = 'u32[144,128]{1,0:T(1,128)}', space=vmem, size = 0x12000, scoped, tag = 'internal scratch']
  #allocation2 [shape = 'f32[2,8,32]{2,1,0:T(8,128)}', space=vmem, size = 0x2000, scoped, tag = 'scratch operand']
  #allocation3 [shape = 'f32[2,8,32]{2,1,0:T(8,128)}', space=vmem, size = 0x2000, scoped, tag = 'scratch operand']
  #allocation4 [shape = 'f32[8,8,128]{2,1,0:T(8,128)}', space=vmem, size = 0x8000, scoped, tag = 'scratch operand']
  #allocation5 [shape = 'f32[8,8,32]{2,1,0:T(8,128)}', space=vmem, size = 0x8000, scoped, tag = 'scratch operand']
  #allocation6 [shape = 'f32[1,1]{1,0:T(1,128)S(1)}', space=vmem, size = 0x200, scoped, tag = 'scoped memory for tpu_custom_call.1']
  %s0 = inlined_call_operand.vmem [shape: f32[8,8,4], index: 0, kind: input, shape index: {}]
  %s1 = inlined_call_operand.vmem [shape: f32[4,128], index: 1, kind: input, shape index: {}]
  %s2 = inlined_call_operand.vmem [shape: f32[32,128], index: 2, kind: input, shape index: {}]
  %s3 = inlined_call_operand.vmem [shape: f32[1,128], index: 3, kind: input, shape index: {}]
  %s4 = inlined_call_operand.vmem [shape: f32[1,32], index: 4, kind: input, shape index: {}]
  %s5 = inlined_call_operand.vmem [shape: f32[1,32], index: 5, kind: input, shape index: {}]
  %s6 = inlined_call_operand.vmem [shape: f32[32,128], index: 6, kind: input, shape index: {}]
  %s7 = inlined_call_operand.vmem [shape: f32[32,128], index: 7, kind: input, shape index: {}]
  %s8 = inlined_call_operand.vmem [shape: f32[1,128], index: 8, kind: input, shape index: {}]
  %s9 = inlined_call_operand.vmem [shape: f32[1,32], index: 9, kind: input, shape index: {}]
  %s10 = inlined_call_operand.vmem [shape: f32[1,32], index: 10, kind: input, shape index: {}]
  %s11 = inlined_call_operand.vmem [shape: f32[1,32], index: 11, kind: input, shape index: {}]
  %s12 = inlined_call_operand.<no memory space> [shape: f32[1,1], index: 12, kind: input, shape index: {}]
  %s13 = inlined_call_operand.hbm [shape: f32[1,8,8], index: 13, kind: output, shape index: {}]
  %s14 = sld [smem:[#allocation0]]
  $region66: #{tpu_custom_call.1} parent=0
    _
  %s16 = ssub.s32 1, %s14
  %s17 = scalar_select 0, %s16, %s14
  %v18 = vstv %s12
  %19 = vst [vmem:[#allocation6] sm:$0x1] %v18
  $region1: #{tpu_custom_call.1} parent=0
    #allocation7 [shape = 'u8[4096]{0}', space=vmem, size = 0x1000, scoped, tag = 'output window, operand 0, single buffered']
    #allocation8 [shape = 's32[1]{0}', space=sflag, size = 0x4, scoped, tag = 'scoped memory for tpu_custom_call.1']
    %20 = vsyncpa [#allocation8], 0
    // Predicated region
    $region2: #{tpu_custom_call.1} parent=1 // pred_check
      _
    $region3: #{tpu_custom_call.1} parent=1 // pred_check_branch
      %22 = sbr.rel (0) target = $region5
    $region4: #{tpu_custom_call.1} parent=1 // pred_region
      _
    $region5: #{tpu_custom_call.1} parent=1 // pred_fallthru
      _
    // Predicated region
    $region6: #{tpu_custom_call.1} parent=1 // pred_check
      _
    $region7: #{tpu_custom_call.1} parent=1 // pred_check_branch
      %24 = sbr.rel (0) target = $region9
    $region8: #{tpu_custom_call.1} parent=1 // pred_region
      _
    $region9: #{tpu_custom_call.1} parent=1 // pred_fallthru
      _
    // Predicated region
    $region10: #{tpu_custom_call.1} parent=1 // pred_check
      _
    $region11: #{tpu_custom_call.1} parent=1 // pred_check_branch
      %26 = sbr.rel (0) target = $region13
    $region12: #{tpu_custom_call.1} parent=1 // pred_region
      _
    $region13: #{tpu_custom_call.1} parent=1 // pred_fallthru
      _
    // Predicated region
    $region14: #{tpu_custom_call.1} parent=1 // pred_check
      _
    $region15: #{tpu_custom_call.1} parent=1 // pred_check_branch
      %28 = sbr.rel (0) target = $region17
    $region16: #{tpu_custom_call.1} parent=1 // pred_region
      _
    $region17: #{tpu_custom_call.1} parent=1 // pred_fallthru
      _
    // Predicated region
    $region18: #{tpu_custom_call.1} parent=1 // pred_check
      _
    $region19: #{tpu_custom_call.1} parent=1 // pred_check_branch
      %30 = sbr.rel (0) target = $region21
    $region20: #{tpu_custom_call.1} parent=1 // pred_region
      _
    $region21: #{tpu_custom_call.1} parent=1 // pred_fallthru
      _
    // Predicated region
    $region22: #{tpu_custom_call.1} parent=1 // pred_check
      _
    $region23: #{tpu_custom_call.1} parent=1 // pred_check_branch
      %32 = sbr.rel (0) target = $region25
    $region24: #{tpu_custom_call.1} parent=1 // pred_region
      _
    $region25: #{tpu_custom_call.1} parent=1 // pred_fallthru
      _
    // Predicated region
    $region26: #{tpu_custom_call.1} parent=1 // pred_check
      _
    $region27: #{tpu_custom_call.1} parent=1 // pred_check_branch
      %34 = sbr.rel (0) target = $region29
    $region28: #{tpu_custom_call.1} parent=1 // pred_region
      _
    $region29: #{tpu_custom_call.1} parent=1 // pred_fallthru
      _
    // Predicated region
    $region30: #{tpu_custom_call.1} parent=1 // pred_check
      _
    $region31: #{tpu_custom_call.1} parent=1 // pred_check_branch
      %36 = sbr.rel (0) target = $region33
    $region32: #{tpu_custom_call.1} parent=1 // pred_region
      _
    $region33: #{tpu_custom_call.1} parent=1 // pred_fallthru
      _
    // Predicated region
    $region34: #{tpu_custom_call.1} parent=1 // pred_check
      _
    $region35: #{tpu_custom_call.1} parent=1 // pred_check_branch
      %38 = sbr.rel (0) target = $region37
    $region36: #{tpu_custom_call.1} parent=1 // pred_region
      _
    $region37: #{tpu_custom_call.1} parent=1 // pred_fallthru
      _
    // Predicated region
    $region38: #{tpu_custom_call.1} parent=1 // pred_check
      _
    $region39: #{tpu_custom_call.1} parent=1 // pred_check_branch
      %40 = sbr.rel (0) target = $region41
    $region40: #{tpu_custom_call.1} parent=1 // pred_region
      _
    $region41: #{tpu_custom_call.1} parent=1 // pred_fallthru
      _
    // Predicated region
    $region42: #{tpu_custom_call.1} parent=1 // pred_check
      _
    $region43: #{tpu_custom_call.1} parent=1 // pred_check_branch
      %42 = sbr.rel (0) target = $region45
    $region44: #{tpu_custom_call.1} parent=1 // pred_region
      _
    $region45: #{tpu_custom_call.1} parent=1 // pred_fallthru
      _
    // Predicated region
    $region46: #{tpu_custom_call.1} parent=1 // pred_check
      _
    $region47: #{tpu_custom_call.1} parent=1 // pred_check_branch
      %44 = sbr.rel (0) target = $region49
    $region48: #{tpu_custom_call.1} parent=1 // pred_region
      _
    $region49: #{tpu_custom_call.1} parent=1 // pred_fallthru
      _
    // Predicated region
    $region50: #{tpu_custom_call.1} parent=1 // pred_check
      _
    $region51: #{tpu_custom_call.1} parent=1 // pred_check_branch
      %46 = sbr.rel (0) target = $region53
    $region52: #{tpu_custom_call.1} parent=1 // pred_region
      _
    $region53: #{tpu_custom_call.1} parent=1 // pred_fallthru
      _
    %p47 = scmp.eq.s32.totalorder 0, 0
    // Predicated region
    $region54: #{tpu_custom_call.1} parent=1 // pred_check
      %p48 = pneg %p47
    $region55: #{tpu_custom_call.1} parent=1 // pred_check_branch
      %50 = sbr.rel (%p48) target = $region57
    $region56: #{tpu_custom_call.1} parent=1 // pred_region
      %v51 = vld [vmem:[%s4] sm:$0x1]
      %v53 = vlaneseq
      %v54 = vshrl.u32 %v53, 7
      %v55 = vsub.s32 0, %v54
      %v56 = vrot.slane %v51, %v55
      %vm58 = vcmask 261120
      %59 = vst.msk [vmem:[#allocation2] sm:$0xff] %vm58, %v56
      %v60 = vld [vmem:[%s5] sm:$0x1]
      %v62 = vlaneseq
      %v63 = vshrl.u32 %v62, 7
      %v64 = vsub.s32 0, %v63
      %v65 = vrot.slane %v60, %v64
      %67 = vst.msk [vmem:[#allocation3] sm:$0xff] %vm58, %v65
      %v68 = vld [vmem:[%s9] sm:$0x1]
      %v70 = vlaneseq
      %v71 = vshrl.u32 %v70, 7
      %v72 = vsub.s32 0, %v71
      %v73 = vrot.slane %v68, %v72
      %s75 = scalar_lea.vmem [#allocation2], 8
      %76 = vst.msk [vmem:[%s75] sm:$0xff] %vm58, %v73
      %v77 = vld [vmem:[%s10] sm:$0x1]
      %v79 = vlaneseq
      %v80 = vshrl.u32 %v79, 7
      %v81 = vsub.s32 0, %v80
      %v82 = vrot.slane %v77, %v81
      %s84 = scalar_lea.vmem [#allocation3], 8
      %85 = vst.msk [vmem:[%s84] sm:$0xff] %vm58, %v82
    $region57: #{tpu_custom_call.1} parent=1 // pred_fallthru
      _
    %v86 = vld [vmem:[%s0] sm:$0xff]
    %v87 = vld [vmem:[%s0 + $0x8] sm:$0xff]
    %v88 = vld [vmem:[%s0 + $0x10] sm:$0xff]
    %v89 = vld [vmem:[%s0 + $0x18] sm:$0xff]
    %v90 = vld [vmem:[%s0 + $0x20] sm:$0xff]
    %v91 = vld [vmem:[%s0 + $0x28] sm:$0xff]
    %v92 = vld [vmem:[%s0 + $0x30] sm:$0xff]
    %v93 = vld [vmem:[%s0 + $0x38] sm:$0xff]
    %v94 = vld [vmem:[%s1] sm:$0xf]
    %v95 = vld [vmem:[%s3] sm:$0x1]
    %v97 = vlaneseq
    %v98 = vshrl.u32 %v97, 7
    %v99 = vsub.s32 0, %v98
    %v100 = vrot.slane %v95, %v99
    %vm102 = vcmask 31744
    %v104 = vsel %vm102, %v86, 0
    %v107 = vsel %vm102, %v87, 0
    %v110 = vsel %vm102, %v88, 0
    %v113 = vsel %vm102, %v89, 0
    %v116 = vsel %vm102, %v90, 0
    %v119 = vsel %vm102, %v91, 0
    %v122 = vsel %vm102, %v92, 0
    %v125 = vsel %vm102, %v93, 0
    %vm127 = vcmask 1043456
    %v129 = vsel %vm127, %v94, 0
    %131 = vmatprep.subr.mxu0 0.0
    %132 = vmatpush1.msra.mxu0 %v129
    %133 = vmatprep.subr.mxu0 0.0
    %134 = vmatpush1.msra.mxu0 0.0
    %135 = vmatprep.subr.mxu0 0.0
    %136 = vmatpush1.msra.mxu0 0.0
    %137 = vmatprep.subr.mxu0 0.0
    %138 = vmatpush1.msra.mxu0 0.0
    %139 = vmatprep.subr.mxu0 0.0
    %140 = vmatpush1.msra.mxu0 0.0
    %141 = vmatprep.subr.mxu0 0.0
    %142 = vmatpush1.msra.mxu0 0.0
    %143 = vmatprep.subr.mxu0 0.0
    %144 = vmatpush1.msra.mxu0 0.0
    %145 = vmatprep.subr.mxu0 0.0
    %146 = vmatpush1.msra.mxu0 0.0
    %147 = vmatprep.subr.mxu0 0.0
    %148 = vmatpush1.msra.mxu0 0.0
    %149 = vmatprep.subr.mxu0 0.0
    %150 = vmatpush1.msra.mxu0 0.0
    %151 = vmatprep.subr.mxu0 0.0
    %152 = vmatpush1.msra.mxu0 0.0
    %153 = vmatprep.subr.mxu0 0.0
    %154 = vmatpush1.msra.mxu0 0.0
    %155 = vmatprep.subr.mxu0 0.0
    %156 = vmatpush1.msra.mxu0 0.0
    %157 = vmatprep.subr.mxu0 0.0
    %158 = vmatpush1.msra.mxu0 0.0
    %159 = vmatprep.subr.mxu0 0.0
    %160 = vmatpush1.msra.mxu0 0.0
    %161 = vmatprep.subr.mxu0 0.0
    %162 = vmatpush1.msra.mxu0 0.0
    %163 = vmatprep.subr.mxu0 0.0
    %164 = vmatpush1.msra.mxu0 0.0
    %165 = vmatprep.subr.mxu0 0.0
    %166 = vmatpush1.msra.mxu0 0.0
    %167 = vmatprep.subr.mxu0 0.0
    %168 = vmatpush1.msra.mxu0 0.0
    %169 = vmatprep.subr.mxu0 0.0
    %170 = vmatpush1.msra.mxu0 0.0
    %171 = vmatprep.subr.mxu0 0.0
    %172 = vmatpush1.msra.mxu0 0.0
    %173 = vmatprep.subr.mxu0 0.0
    %174 = vmatpush1.msra.mxu0 0.0
    %175 = vmatprep.subr.mxu0 0.0
    %176 = vmatpush1.msra.mxu0 0.0
    %177 = vmatprep.subr.mxu0 0.0
    %178 = vmatpush1.msra.mxu0 0.0
    %179 = vmatprep.subr.mxu0 0.0
    %180 = vmatpush1.msra.mxu0 0.0
    %181 = vmatprep.subr.mxu0 0.0
    %182 = vmatpush1.msra.mxu0 0.0
    %183 = vmatprep.subr.mxu0 0.0
    %184 = vmatpush1.msra.mxu0 0.0
    %185 = vmatprep.subr.mxu0 0.0
    %186 = vmatpush1.msra.mxu0 0.0
    %187 = vmatprep.subr.mxu0 0.0
    %188 = vmatpush1.msra.mxu0 0.0
    %189 = vmatprep.subr.mxu0 0.0
    %190 = vmatpush1.msra.mxu0 0.0
    %191 = vmatprep.subr.mxu0 0.0
    %192 = vmatpush1.msra.mxu0 0.0
    %193 = vmatprep.subr.mxu0 0.0
    %194 = vmatpush1.msra.mxu0 0.0
    %195 = vmatprep.mubr.f32.mxu0 0.0
    %196 = vmatmul.mubr.f32.gmra.mrb[0].mxu0 %v104
    %v197 = vpop.f32.mrb[0].mxu0
    %v198 = vadd.f32 %v100, %v197
    %v199 = vpop.f32.mrb[0].mxu0
    %200 = vmatprep.mubr.f32.mxu0 0.0
    %201 = vmatmul.mubr.f32.gmra.mrb[0].mxu0 %v107
    %v202 = vpop.f32.mrb[0].mxu0
    %v203 = vadd.f32 %v100, %v202
    %v204 = vpop.f32.mrb[0].mxu0
    %205 = vmatprep.mubr.f32.mxu0 0.0
    %206 = vmatmul.mubr.f32.gmra.mrb[0].mxu0 %v110
    %v207 = vpop.f32.mrb[0].mxu0
    %v208 = vadd.f32 %v100, %v207
    %v209 = vpop.f32.mrb[0].mxu0
    %210 = vmatprep.mubr.f32.mxu0 0.0
    %211 = vmatmul.mubr.f32.gmra.mrb[0].mxu0 %v113
    %v212 = vpop.f32.mrb[0].mxu0
    %v213 = vadd.f32 %v100, %v212
    %v214 = vpop.f32.mrb[0].mxu0
    %215 = vmatprep.mubr.f32.mxu0 0.0
    %216 = vmatmul.mubr.f32.gmra.mrb[0].mxu0 %v116
    %v217 = vpop.f32.mrb[0].mxu0
    %v218 = vadd.f32 %v100, %v217
    %v219 = vpop.f32.mrb[0].mxu0
    %220 = vmatprep.mubr.f32.mxu0 0.0
    %221 = vmatmul.mubr.f32.gmra.mrb[0].mxu0 %v119
    %v222 = vpop.f32.mrb[0].mxu0
    %v223 = vadd.f32 %v100, %v222
    %v224 = vpop.f32.mrb[0].mxu0
    %225 = vmatprep.mubr.f32.mxu0 0.0
    %226 = vmatmul.mubr.f32.gmra.mrb[0].mxu0 %v122
    %v227 = vpop.f32.mrb[0].mxu0
    %v228 = vadd.f32 %v100, %v227
    %v229 = vpop.f32.mrb[0].mxu0
    %230 = vmatprep.mubr.f32.mxu0 0.0
    %231 = vmatmul.mubr.f32.gmra.mrb[0].mxu0 %v125
    %v232 = vpop.f32.mrb[0].mxu0
    %v233 = vadd.f32 %v100, %v232
    %v234 = vpop.f32.mrb[0].mxu0
    %235 = vdwg.mxu0
    %236 = vst [vmem:[#allocation4] sm:$0xff] %v198
    %237 = vst [vmem:[#allocation4 + $0x8] sm:$0xff] %v203
    %238 = vst [vmem:[#allocation4 + $0x10] sm:$0xff] %v208
    %239 = vst [vmem:[#allocation4 + $0x18] sm:$0xff] %v213
    %240 = vst [vmem:[#allocation4 + $0x20] sm:$0xff] %v218
    %241 = vst [vmem:[#allocation4 + $0x28] sm:$0xff] %v223
    %242 = vst [vmem:[#allocation4 + $0x30] sm:$0xff] %v228
    %243 = vst [vmem:[#allocation4 + $0x38] sm:$0xff] %v233
    %v244 = vld [vmem:[%s2] sm:$0xff]
    %v245 = vld [vmem:[%s2 + $0x8] sm:$0xff]
    %v246 = vld [vmem:[%s2 + $0x10] sm:$0xff]
    %v247 = vld [vmem:[%s2 + $0x18] sm:$0xff]
    %v248 = vld [vmem:[#allocation2] sm:$0xff]
    %v249 = vld [vmem:[#allocation3] sm:$0xff]
    %v250 = vld [vmem:[#allocation4] sm:$0xff]
    %vm251 = vcmask 261120
    %v253 = vsel %vm251, %v248, 0
    %255 = vmatprep.subr.mxu0 0.0
    %256 = vmatpush1.msra.mxu0 %v244
    %257 = vmatprep.subr.mxu0 0.0
    %258 = vmatpush1.msra.mxu0 %v245
    %259 = vmatprep.subr.mxu0 0.0
    %260 = vmatpush1.msra.mxu0 %v246
    %261 = vmatprep.subr.mxu0 0.0
    %262 = vmatpush1.msra.mxu0 %v247
    %263 = vmatprep.subr.mxu0 0.0
    %264 = vmatpush1.msra.mxu0 0.0
    %265 = vmatprep.subr.mxu0 0.0
    %266 = vmatpush1.msra.mxu0 0.0
    %267 = vmatprep.subr.mxu0 0.0
    %268 = vmatpush1.msra.mxu0 0.0
    %269 = vmatprep.subr.mxu0 0.0
    %270 = vmatpush1.msra.mxu0 0.0
    %271 = vmatprep.subr.mxu0 0.0
    %272 = vmatpush1.msra.mxu0 0.0
    %273 = vmatprep.subr.mxu0 0.0
    %274 = vmatpush1.msra.mxu0 0.0
    %275 = vmatprep.subr.mxu0 0.0
    %276 = vmatpush1.msra.mxu0 0.0
    %277 = vmatprep.subr.mxu0 0.0
    %278 = vmatpush1.msra.mxu0 0.0
    %279 = vmatprep.subr.mxu0 0.0
    %280 = vmatpush1.msra.mxu0 0.0
    %281 = vmatprep.subr.mxu0 0.0
    %282 = vmatpush1.msra.mxu0 0.0
    %283 = vmatprep.subr.mxu0 0.0
    %284 = vmatpush1.msra.mxu0 0.0
    %285 = vmatprep.subr.mxu0 0.0
    %286 = vmatpush1.msra.mxu0 0.0
    %287 = vmatprep.subr.mxu0 0.0
    %288 = vmatpush1.msra.mxu0 0.0
    %289 = vmatprep.subr.mxu0 0.0
    %290 = vmatpush1.msra.mxu0 0.0
    %291 = vmatprep.subr.mxu0 0.0
    %292 = vmatpush1.msra.mxu0 0.0
    %293 = vmatprep.subr.mxu0 0.0
    %294 = vmatpush1.msra.mxu0 0.0
    %295 = vmatprep.subr.mxu0 0.0
    %296 = vmatpush1.msra.mxu0 0.0
    %297 = vmatprep.subr.mxu0 0.0
    %298 = vmatpush1.msra.mxu0 0.0
    %299 = vmatprep.subr.mxu0 0.0
    %300 = vmatpush1.msra.mxu0 0.0
    %301 = vmatprep.subr.mxu0 0.0
    %302 = vmatpush1.msra.mxu0 0.0
    %303 = vmatprep.subr.mxu0 0.0
    %304 = vmatpush1.msra.mxu0 0.0
    %305 = vmatprep.subr.mxu0 0.0
    %306 = vmatpush1.msra.mxu0 0.0
    %307 = vmatprep.subr.mxu0 0.0
    %308 = vmatpush1.msra.mxu0 0.0
    %309 = vmatprep.subr.mxu0 0.0
    %310 = vmatpush1.msra.mxu0 0.0
    %311 = vmatprep.subr.mxu0 0.0
    %312 = vmatpush1.msra.mxu0 0.0
    %313 = vmatprep.subr.mxu0 0.0
    %314 = vmatpush1.msra.mxu0 0.0
    %315 = vmatprep.subr.mxu0 0.0
    %316 = vmatpush1.msra.mxu0 0.0
    %317 = vmatprep.subr.mxu0 0.0
    %318 = vmatpush1.msra.mxu0 0.0
    %319 = vmatprep.mubr.f32.mxu0 0.0
    %320 = vmatmul.mubr.f32.gmra.mrb[0].mxu0 %v253
    %v321 = vpop.f32.mrb[0].mxu0
    %v322 = vadd.f32 0.0, %v321
    %v323 = vpop.f32.mrb[0].mxu0
    %324 = vdwg.mxu0
    %v325 = vadd.f32 %v250, %v322
    %v326 = vxor.u32 %v325, 2147483648
    %v327 = vmul.f32 %v326, 1.442695
    %v328 = vpow.pop %v327
    %v329 = vadd.f32 %v328, 1.0
    %v330 = vrcp.pop %v329
    %v331 = vmul.f32 1.0, %v330
    %v332 = vtanh.pop %v325
    %334 = vrot.lane.b32.xlu0 %v249, 32
    %v335 = vpop.permute.xlu0 %334
    %v337 = vmul.f32 %v331, %v335
    %339 = vrot.lane.b32.xlu0 %v332, 32
    %v340 = vpop.permute.xlu0 %339
    %v342 = vmul.f32 %v331, %v340
    %344 = vrot.lane.b32.xlu0 %v342, 32
    %v345 = vpop.permute.xlu0 %344
    %v347 = vadd.f32 %v337, %v345
    %v348 = vtanh.pop %v347
    %350 = vrot.lane.b32.xlu0 %v348, 32
    %v351 = vpop.permute.xlu0 %350
    %v353 = vmul.f32 %v331, %v351
    %355 = vrot.lane.b32.xlu0 %v353, 64
    %v356 = vpop.permute.xlu0 %355
    %358 = vst.msk [vmem:[#allocation5] sm:$0xff] %vm251, %v356
    %s359 = scalar_lea.vmem [#allocation4], 8
    %v360 = vld [vmem:[%s359] sm:$0xff]
    %v361 = vsel %vm251, %v356, 0
    %363 = vmatprep.subr.mxu0 0.0
    %364 = vmatpush1.msra.mxu0 %v244
    %365 = vmatprep.subr.mxu0 0.0
    %366 = vmatpush1.msra.mxu0 %v245
    %367 = vmatprep.subr.mxu0 0.0
    %368 = vmatpush1.msra.mxu0 %v246
    %369 = vmatprep.subr.mxu0 0.0
    %370 = vmatpush1.msra.mxu0 %v247
    %371 = vmatprep.subr.mxu0 0.0
    %372 = vmatpush1.msra.mxu0 0.0
    %373 = vmatprep.subr.mxu0 0.0
    %374 = vmatpush1.msra.mxu0 0.0
    %375 = vmatprep.subr.mxu0 0.0
    %376 = vmatpush1.msra.mxu0 0.0
    %377 = vmatprep.subr.mxu0 0.0
    %378 = vmatpush1.msra.mxu0 0.0
    %379 = vmatprep.subr.mxu0 0.0
    %380 = vmatpush1.msra.mxu0 0.0
    %381 = vmatprep.subr.mxu0 0.0
    %382 = vmatpush1.msra.mxu0 0.0
    %383 = vmatprep.subr.mxu0 0.0
    %384 = vmatpush1.msra.mxu0 0.0
    %385 = vmatprep.subr.mxu0 0.0
    %386 = vmatpush1.msra.mxu0 0.0
    %387 = vmatprep.subr.mxu0 0.0
    %388 = vmatpush1.msra.mxu0 0.0
    %389 = vmatprep.subr.mxu0 0.0
    %390 = vmatpush1.msra.mxu0 0.0
    %391 = vmatprep.subr.mxu0 0.0
    %392 = vmatpush1.msra.mxu0 0.0
    %393 = vmatprep.subr.mxu0 0.0
    %394 = vmatpush1.msra.mxu0 0.0
    %395 = vmatprep.subr.mxu0 0.0
    %396 = vmatpush1.msra.mxu0 0.0
    %397 = vmatprep.subr.mxu0 0.0
    %398 = vmatpush1.msra.mxu0 0.0
    %399 = vmatprep.subr.mxu0 0.0
    %400 = vmatpush1.msra.mxu0 0.0
    %401 = vmatprep.subr.mxu0 0.0
    %402 = vmatpush1.msra.mxu0 0.0
    %403 = vmatprep.subr.mxu0 0.0
    %404 = vmatpush1.msra.mxu0 0.0
    %405 = vmatprep.subr.mxu0 0.0
    %406 = vmatpush1.msra.mxu0 0.0
    %407 = vmatprep.subr.mxu0 0.0
    %408 = vmatpush1.msra.mxu0 0.0
    %409 = vmatprep.subr.mxu0 0.0
    %410 = vmatpush1.msra.mxu0 0.0
    %411 = vmatprep.subr.mxu0 0.0
    %412 = vmatpush1.msra.mxu0 0.0
    %413 = vmatprep.subr.mxu0 0.0
    %414 = vmatpush1.msra.mxu0 0.0
    %415 = vmatprep.subr.mxu0 0.0
    %416 = vmatpush1.msra.mxu0 0.0
    %417 = vmatprep.subr.mxu0 0.0
    %418 = vmatpush1.msra.mxu0 0.0
    %419 = vmatprep.subr.mxu0 0.0
    %420 = vmatpush1.msra.mxu0 0.0
    %421 = vmatprep.subr.mxu0 0.0
    %422 = vmatpush1.msra.mxu0 0.0
    %423 = vmatprep.subr.mxu0 0.0
    %424 = vmatpush1.msra.mxu0 0.0
    %425 = vmatprep.subr.mxu0 0.0
    %426 = vmatpush1.msra.mxu0 0.0
    %427 = vmatprep.mubr.f32.mxu0 0.0
    %428 = vmatmul.mubr.f32.gmra.mrb[0].mxu0 %v361
    %v429 = vpop.f32.mrb[0].mxu0
    %v430 = vadd.f32 0.0, %v429
    %v431 = vpop.f32.mrb[0].mxu0
    %432 = vdwg.mxu0
    %v433 = vadd.f32 %v360, %v430
    %v434 = vxor.u32 %v433, 2147483648
    %v435 = vmul.f32 %v434, 1.442695
    %v436 = vpow.pop %v435
    %v437 = vadd.f32 %v436, 1.0
    %v438 = vrcp.pop %v437
    %v439 = vmul.f32 1.0, %v438
    %v440 = vtanh.pop %v433
    %v441 = vmul.f32 %v439, %v347
    %443 = vrot.lane.b32.xlu0 %v440, 32
    %v444 = vpop.permute.xlu0 %443
    %v446 = vmul.f32 %v439, %v444
    %448 = vrot.lane.b32.xlu0 %v446, 32
    %v449 = vpop.permute.xlu0 %448
    %v451 = vadd.f32 %v441, %v449
    %v452 = vtanh.pop %v451
    %454 = vrot.lane.b32.xlu0 %v452, 32
    %v455 = vpop.permute.xlu0 %454
    %v457 = vmul.f32 %v439, %v455
    %459 = vrot.lane.b32.xlu0 %v457, 64
    %v460 = vpop.permute.xlu0 %459
    %s462 = scalar_lea.vmem [#allocation5], 8
    %463 = vst.msk [vmem:[%s462] sm:$0xff] %vm251, %v460
    %s464 = scalar_lea.vmem [#allocation4], 16
    %v465 = vld [vmem:[%s464] sm:$0xff]
    %v466 = vsel %vm251, %v460, 0
    %468 = vmatprep.subr.mxu0 0.0
    %469 = vmatpush1.msra.mxu0 %v244
    %470 = vmatprep.subr.mxu0 0.0
    %471 = vmatpush1.msra.mxu0 %v245
    %472 = vmatprep.subr.mxu0 0.0
    %473 = vmatpush1.msra.mxu0 %v246
    %474 = vmatprep.subr.mxu0 0.0
    %475 = vmatpush1.msra.mxu0 %v247
    %476 = vmatprep.subr.mxu0 0.0
    %477 = vmatpush1.msra.mxu0 0.0
    %478 = vmatprep.subr.mxu0 0.0
    %479 = vmatpush1.msra.mxu0 0.0
    %480 = vmatprep.subr.mxu0 0.0
    %481 = vmatpush1.msra.mxu0 0.0
    %482 = vmatprep.subr.mxu0 0.0
    %483 = vmatpush1.msra.mxu0 0.0
    %484 = vmatprep.subr.mxu0 0.0
    %485 = vmatpush1.msra.mxu0 0.0
    %486 = vmatprep.subr.mxu0 0.0
    %487 = vmatpush1.msra.mxu0 0.0
    %488 = vmatprep.subr.mxu0 0.0
    %489 = vmatpush1.msra.mxu0 0.0
    %490 = vmatprep.subr.mxu0 0.0
    %491 = vmatpush1.msra.mxu0 0.0
    %492 = vmatprep.subr.mxu0 0.0
    %493 = vmatpush1.msra.mxu0 0.0
    %494 = vmatprep.subr.mxu0 0.0
    %495 = vmatpush1.msra.mxu0 0.0
    %496 = vmatprep.subr.mxu0 0.0
    %497 = vmatpush1.msra.mxu0 0.0
    %498 = vmatprep.subr.mxu0 0.0
    %499 = vmatpush1.msra.mxu0 0.0
    %500 = vmatprep.subr.mxu0 0.0
    %501 = vmatpush1.msra.mxu0 0.0
    %502 = vmatprep.subr.mxu0 0.0
    %503 = vmatpush1.msra.mxu0 0.0
    %504 = vmatprep.subr.mxu0 0.0
    %505 = vmatpush1.msra.mxu0 0.0
    %506 = vmatprep.subr.mxu0 0.0
    %507 = vmatpush1.msra.mxu0 0.0
    %508 = vmatprep.subr.mxu0 0.0
    %509 = vmatpush1.msra.mxu0 0.0
    %510 = vmatprep.subr.mxu0 0.0
    %511 = vmatpush1.msra.mxu0 0.0
    %512 = vmatprep.subr.mxu0 0.0
    %513 = vmatpush1.msra.mxu0 0.0
    %514 = vmatprep.subr.mxu0 0.0
    %515 = vmatpush1.msra.mxu0 0.0
    %516 = vmatprep.subr.mxu0 0.0
    %517 = vmatpush1.msra.mxu0 0.0
    %518 = vmatprep.subr.mxu0 0.0
    %519 = vmatpush1.msra.mxu0 0.0
    %520 = vmatprep.subr.mxu0 0.0
    %521 = vmatpush1.msra.mxu0 0.0
    %522 = vmatprep.subr.mxu0 0.0
    %523 = vmatpush1.msra.mxu0 0.0
    %524 = vmatprep.subr.mxu0 0.0
    %525 = vmatpush1.msra.mxu0 0.0
    %526 = vmatprep.subr.mxu0 0.0
    %527 = vmatpush1.msra.mxu0 0.0
    %528 = vmatprep.subr.mxu0 0.0
    %529 = vmatpush1.msra.mxu0 0.0
    %530 = vmatprep.subr.mxu0 0.0
    %531 = vmatpush1.msra.mxu0 0.0
    %532 = vmatprep.mubr.f32.mxu0 0.0
    %533 = vmatmul.mubr.f32.gmra.mrb[0].mxu0 %v466
    %v534 = vpop.f32.mrb[0].mxu0
    %v535 = vadd.f32 0.0, %v534
    %v536 = vpop.f32.mrb[0].mxu0
    %537 = vdwg.mxu0
    %v538 = vadd.f32 %v465, %v535
    %v539 = vxor.u32 %v538, 2147483648
    %v540 = vmul.f32 %v539, 1.442695
    %v541 = vpow.pop %v540
    %v542 = vadd.f32 %v541, 1.0
    %v543 = vrcp.pop %v542
    %v544 = vmul.f32 1.0, %v543
    %v545 = vtanh.pop %v538
    %v546 = vmul.f32 %v544, %v451
    %548 = vrot.lane.b32.xlu0 %v545, 32
    %v549 = vpop.permute.xlu0 %548
    %v551 = vmul.f32 %v544, %v549
    %553 = vrot.lane.b32.xlu0 %v551, 32
    %v554 = vpop.permute.xlu0 %553
    %v556 = vadd.f32 %v546, %v554
    %v557 = vtanh.pop %v556
    %559 = vrot.lane.b32.xlu0 %v557, 32
    %v560 = vpop.permute.xlu0 %559
    %v562 = vmul.f32 %v544, %v560
    %564 = vrot.lane.b32.xlu0 %v562, 64
    %v565 = vpop.permute.xlu0 %564
    %s567 = scalar_lea.vmem [#allocation5], 16
    %568 = vst.msk [vmem:[%s567] sm:$0xff] %vm251, %v565
    %s569 = scalar_lea.vmem [#allocation4], 24
    %v570 = vld [vmem:[%s569] sm:$0xff]
    %v571 = vsel %vm251, %v565, 0
    %573 = vmatprep.subr.mxu0 0.0
    %574 = vmatpush1.msra.mxu0 %v244
    %575 = vmatprep.subr.mxu0 0.0
    %576 = vmatpush1.msra.mxu0 %v245
    %577 = vmatprep.subr.mxu0 0.0
    %578 = vmatpush1.msra.mxu0 %v246
    %579 = vmatprep.subr.mxu0 0.0
    %580 = vmatpush1.msra.mxu0 %v247
    %581 = vmatprep.subr.mxu0 0.0
    %582 = vmatpush1.msra.mxu0 0.0
    %583 = vmatprep.subr.mxu0 0.0
    %584 = vmatpush1.msra.mxu0 0.0
    %585 = vmatprep.subr.mxu0 0.0
    %586 = vmatpush1.msra.mxu0 0.0
    %587 = vmatprep.subr.mxu0 0.0
    %588 = vmatpush1.msra.mxu0 0.0
    %589 = vmatprep.subr.mxu0 0.0
    %590 = vmatpush1.msra.mxu0 0.0
    %591 = vmatprep.subr.mxu0 0.0
    %592 = vmatpush1.msra.mxu0 0.0
    %593 = vmatprep.subr.mxu0 0.0
    %594 = vmatpush1.msra.mxu0 0.0
    %595 = vmatprep.subr.mxu0 0.0
    %596 = vmatpush1.msra.mxu0 0.0
    %597 = vmatprep.subr.mxu0 0.0
    %598 = vmatpush1.msra.mxu0 0.0
    %599 = vmatprep.subr.mxu0 0.0
    %600 = vmatpush1.msra.mxu0 0.0
    %601 = vmatprep.subr.mxu0 0.0
    %602 = vmatpush1.msra.mxu0 0.0
    %603 = vmatprep.subr.mxu0 0.0
    %604 = vmatpush1.msra.mxu0 0.0
    %605 = vmatprep.subr.mxu0 0.0
    %606 = vmatpush1.msra.mxu0 0.0
    %607 = vmatprep.subr.mxu0 0.0
    %608 = vmatpush1.msra.mxu0 0.0
    %609 = vmatprep.subr.mxu0 0.0
    %610 = vmatpush1.msra.mxu0 0.0
    %611 = vmatprep.subr.mxu0 0.0
    %612 = vmatpush1.msra.mxu0 0.0
    %613 = vmatprep.subr.mxu0 0.0
    %614 = vmatpush1.msra.mxu0 0.0
    %615 = vmatprep.subr.mxu0 0.0
    %616 = vmatpush1.msra.mxu0 0.0
    %617 = vmatprep.subr.mxu0 0.0
    %618 = vmatpush1.msra.mxu0 0.0
    %619 = vmatprep.subr.mxu0 0.0
    %620 = vmatpush1.msra.mxu0 0.0
    %621 = vmatprep.subr.mxu0 0.0
    %622 = vmatpush1.msra.mxu0 0.0
    %623 = vmatprep.subr.mxu0 0.0
    %624 = vmatpush1.msra.mxu0 0.0
    %625 = vmatprep.subr.mxu0 0.0
    %626 = vmatpush1.msra.mxu0 0.0
    %627 = vmatprep.subr.mxu0 0.0
    %628 = vmatpush1.msra.mxu0 0.0
    %629 = vmatprep.subr.mxu0 0.0
    %630 = vmatpush1.msra.mxu0 0.0
    %631 = vmatprep.subr.mxu0 0.0
    %632 = vmatpush1.msra.mxu0 0.0
    %633 = vmatprep.subr.mxu0 0.0
    %634 = vmatpush1.msra.mxu0 0.0
    %635 = vmatprep.subr.mxu0 0.0
    %636 = vmatpush1.msra.mxu0 0.0
    %637 = vmatprep.mubr.f32.mxu0 0.0
    %638 = vmatmul.mubr.f32.gmra.mrb[0].mxu0 %v571
    %v639 = vpop.f32.mrb[0].mxu0
    %v640 = vadd.f32 0.0, %v639
    %v641 = vpop.f32.mrb[0].mxu0
    %642 = vdwg.mxu0
    %v643 = vadd.f32 %v570, %v640
    %v644 = vxor.u32 %v643, 2147483648
    %v645 = vmul.f32 %v644, 1.442695
    %v646 = vpow.pop %v645
    %v647 = vadd.f32 %v646, 1.0
    %v648 = vrcp.pop %v647
    %v649 = vmul.f32 1.0, %v648
    %v650 = vtanh.pop %v643
    %v651 = vmul.f32 %v649, %v556
    %653 = vrot.lane.b32.xlu0 %v650, 32
    %v654 = vpop.permute.xlu0 %653
    %v656 = vmul.f32 %v649, %v654
    %658 = vrot.lane.b32.xlu0 %v656, 32
    %v659 = vpop.permute.xlu0 %658
    %v661 = vadd.f32 %v651, %v659
    %v662 = vtanh.pop %v661
    %664 = vrot.lane.b32.xlu0 %v662, 32
    %v665 = vpop.permute.xlu0 %664
    %v667 = vmul.f32 %v649, %v665
    %669 = vrot.lane.b32.xlu0 %v667, 64
    %v670 = vpop.permute.xlu0 %669
    %s672 = scalar_lea.vmem [#allocation5], 24
    %673 = vst.msk [vmem:[%s672] sm:$0xff] %vm251, %v670
    %s674 = scalar_lea.vmem [#allocation4], 32
    %v675 = vld [vmem:[%s674] sm:$0xff]
    %v676 = vsel %vm251, %v670, 0
    %678 = vmatprep.subr.mxu0 0.0
    %679 = vmatpush1.msra.mxu0 %v244
    %680 = vmatprep.subr.mxu0 0.0
    %681 = vmatpush1.msra.mxu0 %v245
    %682 = vmatprep.subr.mxu0 0.0
    %683 = vmatpush1.msra.mxu0 %v246
    %684 = vmatprep.subr.mxu0 0.0
    %685 = vmatpush1.msra.mxu0 %v247
    %686 = vmatprep.subr.mxu0 0.0
    %687 = vmatpush1.msra.mxu0 0.0
    %688 = vmatprep.subr.mxu0 0.0
    %689 = vmatpush1.msra.mxu0 0.0
    %690 = vmatprep.subr.mxu0 0.0
    %691 = vmatpush1.msra.mxu0 0.0
    %692 = vmatprep.subr.mxu0 0.0
    %693 = vmatpush1.msra.mxu0 0.0
    %694 = vmatprep.subr.mxu0 0.0
    %695 = vmatpush1.msra.mxu0 0.0
    %696 = vmatprep.subr.mxu0 0.0
    %697 = vmatpush1.msra.mxu0 0.0
    %698 = vmatprep.subr.mxu0 0.0
    %699 = vmatpush1.msra.mxu0 0.0
    %700 = vmatprep.subr.mxu0 0.0
    %701 = vmatpush1.msra.mxu0 0.0
    %702 = vmatprep.subr.mxu0 0.0
    %703 = vmatpush1.msra.mxu0 0.0
    %704 = vmatprep.subr.mxu0 0.0
    %705 = vmatpush1.msra.mxu0 0.0
    %706 = vmatprep.subr.mxu0 0.0
    %707 = vmatpush1.msra.mxu0 0.0
    %708 = vmatprep.subr.mxu0 0.0
    %709 = vmatpush1.msra.mxu0 0.0
    %710 = vmatprep.subr.mxu0 0.0
    %711 = vmatpush1.msra.mxu0 0.0
    %712 = vmatprep.subr.mxu0 0.0
    %713 = vmatpush1.msra.mxu0 0.0
    %714 = vmatprep.subr.mxu0 0.0
    %715 = vmatpush1.msra.mxu0 0.0
    %716 = vmatprep.subr.mxu0 0.0
    %717 = vmatpush1.msra.mxu0 0.0
    %718 = vmatprep.subr.mxu0 0.0
    %719 = vmatpush1.msra.mxu0 0.0
    %720 = vmatprep.subr.mxu0 0.0
    %721 = vmatpush1.msra.mxu0 0.0
    %722 = vmatprep.subr.mxu0 0.0
    %723 = vmatpush1.msra.mxu0 0.0
    %724 = vmatprep.subr.mxu0 0.0
    %725 = vmatpush1.msra.mxu0 0.0
    %726 = vmatprep.subr.mxu0 0.0
    %727 = vmatpush1.msra.mxu0 0.0
    %728 = vmatprep.subr.mxu0 0.0
    %729 = vmatpush1.msra.mxu0 0.0
    %730 = vmatprep.subr.mxu0 0.0
    %731 = vmatpush1.msra.mxu0 0.0
    %732 = vmatprep.subr.mxu0 0.0
    %733 = vmatpush1.msra.mxu0 0.0
    %734 = vmatprep.subr.mxu0 0.0
    %735 = vmatpush1.msra.mxu0 0.0
    %736 = vmatprep.subr.mxu0 0.0
    %737 = vmatpush1.msra.mxu0 0.0
    %738 = vmatprep.subr.mxu0 0.0
    %739 = vmatpush1.msra.mxu0 0.0
    %740 = vmatprep.subr.mxu0 0.0
    %741 = vmatpush1.msra.mxu0 0.0
    %742 = vmatprep.mubr.f32.mxu0 0.0
    %743 = vmatmul.mubr.f32.gmra.mrb[0].mxu0 %v676
    %v744 = vpop.f32.mrb[0].mxu0
    %v745 = vadd.f32 0.0, %v744
    %v746 = vpop.f32.mrb[0].mxu0
    %747 = vdwg.mxu0
    %v748 = vadd.f32 %v675, %v745
    %v749 = vxor.u32 %v748, 2147483648
    %v750 = vmul.f32 %v749, 1.442695
    %v751 = vpow.pop %v750
    %v752 = vadd.f32 %v751, 1.0
    %v753 = vrcp.pop %v752
    %v754 = vmul.f32 1.0, %v753
    %v755 = vtanh.pop %v748
    %v756 = vmul.f32 %v754, %v661
    %758 = vrot.lane.b32.xlu0 %v755, 32
    %v759 = vpop.permute.xlu0 %758
    %v761 = vmul.f32 %v754, %v759
    %763 = vrot.lane.b32.xlu0 %v761, 32
    %v764 = vpop.permute.xlu0 %763
    %v766 = vadd.f32 %v756, %v764
    %v767 = vtanh.pop %v766
    %769 = vrot.lane.b32.xlu0 %v767, 32
    %v770 = vpop.permute.xlu0 %769
    %v772 = vmul.f32 %v754, %v770
    %774 = vrot.lane.b32.xlu0 %v772, 64
    %v775 = vpop.permute.xlu0 %774
    %s777 = scalar_lea.vmem [#allocation5], 32
    %778 = vst.msk [vmem:[%s777] sm:$0xff] %vm251, %v775
    %s779 = scalar_lea.vmem [#allocation4], 40
    %v780 = vld [vmem:[%s779] sm:$0xff]
    %v781 = vsel %vm251, %v775, 0
    %783 = vmatprep.subr.mxu0 0.0
    %784 = vmatpush1.msra.mxu0 %v244
    %785 = vmatprep.subr.mxu0 0.0
    %786 = vmatpush1.msra.mxu0 %v245
    %787 = vmatprep.subr.mxu0 0.0
    %788 = vmatpush1.msra.mxu0 %v246
    %789 = vmatprep.subr.mxu0 0.0
    %790 = vmatpush1.msra.mxu0 %v247
    %791 = vmatprep.subr.mxu0 0.0
    %792 = vmatpush1.msra.mxu0 0.0
    %793 = vmatprep.subr.mxu0 0.0
    %794 = vmatpush1.msra.mxu0 0.0
    %795 = vmatprep.subr.mxu0 0.0
    %796 = vmatpush1.msra.mxu0 0.0
    %797 = vmatprep.subr.mxu0 0.0
    %798 = vmatpush1.msra.mxu0 0.0
    %799 = vmatprep.subr.mxu0 0.0
    %800 = vmatpush1.msra.mxu0 0.0
    %801 = vmatprep.subr.mxu0 0.0
    %802 = vmatpush1.msra.mxu0 0.0
    %803 = vmatprep.subr.mxu0 0.0
    %804 = vmatpush1.msra.mxu0 0.0
    %805 = vmatprep.subr.mxu0 0.0
    %806 = vmatpush1.msra.mxu0 0.0
    %807 = vmatprep.subr.mxu0 0.0
    %808 = vmatpush1.msra.mxu0 0.0
    %809 = vmatprep.subr.mxu0 0.0
    %810 = vmatpush1.msra.mxu0 0.0
    %811 = vmatprep.subr.mxu0 0.0
    %812 = vmatpush1.msra.mxu0 0.0
    %813 = vmatprep.subr.mxu0 0.0
    %814 = vmatpush1.msra.mxu0 0.0
    %815 = vmatprep.subr.mxu0 0.0
    %816 = vmatpush1.msra.mxu0 0.0
    %817 = vmatprep.subr.mxu0 0.0
    %818 = vmatpush1.msra.mxu0 0.0
    %819 = vmatprep.subr.mxu0 0.0
    %820 = vmatpush1.msra.mxu0 0.0
    %821 = vmatprep.subr.mxu0 0.0
    %822 = vmatpush1.msra.mxu0 0.0
    %823 = vmatprep.subr.mxu0 0.0
    %824 = vmatpush1.msra.mxu0 0.0
    %825 = vmatprep.subr.mxu0 0.0
    %826 = vmatpush1.msra.mxu0 0.0
    %827 = vmatprep.subr.mxu0 0.0
    %828 = vmatpush1.msra.mxu0 0.0
    %829 = vmatprep.subr.mxu0 0.0
    %830 = vmatpush1.msra.mxu0 0.0
    %831 = vmatprep.subr.mxu0 0.0
    %832 = vmatpush1.msra.mxu0 0.0
    %833 = vmatprep.subr.mxu0 0.0
    %834 = vmatpush1.msra.mxu0 0.0
    %835 = vmatprep.subr.mxu0 0.0
    %836 = vmatpush1.msra.mxu0 0.0
    %837 = vmatprep.subr.mxu0 0.0
    %838 = vmatpush1.msra.mxu0 0.0
    %839 = vmatprep.subr.mxu0 0.0
    %840 = vmatpush1.msra.mxu0 0.0
    %841 = vmatprep.subr.mxu0 0.0
    %842 = vmatpush1.msra.mxu0 0.0
    %843 = vmatprep.subr.mxu0 0.0
    %844 = vmatpush1.msra.mxu0 0.0
    %845 = vmatprep.subr.mxu0 0.0
    %846 = vmatpush1.msra.mxu0 0.0
    %847 = vmatprep.mubr.f32.mxu0 0.0
    %848 = vmatmul.mubr.f32.gmra.mrb[0].mxu0 %v781
    %v849 = vpop.f32.mrb[0].mxu0
    %v850 = vadd.f32 0.0, %v849
    %v851 = vpop.f32.mrb[0].mxu0
    %852 = vdwg.mxu0
    %v853 = vadd.f32 %v780, %v850
    %v854 = vxor.u32 %v853, 2147483648
    %v855 = vmul.f32 %v854, 1.442695
    %v856 = vpow.pop %v855
    %v857 = vadd.f32 %v856, 1.0
    %v858 = vrcp.pop %v857
    %v859 = vmul.f32 1.0, %v858
    %v860 = vtanh.pop %v853
    %v861 = vmul.f32 %v859, %v766
    %863 = vrot.lane.b32.xlu0 %v860, 32
    %v864 = vpop.permute.xlu0 %863
    %v866 = vmul.f32 %v859, %v864
    %868 = vrot.lane.b32.xlu0 %v866, 32
    %v869 = vpop.permute.xlu0 %868
    %v871 = vadd.f32 %v861, %v869
    %v872 = vtanh.pop %v871
    %874 = vrot.lane.b32.xlu0 %v872, 32
    %v875 = vpop.permute.xlu0 %874
    %v877 = vmul.f32 %v859, %v875
    %879 = vrot.lane.b32.xlu0 %v877, 64
    %v880 = vpop.permute.xlu0 %879
    %s882 = scalar_lea.vmem [#allocation5], 40
    %883 = vst.msk [vmem:[%s882] sm:$0xff] %vm251, %v880
    %s884 = scalar_lea.vmem [#allocation4], 48
    %v885 = vld [vmem:[%s884] sm:$0xff]
    %v886 = vsel %vm251, %v880, 0
    %888 = vmatprep.subr.mxu0 0.0
    %889 = vmatpush1.msra.mxu0 %v244
    %890 = vmatprep.subr.mxu0 0.0
    %891 = vmatpush1.msra.mxu0 %v245
    %892 = vmatprep.subr.mxu0 0.0
    %893 = vmatpush1.msra.mxu0 %v246
    %894 = vmatprep.subr.mxu0 0.0
    %895 = vmatpush1.msra.mxu0 %v247
    %896 = vmatprep.subr.mxu0 0.0
    %897 = vmatpush1.msra.mxu0 0.0
    %898 = vmatprep.subr.mxu0 0.0
    %899 = vmatpush1.msra.mxu0 0.0
    %900 = vmatprep.subr.mxu0 0.0
    %901 = vmatpush1.msra.mxu0 0.0
    %902 = vmatprep.subr.mxu0 0.0
    %903 = vmatpush1.msra.mxu0 0.0
    %904 = vmatprep.subr.mxu0 0.0
    %905 = vmatpush1.msra.mxu0 0.0
    %906 = vmatprep.subr.mxu0 0.0
    %907 = vmatpush1.msra.mxu0 0.0
    %908 = vmatprep.subr.mxu0 0.0
    %909 = vmatpush1.msra.mxu0 0.0
    %910 = vmatprep.subr.mxu0 0.0
    %911 = vmatpush1.msra.mxu0 0.0
    %912 = vmatprep.subr.mxu0 0.0
    %913 = vmatpush1.msra.mxu0 0.0
    %914 = vmatprep.subr.mxu0 0.0
    %915 = vmatpush1.msra.mxu0 0.0
    %916 = vmatprep.subr.mxu0 0.0
    %917 = vmatpush1.msra.mxu0 0.0
    %918 = vmatprep.subr.mxu0 0.0
    %919 = vmatpush1.msra.mxu0 0.0
    %920 = vmatprep.subr.mxu0 0.0
    %921 = vmatpush1.msra.mxu0 0.0
    %922 = vmatprep.subr.mxu0 0.0
    %923 = vmatpush1.msra.mxu0 0.0
    %924 = vmatprep.subr.mxu0 0.0
    %925 = vmatpush1.msra.mxu0 0.0
    %926 = vmatprep.subr.mxu0 0.0
    %927 = vmatpush1.msra.mxu0 0.0
    %928 = vmatprep.subr.mxu0 0.0
    %929 = vmatpush1.msra.mxu0 0.0
    %930 = vmatprep.subr.mxu0 0.0
    %931 = vmatpush1.msra.mxu0 0.0
    %932 = vmatprep.subr.mxu0 0.0
    %933 = vmatpush1.msra.mxu0 0.0
    %934 = vmatprep.subr.mxu0 0.0
    %935 = vmatpush1.msra.mxu0 0.0
    %936 = vmatprep.subr.mxu0 0.0
    %937 = vmatpush1.msra.mxu0 0.0
    %938 = vmatprep.subr.mxu0 0.0
    %939 = vmatpush1.msra.mxu0 0.0
    %940 = vmatprep.subr.mxu0 0.0
    %941 = vmatpush1.msra.mxu0 0.0
    %942 = vmatprep.subr.mxu0 0.0
    %943 = vmatpush1.msra.mxu0 0.0
    %944 = vmatprep.subr.mxu0 0.0
    %945 = vmatpush1.msra.mxu0 0.0
    %946 = vmatprep.subr.mxu0 0.0
    %947 = vmatpush1.msra.mxu0 0.0
    %948 = vmatprep.subr.mxu0 0.0
    %949 = vmatpush1.msra.mxu0 0.0
    %950 = vmatprep.subr.mxu0 0.0
    %951 = vmatpush1.msra.mxu0 0.0
    %952 = vmatprep.mubr.f32.mxu0 0.0
    %953 = vmatmul.mubr.f32.gmra.mrb[0].mxu0 %v886
    %v954 = vpop.f32.mrb[0].mxu0
    %v955 = vadd.f32 0.0, %v954
    %v956 = vpop.f32.mrb[0].mxu0
    %957 = vdwg.mxu0
    %v958 = vadd.f32 %v885, %v955
    %v959 = vxor.u32 %v958, 2147483648
    %v960 = vmul.f32 %v959, 1.442695
    %v961 = vpow.pop %v960
    %v962 = vadd.f32 %v961, 1.0
    %v963 = vrcp.pop %v962
    %v964 = vmul.f32 1.0, %v963
    %v965 = vtanh.pop %v958
    %v966 = vmul.f32 %v964, %v871
    %968 = vrot.lane.b32.xlu0 %v965, 32
    %v969 = vpop.permute.xlu0 %968
    %v971 = vmul.f32 %v964, %v969
    %973 = vrot.lane.b32.xlu0 %v971, 32
    %v974 = vpop.permute.xlu0 %973
    %v976 = vadd.f32 %v966, %v974
    %v977 = vtanh.pop %v976
    %979 = vrot.lane.b32.xlu0 %v977, 32
    %v980 = vpop.permute.xlu0 %979
    %v982 = vmul.f32 %v964, %v980
    %984 = vrot.lane.b32.xlu0 %v982, 64
    %v985 = vpop.permute.xlu0 %984
    %s987 = scalar_lea.vmem [#allocation5], 48
    %988 = vst.msk [vmem:[%s987] sm:$0xff] %vm251, %v985
    %s989 = scalar_lea.vmem [#allocation4], 56
    %v990 = vld [vmem:[%s989] sm:$0xff]
    %v991 = vsel %vm251, %v985, 0
    %993 = vmatprep.subr.mxu0 0.0
    %994 = vmatpush1.msra.mxu0 %v244
    %995 = vmatprep.subr.mxu0 0.0
    %996 = vmatpush1.msra.mxu0 %v245
    %997 = vmatprep.subr.mxu0 0.0
    %998 = vmatpush1.msra.mxu0 %v246
    %999 = vmatprep.subr.mxu0 0.0
    %1000 = vmatpush1.msra.mxu0 %v247
    %1001 = vmatprep.subr.mxu0 0.0
    %1002 = vmatpush1.msra.mxu0 0.0
    %1003 = vmatprep.subr.mxu0 0.0
    %1004 = vmatpush1.msra.mxu0 0.0
    %1005 = vmatprep.subr.mxu0 0.0
    %1006 = vmatpush1.msra.mxu0 0.0
    %1007 = vmatprep.subr.mxu0 0.0
    %1008 = vmatpush1.msra.mxu0 0.0
    %1009 = vmatprep.subr.mxu0 0.0
    %1010 = vmatpush1.msra.mxu0 0.0
    %1011 = vmatprep.subr.mxu0 0.0
    %1012 = vmatpush1.msra.mxu0 0.0
    %1013 = vmatprep.subr.mxu0 0.0
    %1014 = vmatpush1.msra.mxu0 0.0
    %1015 = vmatprep.subr.mxu0 0.0
    %1016 = vmatpush1.msra.mxu0 0.0
    %1017 = vmatprep.subr.mxu0 0.0
    %1018 = vmatpush1.msra.mxu0 0.0
    %1019 = vmatprep.subr.mxu0 0.0
    %1020 = vmatpush1.msra.mxu0 0.0
    %1021 = vmatprep.subr.mxu0 0.0
    %1022 = vmatpush1.msra.mxu0 0.0
    %1023 = vmatprep.subr.mxu0 0.0
    %1024 = vmatpush1.msra.mxu0 0.0
    %1025 = vmatprep.subr.mxu0 0.0
    %1026 = vmatpush1.msra.mxu0 0.0
    %1027 = vmatprep.subr.mxu0 0.0
    %1028 = vmatpush1.msra.mxu0 0.0
    %1029 = vmatprep.subr.mxu0 0.0
    %1030 = vmatpush1.msra.mxu0 0.0
    %1031 = vmatprep.subr.mxu0 0.0
    %1032 = vmatpush1.msra.mxu0 0.0
    %1033 = vmatprep.subr.mxu0 0.0
    %1034 = vmatpush1.msra.mxu0 0.0
    %1035 = vmatprep.subr.mxu0 0.0
    %1036 = vmatpush1.msra.mxu0 0.0
    %1037 = vmatprep.subr.mxu0 0.0
    %1038 = vmatpush1.msra.mxu0 0.0
    %1039 = vmatprep.subr.mxu0 0.0
    %1040 = vmatpush1.msra.mxu0 0.0
    %1041 = vmatprep.subr.mxu0 0.0
    %1042 = vmatpush1.msra.mxu0 0.0
    %1043 = vmatprep.subr.mxu0 0.0
    %1044 = vmatpush1.msra.mxu0 0.0
    %1045 = vmatprep.subr.mxu0 0.0
    %1046 = vmatpush1.msra.mxu0 0.0
    %1047 = vmatprep.subr.mxu0 0.0
    %1048 = vmatpush1.msra.mxu0 0.0
    %1049 = vmatprep.subr.mxu0 0.0
    %1050 = vmatpush1.msra.mxu0 0.0
    %1051 = vmatprep.subr.mxu0 0.0
    %1052 = vmatpush1.msra.mxu0 0.0
    %1053 = vmatprep.subr.mxu0 0.0
    %1054 = vmatpush1.msra.mxu0 0.0
    %1055 = vmatprep.subr.mxu0 0.0
    %1056 = vmatpush1.msra.mxu0 0.0
    %1057 = vmatprep.mubr.f32.mxu0 0.0
    %1058 = vmatmul.mubr.f32.gmra.mrb[0].mxu0 %v991
    %v1059 = vpop.f32.mrb[0].mxu0
    %v1060 = vadd.f32 0.0, %v1059
    %v1061 = vpop.f32.mrb[0].mxu0
    %1062 = vdwg.mxu0
    %v1063 = vadd.f32 %v990, %v1060
    %v1064 = vxor.u32 %v1063, 2147483648
    %v1065 = vmul.f32 %v1064, 1.442695
    %v1066 = vpow.pop %v1065
    %v1067 = vadd.f32 %v1066, 1.0
    %v1068 = vrcp.pop %v1067
    %v1069 = vmul.f32 1.0, %v1068
    %v1070 = vtanh.pop %v1063
    %v1071 = vmul.f32 %v1069, %v976
    %1073 = vrot.lane.b32.xlu0 %v1070, 32
    %v1074 = vpop.permute.xlu0 %1073
    %v1076 = vmul.f32 %v1069, %v1074
    %1078 = vrot.lane.b32.xlu0 %v1076, 32
    %v1079 = vpop.permute.xlu0 %1078
    %v1081 = vadd.f32 %v1071, %v1079
    %v1082 = vtanh.pop %v1081
    %1084 = vrot.lane.b32.xlu0 %v1082, 32
    %v1085 = vpop.permute.xlu0 %1084
    %v1087 = vmul.f32 %v1069, %v1085
    %1089 = vrot.lane.b32.xlu0 %v1087, 64
    %v1090 = vpop.permute.xlu0 %1089
    %s1092 = scalar_lea.vmem [#allocation5], 56
    %1093 = vst.msk [vmem:[%s1092] sm:$0xff] %vm251, %v1090
    %1094 = vst.msk [vmem:[#allocation2] sm:$0xff] %vm251, %v1090
    %1096 = vrot.lane.b32.xlu0 %v1081, 96
    %v1097 = vpop.permute.xlu0 %1096
    %1099 = vst.msk [vmem:[#allocation3] sm:$0xff] %vm251, %v1097
    %v1100 = vld [vmem:[#allocation5] sm:$0xff]
    %v1101 = vld [vmem:[#allocation5 + $0x8] sm:$0xff]
    %v1102 = vld [vmem:[#allocation5 + $0x10] sm:$0xff]
    %v1103 = vld [vmem:[#allocation5 + $0x18] sm:$0xff]
    %v1104 = vld [vmem:[#allocation5 + $0x20] sm:$0xff]
    %v1105 = vld [vmem:[#allocation5 + $0x28] sm:$0xff]
    %v1106 = vld [vmem:[#allocation5 + $0x30] sm:$0xff]
    %v1107 = vld [vmem:[#allocation5 + $0x38] sm:$0xff]
    %v1108 = vld [vmem:[%s6] sm:$0xff]
    %v1109 = vld [vmem:[%s6 + $0x8] sm:$0xff]
    %v1110 = vld [vmem:[%s6 + $0x10] sm:$0xff]
    %v1111 = vld [vmem:[%s6 + $0x18] sm:$0xff]
    %v1112 = vld [vmem:[%s8] sm:$0x1]
    %v1114 = vlaneseq
    %v1115 = vshrl.u32 %v1114, 7
    %v1116 = vsub.s32 0, %v1115
    %v1117 = vrot.slane %v1112, %v1116
    %v1120 = vsel %vm251, %v1100, 0
    %v1123 = vsel %vm251, %v1101, 0
    %v1126 = vsel %vm251, %v1102, 0
    %v1129 = vsel %vm251, %v1103, 0
    %v1132 = vsel %vm251, %v1104, 0
    %v1135 = vsel %vm251, %v1105, 0
    %v1138 = vsel %vm251, %v1106, 0
    %v1141 = vsel %vm251, %v1107, 0
    %1143 = vmatprep.subr.mxu0 0.0
    %1144 = vmatpush1.msra.mxu0 %v1108
    %1145 = vmatprep.subr.mxu0 0.0
    %1146 = vmatpush1.msra.mxu0 %v1109
    %1147 = vmatprep.subr.mxu0 0.0
    %1148 = vmatpush1.msra.mxu0 %v1110
    %1149 = vmatprep.subr.mxu0 0.0
    %1150 = vmatpush1.msra.mxu0 %v1111
    %1151 = vmatprep.subr.mxu0 0.0
    %1152 = vmatpush1.msra.mxu0 0.0
    %1153 = vmatprep.subr.mxu0 0.0
    %1154 = vmatpush1.msra.mxu0 0.0
    %1155 = vmatprep.subr.mxu0 0.0
    %1156 = vmatpush1.msra.mxu0 0.0
    %1157 = vmatprep.subr.mxu0 0.0
    %1158 = vmatpush1.msra.mxu0 0.0
    %1159 = vmatprep.subr.mxu0 0.0
    %1160 = vmatpush1.msra.mxu0 0.0
    %1161 = vmatprep.subr.mxu0 0.0
    %1162 = vmatpush1.msra.mxu0 0.0
    %1163 = vmatprep.subr.mxu0 0.0
    %1164 = vmatpush1.msra.mxu0 0.0
    %1165 = vmatprep.subr.mxu0 0.0
    %1166 = vmatpush1.msra.mxu0 0.0
    %1167 = vmatprep.subr.mxu0 0.0
    %1168 = vmatpush1.msra.mxu0 0.0
    %1169 = vmatprep.subr.mxu0 0.0
    %1170 = vmatpush1.msra.mxu0 0.0
    %1171 = vmatprep.subr.mxu0 0.0
    %1172 = vmatpush1.msra.mxu0 0.0
    %1173 = vmatprep.subr.mxu0 0.0
    %1174 = vmatpush1.msra.mxu0 0.0
    %1175 = vmatprep.subr.mxu0 0.0
    %1176 = vmatpush1.msra.mxu0 0.0
    %1177 = vmatprep.subr.mxu0 0.0
    %1178 = vmatpush1.msra.mxu0 0.0
    %1179 = vmatprep.subr.mxu0 0.0
    %1180 = vmatpush1.msra.mxu0 0.0
    %1181 = vmatprep.subr.mxu0 0.0
    %1182 = vmatpush1.msra.mxu0 0.0
    %1183 = vmatprep.subr.mxu0 0.0
    %1184 = vmatpush1.msra.mxu0 0.0
    %1185 = vmatprep.subr.mxu0 0.0
    %1186 = vmatpush1.msra.mxu0 0.0
    %1187 = vmatprep.subr.mxu0 0.0
    %1188 = vmatpush1.msra.mxu0 0.0
    %1189 = vmatprep.subr.mxu0 0.0
    %1190 = vmatpush1.msra.mxu0 0.0
    %1191 = vmatprep.subr.mxu0 0.0
    %1192 = vmatpush1.msra.mxu0 0.0
    %1193 = vmatprep.subr.mxu0 0.0
    %1194 = vmatpush1.msra.mxu0 0.0
    %1195 = vmatprep.subr.mxu0 0.0
    %1196 = vmatpush1.msra.mxu0 0.0
    %1197 = vmatprep.subr.mxu0 0.0
    %1198 = vmatpush1.msra.mxu0 0.0
    %1199 = vmatprep.subr.mxu0 0.0
    %1200 = vmatpush1.msra.mxu0 0.0
    %1201 = vmatprep.subr.mxu0 0.0
    %1202 = vmatpush1.msra.mxu0 0.0
    %1203 = vmatprep.subr.mxu0 0.0
    %1204 = vmatpush1.msra.mxu0 0.0
    %1205 = vmatprep.subr.mxu0 0.0
    %1206 = vmatpush1.msra.mxu0 0.0
    %1207 = vmatprep.mubr.f32.mxu0 0.0
    %1208 = vmatmul.mubr.f32.gmra.mrb[0].mxu0 %v1120
    %v1209 = vpop.f32.mrb[0].mxu0
    %v1210 = vadd.f32 %v1117, %v1209
    %v1211 = vpop.f32.mrb[0].mxu0
    %1212 = vmatprep.mubr.f32.mxu0 0.0
    %1213 = vmatmul.mubr.f32.gmra.mrb[0].mxu0 %v1123
    %v1214 = vpop.f32.mrb[0].mxu0
    %v1215 = vadd.f32 %v1117, %v1214
    %v1216 = vpop.f32.mrb[0].mxu0
    %1217 = vmatprep.mubr.f32.mxu0 0.0
    %1218 = vmatmul.mubr.f32.gmra.mrb[0].mxu0 %v1126
    %v1219 = vpop.f32.mrb[0].mxu0
    %v1220 = vadd.f32 %v1117, %v1219
    %v1221 = vpop.f32.mrb[0].mxu0
    %1222 = vmatprep.mubr.f32.mxu0 0.0
    %1223 = vmatmul.mubr.f32.gmra.mrb[0].mxu0 %v1129
    %v1224 = vpop.f32.mrb[0].mxu0
    %v1225 = vadd.f32 %v1117, %v1224
    %v1226 = vpop.f32.mrb[0].mxu0
    %1227 = vmatprep.mubr.f32.mxu0 0.0
    %1228 = vmatmul.mubr.f32.gmra.mrb[0].mxu0 %v1132
    %v1229 = vpop.f32.mrb[0].mxu0
    %v1230 = vadd.f32 %v1117, %v1229
    %v1231 = vpop.f32.mrb[0].mxu0
    %1232 = vmatprep.mubr.f32.mxu0 0.0
    %1233 = vmatmul.mubr.f32.gmra.mrb[0].mxu0 %v1135
    %v1234 = vpop.f32.mrb[0].mxu0
    %v1235 = vadd.f32 %v1117, %v1234
    %v1236 = vpop.f32.mrb[0].mxu0
    %1237 = vmatprep.mubr.f32.mxu0 0.0
    %1238 = vmatmul.mubr.f32.gmra.mrb[0].mxu0 %v1138
    %v1239 = vpop.f32.mrb[0].mxu0
    %v1240 = vadd.f32 %v1117, %v1239
    %v1241 = vpop.f32.mrb[0].mxu0
    %1242 = vmatprep.mubr.f32.mxu0 0.0
    %1243 = vmatmul.mubr.f32.gmra.mrb[0].mxu0 %v1141
    %v1244 = vpop.f32.mrb[0].mxu0
    %v1245 = vadd.f32 %v1117, %v1244
    %v1246 = vpop.f32.mrb[0].mxu0
    %1247 = vdwg.mxu0
    %1248 = vst [vmem:[#allocation4] sm:$0xff] %v1210
    %1249 = vst [vmem:[#allocation4 + $0x8] sm:$0xff] %v1215
    %1250 = vst [vmem:[#allocation4 + $0x10] sm:$0xff] %v1220
    %1251 = vst [vmem:[#allocation4 + $0x18] sm:$0xff] %v1225
    %1252 = vst [vmem:[#allocation4 + $0x20] sm:$0xff] %v1230
    %1253 = vst [vmem:[#allocation4 + $0x28] sm:$0xff] %v1235
    %1254 = vst [vmem:[#allocation4 + $0x30] sm:$0xff] %v1240
    %1255 = vst [vmem:[#allocation4 + $0x38] sm:$0xff] %v1245
    %v1256 = vld [vmem:[%s7] sm:$0xff]
    %v1257 = vld [vmem:[%s7 + $0x8] sm:$0xff]
    %v1258 = vld [vmem:[%s7 + $0x10] sm:$0xff]
    %v1259 = vld [vmem:[%s7 + $0x18] sm:$0xff]
    %s1260 = scalar_lea.vmem [#allocation2], 8
    %v1261 = vld [vmem:[%s1260] sm:$0xff]
    %s1262 = scalar_lea.vmem [#allocation3], 8
    %v1263 = vld [vmem:[%s1262] sm:$0xff]
    %v1264 = vld [vmem:[#allocation4] sm:$0xff]
    %v1266 = vsel %vm251, %v1261, 0
    %1268 = vmatprep.subr.mxu0 0.0
    %1269 = vmatpush1.msra.mxu0 %v1256
    %1270 = vmatprep.subr.mxu0 0.0
    %1271 = vmatpush1.msra.mxu0 %v1257
    %1272 = vmatprep.subr.mxu0 0.0
    %1273 = vmatpush1.msra.mxu0 %v1258
    %1274 = vmatprep.subr.mxu0 0.0
    %1275 = vmatpush1.msra.mxu0 %v1259
    %1276 = vmatprep.subr.mxu0 0.0
    %1277 = vmatpush1.msra.mxu0 0.0
    %1278 = vmatprep.subr.mxu0 0.0
    %1279 = vmatpush1.msra.mxu0 0.0
    %1280 = vmatprep.subr.mxu0 0.0
    %1281 = vmatpush1.msra.mxu0 0.0
    %1282 = vmatprep.subr.mxu0 0.0
    %1283 = vmatpush1.msra.mxu0 0.0
    %1284 = vmatprep.subr.mxu0 0.0
    %1285 = vmatpush1.msra.mxu0 0.0
    %1286 = vmatprep.subr.mxu0 0.0
    %1287 = vmatpush1.msra.mxu0 0.0
    %1288 = vmatprep.subr.mxu0 0.0
    %1289 = vmatpush1.msra.mxu0 0.0
    %1290 = vmatprep.subr.mxu0 0.0
    %1291 = vmatpush1.msra.mxu0 0.0
    %1292 = vmatprep.subr.mxu0 0.0
    %1293 = vmatpush1.msra.mxu0 0.0
    %1294 = vmatprep.subr.mxu0 0.0
    %1295 = vmatpush1.msra.mxu0 0.0
    %1296 = vmatprep.subr.mxu0 0.0
    %1297 = vmatpush1.msra.mxu0 0.0
    %1298 = vmatprep.subr.mxu0 0.0
    %1299 = vmatpush1.msra.mxu0 0.0
    %1300 = vmatprep.subr.mxu0 0.0
    %1301 = vmatpush1.msra.mxu0 0.0
    %1302 = vmatprep.subr.mxu0 0.0
    %1303 = vmatpush1.msra.mxu0 0.0
    %1304 = vmatprep.subr.mxu0 0.0
    %1305 = vmatpush1.msra.mxu0 0.0
    %1306 = vmatprep.subr.mxu0 0.0
    %1307 = vmatpush1.msra.mxu0 0.0
    %1308 = vmatprep.subr.mxu0 0.0
    %1309 = vmatpush1.msra.mxu0 0.0
    %1310 = vmatprep.subr.mxu0 0.0
    %1311 = vmatpush1.msra.mxu0 0.0
    %1312 = vmatprep.subr.mxu0 0.0
    %1313 = vmatpush1.msra.mxu0 0.0
    %1314 = vmatprep.subr.mxu0 0.0
    %1315 = vmatpush1.msra.mxu0 0.0
    %1316 = vmatprep.subr.mxu0 0.0
    %1317 = vmatpush1.msra.mxu0 0.0
    %1318 = vmatprep.subr.mxu0 0.0
    %1319 = vmatpush1.msra.mxu0 0.0
    %1320 = vmatprep.subr.mxu0 0.0
    %1321 = vmatpush1.msra.mxu0 0.0
    %1322 = vmatprep.subr.mxu0 0.0
    %1323 = vmatpush1.msra.mxu0 0.0
    %1324 = vmatprep.subr.mxu0 0.0
    %1325 = vmatpush1.msra.mxu0 0.0
    %1326 = vmatprep.subr.mxu0 0.0
    %1327 = vmatpush1.msra.mxu0 0.0
    %1328 = vmatprep.subr.mxu0 0.0
    %1329 = vmatpush1.msra.mxu0 0.0
    %1330 = vmatprep.subr.mxu0 0.0
    %1331 = vmatpush1.msra.mxu0 0.0
    %1332 = vmatprep.mubr.f32.mxu0 0.0
    %1333 = vmatmul.mubr.f32.gmra.mrb[0].mxu0 %v1266
    %v1334 = vpop.f32.mrb[0].mxu0
    %v1335 = vadd.f32 0.0, %v1334
    %v1336 = vpop.f32.mrb[0].mxu0
    %1337 = vdwg.mxu0
    %v1338 = vadd.f32 %v1264, %v1335
    %v1339 = vxor.u32 %v1338, 2147483648
    %v1340 = vmul.f32 %v1339, 1.442695
    %v1341 = vpow.pop %v1340
    %v1342 = vadd.f32 %v1341, 1.0
    %v1343 = vrcp.pop %v1342
    %v1344 = vmul.f32 1.0, %v1343
    %v1345 = vtanh.pop %v1338
    %1347 = vrot.lane.b32.xlu0 %v1263, 32
    %v1348 = vpop.permute.xlu0 %1347
    %v1350 = vmul.f32 %v1344, %v1348
    %1352 = vrot.lane.b32.xlu0 %v1345, 32
    %v1353 = vpop.permute.xlu0 %1352
    %v1355 = vmul.f32 %v1344, %v1353
    %1357 = vrot.lane.b32.xlu0 %v1355, 32
    %v1358 = vpop.permute.xlu0 %1357
    %v1360 = vadd.f32 %v1350, %v1358
    %v1361 = vtanh.pop %v1360
    %1363 = vrot.lane.b32.xlu0 %v1361, 32
    %v1364 = vpop.permute.xlu0 %1363
    %v1366 = vmul.f32 %v1344, %v1364
    %1368 = vrot.lane.b32.xlu0 %v1366, 64
    %v1369 = vpop.permute.xlu0 %1368
    %1371 = vst.msk [vmem:[#allocation5] sm:$0xff] %vm251, %v1369
    %v1372 = vld [vmem:[%s359] sm:$0xff]
    %v1373 = vsel %vm251, %v1369, 0
    %1375 = vmatprep.subr.mxu0 0.0
    %1376 = vmatpush1.msra.mxu0 %v1256
    %1377 = vmatprep.subr.mxu0 0.0
    %1378 = vmatpush1.msra.mxu0 %v1257
    %1379 = vmatprep.subr.mxu0 0.0
    %1380 = vmatpush1.msra.mxu0 %v1258
    %1381 = vmatprep.subr.mxu0 0.0
    %1382 = vmatpush1.msra.mxu0 %v1259
    %1383 = vmatprep.subr.mxu0 0.0
    %1384 = vmatpush1.msra.mxu0 0.0
    %1385 = vmatprep.subr.mxu0 0.0
    %1386 = vmatpush1.msra.mxu0 0.0
    %1387 = vmatprep.subr.mxu0 0.0
    %1388 = vmatpush1.msra.mxu0 0.0
    %1389 = vmatprep.subr.mxu0 0.0
    %1390 = vmatpush1.msra.mxu0 0.0
    %1391 = vmatprep.subr.mxu0 0.0
    %1392 = vmatpush1.msra.mxu0 0.0
    %1393 = vmatprep.subr.mxu0 0.0
    %1394 = vmatpush1.msra.mxu0 0.0
    %1395 = vmatprep.subr.mxu0 0.0
    %1396 = vmatpush1.msra.mxu0 0.0
    %1397 = vmatprep.subr.mxu0 0.0
    %1398 = vmatpush1.msra.mxu0 0.0
    %1399 = vmatprep.subr.mxu0 0.0
    %1400 = vmatpush1.msra.mxu0 0.0
    %1401 = vmatprep.subr.mxu0 0.0
    %1402 = vmatpush1.msra.mxu0 0.0
    %1403 = vmatprep.subr.mxu0 0.0
    %1404 = vmatpush1.msra.mxu0 0.0
    %1405 = vmatprep.subr.mxu0 0.0
    %1406 = vmatpush1.msra.mxu0 0.0
    %1407 = vmatprep.subr.mxu0 0.0
    %1408 = vmatpush1.msra.mxu0 0.0
    %1409 = vmatprep.subr.mxu0 0.0
    %1410 = vmatpush1.msra.mxu0 0.0
    %1411 = vmatprep.subr.mxu0 0.0
    %1412 = vmatpush1.msra.mxu0 0.0
    %1413 = vmatprep.subr.mxu0 0.0
    %1414 = vmatpush1.msra.mxu0 0.0
    %1415 = vmatprep.subr.mxu0 0.0
    %1416 = vmatpush1.msra.mxu0 0.0
    %1417 = vmatprep.subr.mxu0 0.0
    %1418 = vmatpush1.msra.mxu0 0.0
    %1419 = vmatprep.subr.mxu0 0.0
    %1420 = vmatpush1.msra.mxu0 0.0
    %1421 = vmatprep.subr.mxu0 0.0
    %1422 = vmatpush1.msra.mxu0 0.0
    %1423 = vmatprep.subr.mxu0 0.0
    %1424 = vmatpush1.msra.mxu0 0.0
    %1425 = vmatprep.subr.mxu0 0.0
    %1426 = vmatpush1.msra.mxu0 0.0
    %1427 = vmatprep.subr.mxu0 0.0
    %1428 = vmatpush1.msra.mxu0 0.0
    %1429 = vmatprep.subr.mxu0 0.0
    %1430 = vmatpush1.msra.mxu0 0.0
    %1431 = vmatprep.subr.mxu0 0.0
    %1432 = vmatpush1.msra.mxu0 0.0
    %1433 = vmatprep.subr.mxu0 0.0
    %1434 = vmatpush1.msra.mxu0 0.0
    %1435 = vmatprep.subr.mxu0 0.0
    %1436 = vmatpush1.msra.mxu0 0.0
    %1437 = vmatprep.subr.mxu0 0.0
    %1438 = vmatpush1.msra.mxu0 0.0
    %1439 = vmatprep.mubr.f32.mxu0 0.0
    %1440 = vmatmul.mubr.f32.gmra.mrb[0].mxu0 %v1373
    %v1441 = vpop.f32.mrb[0].mxu0
    %v1442 = vadd.f32 0.0, %v1441
    %v1443 = vpop.f32.mrb[0].mxu0
    %1444 = vdwg.mxu0
    %v1445 = vadd.f32 %v1372, %v1442
    %v1446 = vxor.u32 %v1445, 2147483648
    %v1447 = vmul.f32 %v1446, 1.442695
    %v1448 = vpow.pop %v1447
    %v1449 = vadd.f32 %v1448, 1.0
    %v1450 = vrcp.pop %v1449
    %v1451 = vmul.f32 1.0, %v1450
    %v1452 = vtanh.pop %v1445
    %v1453 = vmul.f32 %v1451, %v1360
    %1455 = vrot.lane.b32.xlu0 %v1452, 32
    %v1456 = vpop.permute.xlu0 %1455
    %v1458 = vmul.f32 %v1451, %v1456
    %1460 = vrot.lane.b32.xlu0 %v1458, 32
    %v1461 = vpop.permute.xlu0 %1460
    %v1463 = vadd.f32 %v1453, %v1461
    %v1464 = vtanh.pop %v1463
    %1466 = vrot.lane.b32.xlu0 %v1464, 32
    %v1467 = vpop.permute.xlu0 %1466
    %v1469 = vmul.f32 %v1451, %v1467
    %1471 = vrot.lane.b32.xlu0 %v1469, 64
    %v1472 = vpop.permute.xlu0 %1471
    %1474 = vst.msk [vmem:[%s462] sm:$0xff] %vm251, %v1472
    %v1475 = vld [vmem:[%s464] sm:$0xff]
    %v1476 = vsel %vm251, %v1472, 0
    %1478 = vmatprep.subr.mxu0 0.0
    %1479 = vmatpush1.msra.mxu0 %v1256
    %1480 = vmatprep.subr.mxu0 0.0
    %1481 = vmatpush1.msra.mxu0 %v1257
    %1482 = vmatprep.subr.mxu0 0.0
    %1483 = vmatpush1.msra.mxu0 %v1258
    %1484 = vmatprep.subr.mxu0 0.0
    %1485 = vmatpush1.msra.mxu0 %v1259
    %1486 = vmatprep.subr.mxu0 0.0
    %1487 = vmatpush1.msra.mxu0 0.0
    %1488 = vmatprep.subr.mxu0 0.0
    %1489 = vmatpush1.msra.mxu0 0.0
    %1490 = vmatprep.subr.mxu0 0.0
    %1491 = vmatpush1.msra.mxu0 0.0
    %1492 = vmatprep.subr.mxu0 0.0
    %1493 = vmatpush1.msra.mxu0 0.0
    %1494 = vmatprep.subr.mxu0 0.0
    %1495 = vmatpush1.msra.mxu0 0.0
    %1496 = vmatprep.subr.mxu0 0.0
    %1497 = vmatpush1.msra.mxu0 0.0
    %1498 = vmatprep.subr.mxu0 0.0
    %1499 = vmatpush1.msra.mxu0 0.0
    %1500 = vmatprep.subr.mxu0 0.0
    %1501 = vmatpush1.msra.mxu0 0.0
    %1502 = vmatprep.subr.mxu0 0.0
    %1503 = vmatpush1.msra.mxu0 0.0
    %1504 = vmatprep.subr.mxu0 0.0
    %1505 = vmatpush1.msra.mxu0 0.0
    %1506 = vmatprep.subr.mxu0 0.0
    %1507 = vmatpush1.msra.mxu0 0.0
    %1508 = vmatprep.subr.mxu0 0.0
    %1509 = vmatpush1.msra.mxu0 0.0
    %1510 = vmatprep.subr.mxu0 0.0
    %1511 = vmatpush1.msra.mxu0 0.0
    %1512 = vmatprep.subr.mxu0 0.0
    %1513 = vmatpush1.msra.mxu0 0.0
    %1514 = vmatprep.subr.mxu0 0.0
    %1515 = vmatpush1.msra.mxu0 0.0
    %1516 = vmatprep.subr.mxu0 0.0
    %1517 = vmatpush1.msra.mxu0 0.0
    %1518 = vmatprep.subr.mxu0 0.0
    %1519 = vmatpush1.msra.mxu0 0.0
    %1520 = vmatprep.subr.mxu0 0.0
    %1521 = vmatpush1.msra.mxu0 0.0
    %1522 = vmatprep.subr.mxu0 0.0
    %1523 = vmatpush1.msra.mxu0 0.0
    %1524 = vmatprep.subr.mxu0 0.0
    %1525 = vmatpush1.msra.mxu0 0.0
    %1526 = vmatprep.subr.mxu0 0.0
    %1527 = vmatpush1.msra.mxu0 0.0
    %1528 = vmatprep.subr.mxu0 0.0
    %1529 = vmatpush1.msra.mxu0 0.0
    %1530 = vmatprep.subr.mxu0 0.0
    %1531 = vmatpush1.msra.mxu0 0.0
    %1532 = vmatprep.subr.mxu0 0.0
    %1533 = vmatpush1.msra.mxu0 0.0
    %1534 = vmatprep.subr.mxu0 0.0
    %1535 = vmatpush1.msra.mxu0 0.0
    %1536 = vmatprep.subr.mxu0 0.0
    %1537 = vmatpush1.msra.mxu0 0.0
    %1538 = vmatprep.subr.mxu0 0.0
    %1539 = vmatpush1.msra.mxu0 0.0
    %1540 = vmatprep.subr.mxu0 0.0
    %1541 = vmatpush1.msra.mxu0 0.0
    %1542 = vmatprep.mubr.f32.mxu0 0.0
    %1543 = vmatmul.mubr.f32.gmra.mrb[0].mxu0 %v1476
    %v1544 = vpop.f32.mrb[0].mxu0
    %v1545 = vadd.f32 0.0, %v1544
    %v1546 = vpop.f32.mrb[0].mxu0
    %1547 = vdwg.mxu0
    %v1548 = vadd.f32 %v1475, %v1545
    %v1549 = vxor.u32 %v1548, 2147483648
    %v1550 = vmul.f32 %v1549, 1.442695
    %v1551 = vpow.pop %v1550
    %v1552 = vadd.f32 %v1551, 1.0
    %v1553 = vrcp.pop %v1552
    %v1554 = vmul.f32 1.0, %v1553
    %v1555 = vtanh.pop %v1548
    %v1556 = vmul.f32 %v1554, %v1463
    %1558 = vrot.lane.b32.xlu0 %v1555, 32
    %v1559 = vpop.permute.xlu0 %1558
    %v1561 = vmul.f32 %v1554, %v1559
    %1563 = vrot.lane.b32.xlu0 %v1561, 32
    %v1564 = vpop.permute.xlu0 %1563
    %v1566 = vadd.f32 %v1556, %v1564
    %v1567 = vtanh.pop %v1566
    %1569 = vrot.lane.b32.xlu0 %v1567, 32
    %v1570 = vpop.permute.xlu0 %1569
    %v1572 = vmul.f32 %v1554, %v1570
    %1574 = vrot.lane.b32.xlu0 %v1572, 64
    %v1575 = vpop.permute.xlu0 %1574
    %1577 = vst.msk [vmem:[%s567] sm:$0xff] %vm251, %v1575
    %v1578 = vld [vmem:[%s569] sm:$0xff]
    %v1579 = vsel %vm251, %v1575, 0
    %1581 = vmatprep.subr.mxu0 0.0
    %1582 = vmatpush1.msra.mxu0 %v1256
    %1583 = vmatprep.subr.mxu0 0.0
    %1584 = vmatpush1.msra.mxu0 %v1257
    %1585 = vmatprep.subr.mxu0 0.0
    %1586 = vmatpush1.msra.mxu0 %v1258
    %1587 = vmatprep.subr.mxu0 0.0
    %1588 = vmatpush1.msra.mxu0 %v1259
    %1589 = vmatprep.subr.mxu0 0.0
    %1590 = vmatpush1.msra.mxu0 0.0
    %1591 = vmatprep.subr.mxu0 0.0
    %1592 = vmatpush1.msra.mxu0 0.0
    %1593 = vmatprep.subr.mxu0 0.0
    %1594 = vmatpush1.msra.mxu0 0.0
    %1595 = vmatprep.subr.mxu0 0.0
    %1596 = vmatpush1.msra.mxu0 0.0
    %1597 = vmatprep.subr.mxu0 0.0
    %1598 = vmatpush1.msra.mxu0 0.0
    %1599 = vmatprep.subr.mxu0 0.0
    %1600 = vmatpush1.msra.mxu0 0.0
    %1601 = vmatprep.subr.mxu0 0.0
    %1602 = vmatpush1.msra.mxu0 0.0
    %1603 = vmatprep.subr.mxu0 0.0
    %1604 = vmatpush1.msra.mxu0 0.0
    %1605 = vmatprep.subr.mxu0 0.0
    %1606 = vmatpush1.msra.mxu0 0.0
    %1607 = vmatprep.subr.mxu0 0.0
    %1608 = vmatpush1.msra.mxu0 0.0
    %1609 = vmatprep.subr.mxu0 0.0
    %1610 = vmatpush1.msra.mxu0 0.0
    %1611 = vmatprep.subr.mxu0 0.0
    %1612 = vmatpush1.msra.mxu0 0.0
    %1613 = vmatprep.subr.mxu0 0.0
    %1614 = vmatpush1.msra.mxu0 0.0
    %1615 = vmatprep.subr.mxu0 0.0
    %1616 = vmatpush1.msra.mxu0 0.0
    %1617 = vmatprep.subr.mxu0 0.0
    %1618 = vmatpush1.msra.mxu0 0.0
    %1619 = vmatprep.subr.mxu0 0.0
    %1620 = vmatpush1.msra.mxu0 0.0
    %1621 = vmatprep.subr.mxu0 0.0
    %1622 = vmatpush1.msra.mxu0 0.0
    %1623 = vmatprep.subr.mxu0 0.0
    %1624 = vmatpush1.msra.mxu0 0.0
    %1625 = vmatprep.subr.mxu0 0.0
    %1626 = vmatpush1.msra.mxu0 0.0
    %1627 = vmatprep.subr.mxu0 0.0
    %1628 = vmatpush1.msra.mxu0 0.0
    %1629 = vmatprep.subr.mxu0 0.0
    %1630 = vmatpush1.msra.mxu0 0.0
    %1631 = vmatprep.subr.mxu0 0.0
    %1632 = vmatpush1.msra.mxu0 0.0
    %1633 = vmatprep.subr.mxu0 0.0
    %1634 = vmatpush1.msra.mxu0 0.0
    %1635 = vmatprep.subr.mxu0 0.0
    %1636 = vmatpush1.msra.mxu0 0.0
    %1637 = vmatprep.subr.mxu0 0.0
    %1638 = vmatpush1.msra.mxu0 0.0
    %1639 = vmatprep.subr.mxu0 0.0
    %1640 = vmatpush1.msra.mxu0 0.0
    %1641 = vmatprep.subr.mxu0 0.0
    %1642 = vmatpush1.msra.mxu0 0.0
    %1643 = vmatprep.subr.mxu0 0.0
    %1644 = vmatpush1.msra.mxu0 0.0
    %1645 = vmatprep.mubr.f32.mxu0 0.0
    %1646 = vmatmul.mubr.f32.gmra.mrb[0].mxu0 %v1579
    %v1647 = vpop.f32.mrb[0].mxu0
    %v1648 = vadd.f32 0.0, %v1647
    %v1649 = vpop.f32.mrb[0].mxu0
    %1650 = vdwg.mxu0
    %v1651 = vadd.f32 %v1578, %v1648
    %v1652 = vxor.u32 %v1651, 2147483648
    %v1653 = vmul.f32 %v1652, 1.442695
    %v1654 = vpow.pop %v1653
    %v1655 = vadd.f32 %v1654, 1.0
    %v1656 = vrcp.pop %v1655
    %v1657 = vmul.f32 1.0, %v1656
    %v1658 = vtanh.pop %v1651
    %v1659 = vmul.f32 %v1657, %v1566
    %1661 = vrot.lane.b32.xlu0 %v1658, 32
    %v1662 = vpop.permute.xlu0 %1661
    %v1664 = vmul.f32 %v1657, %v1662
    %1666 = vrot.lane.b32.xlu0 %v1664, 32
    %v1667 = vpop.permute.xlu0 %1666
    %v1669 = vadd.f32 %v1659, %v1667
    %v1670 = vtanh.pop %v1669
    %1672 = vrot.lane.b32.xlu0 %v1670, 32
    %v1673 = vpop.permute.xlu0 %1672
    %v1675 = vmul.f32 %v1657, %v1673
    %1677 = vrot.lane.b32.xlu0 %v1675, 64
    %v1678 = vpop.permute.xlu0 %1677
    %1680 = vst.msk [vmem:[%s672] sm:$0xff] %vm251, %v1678
    %v1681 = vld [vmem:[%s674] sm:$0xff]
    %v1682 = vsel %vm251, %v1678, 0
    %1684 = vmatprep.subr.mxu0 0.0
    %1685 = vmatpush1.msra.mxu0 %v1256
    %1686 = vmatprep.subr.mxu0 0.0
    %1687 = vmatpush1.msra.mxu0 %v1257
    %1688 = vmatprep.subr.mxu0 0.0
    %1689 = vmatpush1.msra.mxu0 %v1258
    %1690 = vmatprep.subr.mxu0 0.0
    %1691 = vmatpush1.msra.mxu0 %v1259
    %1692 = vmatprep.subr.mxu0 0.0
    %1693 = vmatpush1.msra.mxu0 0.0
    %1694 = vmatprep.subr.mxu0 0.0
    %1695 = vmatpush1.msra.mxu0 0.0
    %1696 = vmatprep.subr.mxu0 0.0
    %1697 = vmatpush1.msra.mxu0 0.0
    %1698 = vmatprep.subr.mxu0 0.0
    %1699 = vmatpush1.msra.mxu0 0.0
    %1700 = vmatprep.subr.mxu0 0.0
    %1701 = vmatpush1.msra.mxu0 0.0
    %1702 = vmatprep.subr.mxu0 0.0
    %1703 = vmatpush1.msra.mxu0 0.0
    %1704 = vmatprep.subr.mxu0 0.0
    %1705 = vmatpush1.msra.mxu0 0.0
    %1706 = vmatprep.subr.mxu0 0.0
    %1707 = vmatpush1.msra.mxu0 0.0
    %1708 = vmatprep.subr.mxu0 0.0
    %1709 = vmatpush1.msra.mxu0 0.0
    %1710 = vmatprep.subr.mxu0 0.0
    %1711 = vmatpush1.msra.mxu0 0.0
    %1712 = vmatprep.subr.mxu0 0.0
    %1713 = vmatpush1.msra.mxu0 0.0
    %1714 = vmatprep.subr.mxu0 0.0
    %1715 = vmatpush1.msra.mxu0 0.0
    %1716 = vmatprep.subr.mxu0 0.0
    %1717 = vmatpush1.msra.mxu0 0.0
    %1718 = vmatprep.subr.mxu0 0.0
    %1719 = vmatpush1.msra.mxu0 0.0
    %1720 = vmatprep.subr.mxu0 0.0
    %1721 = vmatpush1.msra.mxu0 0.0
    %1722 = vmatprep.subr.mxu0 0.0
    %1723 = vmatpush1.msra.mxu0 0.0
    %1724 = vmatprep.subr.mxu0 0.0
    %1725 = vmatpush1.msra.mxu0 0.0
    %1726 = vmatprep.subr.mxu0 0.0
    %1727 = vmatpush1.msra.mxu0 0.0
    %1728 = vmatprep.subr.mxu0 0.0
    %1729 = vmatpush1.msra.mxu0 0.0
    %1730 = vmatprep.subr.mxu0 0.0
    %1731 = vmatpush1.msra.mxu0 0.0
    %1732 = vmatprep.subr.mxu0 0.0
    %1733 = vmatpush1.msra.mxu0 0.0
    %1734 = vmatprep.subr.mxu0 0.0
    %1735 = vmatpush1.msra.mxu0 0.0
    %1736 = vmatprep.subr.mxu0 0.0
    %1737 = vmatpush1.msra.mxu0 0.0
    %1738 = vmatprep.subr.mxu0 0.0
    %1739 = vmatpush1.msra.mxu0 0.0
    %1740 = vmatprep.subr.mxu0 0.0
    %1741 = vmatpush1.msra.mxu0 0.0
    %1742 = vmatprep.subr.mxu0 0.0
    %1743 = vmatpush1.msra.mxu0 0.0
    %1744 = vmatprep.subr.mxu0 0.0
    %1745 = vmatpush1.msra.mxu0 0.0
    %1746 = vmatprep.subr.mxu0 0.0
    %1747 = vmatpush1.msra.mxu0 0.0
    %1748 = vmatprep.mubr.f32.mxu0 0.0
    %1749 = vmatmul.mubr.f32.gmra.mrb[0].mxu0 %v1682
    %v1750 = vpop.f32.mrb[0].mxu0
    %v1751 = vadd.f32 0.0, %v1750
    %v1752 = vpop.f32.mrb[0].mxu0
    %1753 = vdwg.mxu0
    %v1754 = vadd.f32 %v1681, %v1751
    %v1755 = vxor.u32 %v1754, 2147483648
    %v1756 = vmul.f32 %v1755, 1.442695
    %v1757 = vpow.pop %v1756
    %v1758 = vadd.f32 %v1757, 1.0
    %v1759 = vrcp.pop %v1758
    %v1760 = vmul.f32 1.0, %v1759
    %v1761 = vtanh.pop %v1754
    %v1762 = vmul.f32 %v1760, %v1669
    %1764 = vrot.lane.b32.xlu0 %v1761, 32
    %v1765 = vpop.permute.xlu0 %1764
    %v1767 = vmul.f32 %v1760, %v1765
    %1769 = vrot.lane.b32.xlu0 %v1767, 32
    %v1770 = vpop.permute.xlu0 %1769
    %v1772 = vadd.f32 %v1762, %v1770
    %v1773 = vtanh.pop %v1772
    %1775 = vrot.lane.b32.xlu0 %v1773, 32
    %v1776 = vpop.permute.xlu0 %1775
    %v1778 = vmul.f32 %v1760, %v1776
    %1780 = vrot.lane.b32.xlu0 %v1778, 64
    %v1781 = vpop.permute.xlu0 %1780
    %1783 = vst.msk [vmem:[%s777] sm:$0xff] %vm251, %v1781
    %v1784 = vld [vmem:[%s779] sm:$0xff]
    %v1785 = vsel %vm251, %v1781, 0
    %1787 = vmatprep.subr.mxu0 0.0
    %1788 = vmatpush1.msra.mxu0 %v1256
    %1789 = vmatprep.subr.mxu0 0.0
    %1790 = vmatpush1.msra.mxu0 %v1257
    %1791 = vmatprep.subr.mxu0 0.0
    %1792 = vmatpush1.msra.mxu0 %v1258
    %1793 = vmatprep.subr.mxu0 0.0
    %1794 = vmatpush1.msra.mxu0 %v1259
    %1795 = vmatprep.subr.mxu0 0.0
    %1796 = vmatpush1.msra.mxu0 0.0
    %1797 = vmatprep.subr.mxu0 0.0
    %1798 = vmatpush1.msra.mxu0 0.0
    %1799 = vmatprep.subr.mxu0 0.0
    %1800 = vmatpush1.msra.mxu0 0.0
    %1801 = vmatprep.subr.mxu0 0.0
    %1802 = vmatpush1.msra.mxu0 0.0
    %1803 = vmatprep.subr.mxu0 0.0
    %1804 = vmatpush1.msra.mxu0 0.0
    %1805 = vmatprep.subr.mxu0 0.0
    %1806 = vmatpush1.msra.mxu0 0.0
    %1807 = vmatprep.subr.mxu0 0.0
    %1808 = vmatpush1.msra.mxu0 0.0
    %1809 = vmatprep.subr.mxu0 0.0
    %1810 = vmatpush1.msra.mxu0 0.0
    %1811 = vmatprep.subr.mxu0 0.0
    %1812 = vmatpush1.msra.mxu0 0.0
    %1813 = vmatprep.subr.mxu0 0.0
    %1814 = vmatpush1.msra.mxu0 0.0
    %1815 = vmatprep.subr.mxu0 0.0
    %1816 = vmatpush1.msra.mxu0 0.0
    %1817 = vmatprep.subr.mxu0 0.0
    %1818 = vmatpush1.msra.mxu0 0.0
    %1819 = vmatprep.subr.mxu0 0.0
    %1820 = vmatpush1.msra.mxu0 0.0
    %1821 = vmatprep.subr.mxu0 0.0
    %1822 = vmatpush1.msra.mxu0 0.0
    %1823 = vmatprep.subr.mxu0 0.0
    %1824 = vmatpush1.msra.mxu0 0.0
    %1825 = vmatprep.subr.mxu0 0.0
    %1826 = vmatpush1.msra.mxu0 0.0
    %1827 = vmatprep.subr.mxu0 0.0
    %1828 = vmatpush1.msra.mxu0 0.0
    %1829 = vmatprep.subr.mxu0 0.0
    %1830 = vmatpush1.msra.mxu0 0.0
    %1831 = vmatprep.subr.mxu0 0.0
    %1832 = vmatpush1.msra.mxu0 0.0
    %1833 = vmatprep.subr.mxu0 0.0
    %1834 = vmatpush1.msra.mxu0 0.0
    %1835 = vmatprep.subr.mxu0 0.0
    %1836 = vmatpush1.msra.mxu0 0.0
    %1837 = vmatprep.subr.mxu0 0.0
    %1838 = vmatpush1.msra.mxu0 0.0
    %1839 = vmatprep.subr.mxu0 0.0
    %1840 = vmatpush1.msra.mxu0 0.0
    %1841 = vmatprep.subr.mxu0 0.0
    %1842 = vmatpush1.msra.mxu0 0.0
    %1843 = vmatprep.subr.mxu0 0.0
    %1844 = vmatpush1.msra.mxu0 0.0
    %1845 = vmatprep.subr.mxu0 0.0
    %1846 = vmatpush1.msra.mxu0 0.0
    %1847 = vmatprep.subr.mxu0 0.0
    %1848 = vmatpush1.msra.mxu0 0.0
    %1849 = vmatprep.subr.mxu0 0.0
    %1850 = vmatpush1.msra.mxu0 0.0
    %1851 = vmatprep.mubr.f32.mxu0 0.0
    %1852 = vmatmul.mubr.f32.gmra.mrb[0].mxu0 %v1785
    %v1853 = vpop.f32.mrb[0].mxu0
    %v1854 = vadd.f32 0.0, %v1853
    %v1855 = vpop.f32.mrb[0].mxu0
    %1856 = vdwg.mxu0
    %v1857 = vadd.f32 %v1784, %v1854
    %v1858 = vxor.u32 %v1857, 2147483648
    %v1859 = vmul.f32 %v1858, 1.442695
    %v1860 = vpow.pop %v1859
    %v1861 = vadd.f32 %v1860, 1.0
    %v1862 = vrcp.pop %v1861
    %v1863 = vmul.f32 1.0, %v1862
    %v1864 = vtanh.pop %v1857
    %v1865 = vmul.f32 %v1863, %v1772
    %1867 = vrot.lane.b32.xlu0 %v1864, 32
    %v1868 = vpop.permute.xlu0 %1867
    %v1870 = vmul.f32 %v1863, %v1868
    %1872 = vrot.lane.b32.xlu0 %v1870, 32
    %v1873 = vpop.permute.xlu0 %1872
    %v1875 = vadd.f32 %v1865, %v1873
    %v1876 = vtanh.pop %v1875
    %1878 = vrot.lane.b32.xlu0 %v1876, 32
    %v1879 = vpop.permute.xlu0 %1878
    %v1881 = vmul.f32 %v1863, %v1879
    %1883 = vrot.lane.b32.xlu0 %v1881, 64
    %v1884 = vpop.permute.xlu0 %1883
    %1886 = vst.msk [vmem:[%s882] sm:$0xff] %vm251, %v1884
    %v1887 = vld [vmem:[%s884] sm:$0xff]
    %v1888 = vsel %vm251, %v1884, 0
    %1890 = vmatprep.subr.mxu0 0.0
    %1891 = vmatpush1.msra.mxu0 %v1256
    %1892 = vmatprep.subr.mxu0 0.0
    %1893 = vmatpush1.msra.mxu0 %v1257
    %1894 = vmatprep.subr.mxu0 0.0
    %1895 = vmatpush1.msra.mxu0 %v1258
    %1896 = vmatprep.subr.mxu0 0.0
    %1897 = vmatpush1.msra.mxu0 %v1259
    %1898 = vmatprep.subr.mxu0 0.0
    %1899 = vmatpush1.msra.mxu0 0.0
    %1900 = vmatprep.subr.mxu0 0.0
    %1901 = vmatpush1.msra.mxu0 0.0
    %1902 = vmatprep.subr.mxu0 0.0
    %1903 = vmatpush1.msra.mxu0 0.0
    %1904 = vmatprep.subr.mxu0 0.0
    %1905 = vmatpush1.msra.mxu0 0.0
    %1906 = vmatprep.subr.mxu0 0.0
    %1907 = vmatpush1.msra.mxu0 0.0
    %1908 = vmatprep.subr.mxu0 0.0
    %1909 = vmatpush1.msra.mxu0 0.0
    %1910 = vmatprep.subr.mxu0 0.0
    %1911 = vmatpush1.msra.mxu0 0.0
    %1912 = vmatprep.subr.mxu0 0.0
    %1913 = vmatpush1.msra.mxu0 0.0
    %1914 = vmatprep.subr.mxu0 0.0
    %1915 = vmatpush1.msra.mxu0 0.0
    %1916 = vmatprep.subr.mxu0 0.0
    %1917 = vmatpush1.msra.mxu0 0.0
    %1918 = vmatprep.subr.mxu0 0.0
    %1919 = vmatpush1.msra.mxu0 0.0
    %1920 = vmatprep.subr.mxu0 0.0
    %1921 = vmatpush1.msra.mxu0 0.0
    %1922 = vmatprep.subr.mxu0 0.0
    %1923 = vmatpush1.msra.mxu0 0.0
    %1924 = vmatprep.subr.mxu0 0.0
    %1925 = vmatpush1.msra.mxu0 0.0
    %1926 = vmatprep.subr.mxu0 0.0
    %1927 = vmatpush1.msra.mxu0 0.0
    %1928 = vmatprep.subr.mxu0 0.0
    %1929 = vmatpush1.msra.mxu0 0.0
    %1930 = vmatprep.subr.mxu0 0.0
    %1931 = vmatpush1.msra.mxu0 0.0
    %1932 = vmatprep.subr.mxu0 0.0
    %1933 = vmatpush1.msra.mxu0 0.0
    %1934 = vmatprep.subr.mxu0 0.0
    %1935 = vmatpush1.msra.mxu0 0.0
    %1936 = vmatprep.subr.mxu0 0.0
    %1937 = vmatpush1.msra.mxu0 0.0
    %1938 = vmatprep.subr.mxu0 0.0
    %1939 = vmatpush1.msra.mxu0 0.0
    %1940 = vmatprep.subr.mxu0 0.0
    %1941 = vmatpush1.msra.mxu0 0.0
    %1942 = vmatprep.subr.mxu0 0.0
    %1943 = vmatpush1.msra.mxu0 0.0
    %1944 = vmatprep.subr.mxu0 0.0
    %1945 = vmatpush1.msra.mxu0 0.0
    %1946 = vmatprep.subr.mxu0 0.0
    %1947 = vmatpush1.msra.mxu0 0.0
    %1948 = vmatprep.subr.mxu0 0.0
    %1949 = vmatpush1.msra.mxu0 0.0
    %1950 = vmatprep.subr.mxu0 0.0
    %1951 = vmatpush1.msra.mxu0 0.0
    %1952 = vmatprep.subr.mxu0 0.0
    %1953 = vmatpush1.msra.mxu0 0.0
    %1954 = vmatprep.mubr.f32.mxu0 0.0
    %1955 = vmatmul.mubr.f32.gmra.mrb[0].mxu0 %v1888
    %v1956 = vpop.f32.mrb[0].mxu0
    %v1957 = vadd.f32 0.0, %v1956
    %v1958 = vpop.f32.mrb[0].mxu0
    %1959 = vdwg.mxu0
    %v1960 = vadd.f32 %v1887, %v1957
    %v1961 = vxor.u32 %v1960, 2147483648
    %v1962 = vmul.f32 %v1961, 1.442695
    %v1963 = vpow.pop %v1962
    %v1964 = vadd.f32 %v1963, 1.0
    %v1965 = vrcp.pop %v1964
    %v1966 = vmul.f32 1.0, %v1965
    %v1967 = vtanh.pop %v1960
    %v1968 = vmul.f32 %v1966, %v1875
    %1970 = vrot.lane.b32.xlu0 %v1967, 32
    %v1971 = vpop.permute.xlu0 %1970
    %v1973 = vmul.f32 %v1966, %v1971
    %1975 = vrot.lane.b32.xlu0 %v1973, 32
    %v1976 = vpop.permute.xlu0 %1975
    %v1978 = vadd.f32 %v1968, %v1976
    %v1979 = vtanh.pop %v1978
    %1981 = vrot.lane.b32.xlu0 %v1979, 32
    %v1982 = vpop.permute.xlu0 %1981
    %v1984 = vmul.f32 %v1966, %v1982
    %1986 = vrot.lane.b32.xlu0 %v1984, 64
    %v1987 = vpop.permute.xlu0 %1986
    %1989 = vst.msk [vmem:[%s987] sm:$0xff] %vm251, %v1987
    %v1990 = vld [vmem:[%s989] sm:$0xff]
    %v1991 = vsel %vm251, %v1987, 0
    %1993 = vmatprep.subr.mxu0 0.0
    %1994 = vmatpush1.msra.mxu0 %v1256
    %1995 = vmatprep.subr.mxu0 0.0
    %1996 = vmatpush1.msra.mxu0 %v1257
    %1997 = vmatprep.subr.mxu0 0.0
    %1998 = vmatpush1.msra.mxu0 %v1258
    %1999 = vmatprep.subr.mxu0 0.0
    %2000 = vmatpush1.msra.mxu0 %v1259
    %2001 = vmatprep.subr.mxu0 0.0
    %2002 = vmatpush1.msra.mxu0 0.0
    %2003 = vmatprep.subr.mxu0 0.0
    %2004 = vmatpush1.msra.mxu0 0.0
    %2005 = vmatprep.subr.mxu0 0.0
    %2006 = vmatpush1.msra.mxu0 0.0
    %2007 = vmatprep.subr.mxu0 0.0
    %2008 = vmatpush1.msra.mxu0 0.0
    %2009 = vmatprep.subr.mxu0 0.0
    %2010 = vmatpush1.msra.mxu0 0.0
    %2011 = vmatprep.subr.mxu0 0.0
    %2012 = vmatpush1.msra.mxu0 0.0
    %2013 = vmatprep.subr.mxu0 0.0
    %2014 = vmatpush1.msra.mxu0 0.0
    %2015 = vmatprep.subr.mxu0 0.0
    %2016 = vmatpush1.msra.mxu0 0.0
    %2017 = vmatprep.subr.mxu0 0.0
    %2018 = vmatpush1.msra.mxu0 0.0
    %2019 = vmatprep.subr.mxu0 0.0
    %2020 = vmatpush1.msra.mxu0 0.0
    %2021 = vmatprep.subr.mxu0 0.0
    %2022 = vmatpush1.msra.mxu0 0.0
    %2023 = vmatprep.subr.mxu0 0.0
    %2024 = vmatpush1.msra.mxu0 0.0
    %2025 = vmatprep.subr.mxu0 0.0
    %2026 = vmatpush1.msra.mxu0 0.0
    %2027 = vmatprep.subr.mxu0 0.0
    %2028 = vmatpush1.msra.mxu0 0.0
    %2029 = vmatprep.subr.mxu0 0.0
    %2030 = vmatpush1.msra.mxu0 0.0
    %2031 = vmatprep.subr.mxu0 0.0
    %2032 = vmatpush1.msra.mxu0 0.0
    %2033 = vmatprep.subr.mxu0 0.0
    %2034 = vmatpush1.msra.mxu0 0.0
    %2035 = vmatprep.subr.mxu0 0.0
    %2036 = vmatpush1.msra.mxu0 0.0
    %2037 = vmatprep.subr.mxu0 0.0
    %2038 = vmatpush1.msra.mxu0 0.0
    %2039 = vmatprep.subr.mxu0 0.0
    %2040 = vmatpush1.msra.mxu0 0.0
    %2041 = vmatprep.subr.mxu0 0.0
    %2042 = vmatpush1.msra.mxu0 0.0
    %2043 = vmatprep.subr.mxu0 0.0
    %2044 = vmatpush1.msra.mxu0 0.0
    %2045 = vmatprep.subr.mxu0 0.0
    %2046 = vmatpush1.msra.mxu0 0.0
    %2047 = vmatprep.subr.mxu0 0.0
    %2048 = vmatpush1.msra.mxu0 0.0
    %2049 = vmatprep.subr.mxu0 0.0
    %2050 = vmatpush1.msra.mxu0 0.0
    %2051 = vmatprep.subr.mxu0 0.0
    %2052 = vmatpush1.msra.mxu0 0.0
    %2053 = vmatprep.subr.mxu0 0.0
    %2054 = vmatpush1.msra.mxu0 0.0
    %2055 = vmatprep.subr.mxu0 0.0
    %2056 = vmatpush1.msra.mxu0 0.0
    %2057 = vmatprep.mubr.f32.mxu0 0.0
    %2058 = vmatmul.mubr.f32.gmra.mrb[0].mxu0 %v1991
    %v2059 = vpop.f32.mrb[0].mxu0
    %v2060 = vadd.f32 0.0, %v2059
    %v2061 = vpop.f32.mrb[0].mxu0
    %2062 = vdwg.mxu0
    %v2063 = vadd.f32 %v1990, %v2060
    %v2064 = vxor.u32 %v2063, 2147483648
    %v2065 = vmul.f32 %v2064, 1.442695
    %v2066 = vpow.pop %v2065
    %v2067 = vadd.f32 %v2066, 1.0
    %v2068 = vrcp.pop %v2067
    %v2069 = vmul.f32 1.0, %v2068
    %v2070 = vtanh.pop %v2063
    %v2071 = vmul.f32 %v2069, %v1978
    %2073 = vrot.lane.b32.xlu0 %v2070, 32
    %v2074 = vpop.permute.xlu0 %2073
    %v2076 = vmul.f32 %v2069, %v2074
    %2078 = vrot.lane.b32.xlu0 %v2076, 32
    %v2079 = vpop.permute.xlu0 %2078
    %v2081 = vadd.f32 %v2071, %v2079
    %v2082 = vtanh.pop %v2081
    %2084 = vrot.lane.b32.xlu0 %v2082, 32
    %v2085 = vpop.permute.xlu0 %2084
    %v2087 = vmul.f32 %v2069, %v2085
    %2089 = vrot.lane.b32.xlu0 %v2087, 64
    %v2090 = vpop.permute.xlu0 %2089
    %2092 = vst.msk [vmem:[%s1092] sm:$0xff] %vm251, %v2090
    %2093 = vst.msk [vmem:[%s1260] sm:$0xff] %vm251, %v2090
    %2095 = vrot.lane.b32.xlu0 %v2081, 96
    %v2096 = vpop.permute.xlu0 %2095
    %2098 = vst.msk [vmem:[%s1262] sm:$0xff] %vm251, %v2096
    %v2099 = vld [vmem:[%s11] sm:$0x1]
    %v2100 = vld [vmem:[#allocation5] sm:$0xff]
    %v2101 = vld [vmem:[#allocation5 + $0x8] sm:$0xff]
    %v2102 = vld [vmem:[#allocation5 + $0x10] sm:$0xff]
    %v2103 = vld [vmem:[#allocation5 + $0x18] sm:$0xff]
    %v2104 = vld [vmem:[#allocation5 + $0x20] sm:$0xff]
    %v2105 = vld [vmem:[#allocation5 + $0x28] sm:$0xff]
    %v2106 = vld [vmem:[#allocation5 + $0x30] sm:$0xff]
    %v2107 = vld [vmem:[#allocation5 + $0x38] sm:$0xff]
    %v2109 = vlaneseq
    %v2110 = vshrl.u32 %v2109, 7
    %v2111 = vsub.s32 0, %v2110
    %v2112 = vrot.slane %v2099, %v2111
    %v2114 = vmul.f32 %v2100, %v2112
    %v2115 = vmul.f32 %v2101, %v2112
    %v2116 = vmul.f32 %v2102, %v2112
    %v2117 = vmul.f32 %v2103, %v2112
    %v2118 = vmul.f32 %v2104, %v2112
    %v2119 = vmul.f32 %v2105, %v2112
    %v2120 = vmul.f32 %v2106, %v2112
    %v2121 = vmul.f32 %v2107, %v2112
    %v2122 = vsel %vm251, %v2114, 0.0
    %2123 = vadd.xlane.f32.xlu0 %v2122
    %v2124 = vpop.xlane.xlu0 %2123
    %v2125 = vsel %vm251, %v2115, 0.0
    %2126 = vadd.xlane.f32.xlu0 %v2125
    %v2127 = vpop.xlane.xlu0 %2126
    %v2128 = vsel %vm251, %v2116, 0.0
    %2129 = vadd.xlane.f32.xlu0 %v2128
    %v2130 = vpop.xlane.xlu0 %2129
    %v2131 = vsel %vm251, %v2117, 0.0
    %2132 = vadd.xlane.f32.xlu0 %v2131
    %v2133 = vpop.xlane.xlu0 %2132
    %v2134 = vsel %vm251, %v2118, 0.0
    %2135 = vadd.xlane.f32.xlu0 %v2134
    %v2136 = vpop.xlane.xlu0 %2135
    %v2137 = vsel %vm251, %v2119, 0.0
    %2138 = vadd.xlane.f32.xlu0 %v2137
    %v2139 = vpop.xlane.xlu0 %2138
    %v2140 = vsel %vm251, %v2120, 0.0
    %2141 = vadd.xlane.f32.xlu0 %v2140
    %v2142 = vpop.xlane.xlu0 %2141
    %v2143 = vsel %vm251, %v2121, 0.0
    %2144 = vadd.xlane.f32.xlu0 %v2143
    %v2145 = vpop.xlane.xlu0 %2144
    %v2146 = vld [vmem:[#allocation6] sm:$0x1]
    %v2148 = vlaneseq
    %v2149 = vshrl.u32 %v2148, 7
    %v2150 = vsub.s32 0, %v2149
    %v2151 = vrot.slane %v2146, %v2150
    %2152 = vset.pattern.permute.xlu0 0
    %2153 = vperm.xlu0 %2152, %v2151
    %v2154 = vpop.permute.xlu0 %2153
    %v2156 = vadd.f32 %v2124, %v2154
    %v2157 = vadd.f32 %v2127, %v2154
    %v2158 = vadd.f32 %v2130, %v2154
    %v2159 = vadd.f32 %v2133, %v2154
    %v2160 = vadd.f32 %v2136, %v2154
    %v2161 = vadd.f32 %v2139, %v2154
    %v2162 = vadd.f32 %v2142, %v2154
    %v2163 = vadd.f32 %v2145, %v2154
    %v2172 = vlaneseq
    %v2173 = vand.u32 %v2172, 127
    %v2174 = vlaneseq
    %v2175 = vshrl.u32 %v2174, 7
    %v2176 = vsub.s32 %v2173, %v2175
    %v2177 = vrot.slane %v2156, %v2176
    %v2178 = vlaneseq
    %v2179 = vshrl.u32 %v2178, 7
    %v2180 = vsub.s32 %v2173, %v2179
    %v2181 = vrot.slane %v2157, %v2180
    %v2182 = vlaneseq
    %v2183 = vshrl.u32 %v2182, 7
    %v2184 = vsub.s32 %v2173, %v2183
    %v2185 = vrot.slane %v2158, %v2184
    %v2186 = vlaneseq
    %v2187 = vshrl.u32 %v2186, 7
    %v2188 = vsub.s32 %v2173, %v2187
    %v2189 = vrot.slane %v2159, %v2188
    %v2190 = vlaneseq
    %v2191 = vshrl.u32 %v2190, 7
    %v2192 = vsub.s32 %v2173, %v2191
    %v2193 = vrot.slane %v2160, %v2192
    %v2194 = vlaneseq
    %v2195 = vshrl.u32 %v2194, 7
    %v2196 = vsub.s32 %v2173, %v2195
    %v2197 = vrot.slane %v2161, %v2196
    %v2198 = vlaneseq
    %v2199 = vshrl.u32 %v2198, 7
    %v2200 = vsub.s32 %v2173, %v2199
    %v2201 = vrot.slane %v2162, %v2200
    %v2202 = vlaneseq
    %v2203 = vshrl.u32 %v2202, 7
    %v2204 = vsub.s32 %v2173, %v2203
    %v2205 = vrot.slane %v2163, %v2204
    %vm2206 = vcmask 1041409
    %v2207 = vsel %vm2206, %v2181, %v2177
    %vm2208 = vcmask 1042434
    %v2209 = vsel %vm2208, %v2185, %v2207
    %vm2210 = vcmask 1043459
    %v2211 = vsel %vm2210, %v2189, %v2209
    %vm2212 = vcmask 1044484
    %v2213 = vsel %vm2212, %v2193, %v2211
    %vm2214 = vcmask 1045509
    %v2215 = vsel %vm2214, %v2197, %v2213
    %vm2216 = vcmask 1046534
    %v2217 = vsel %vm2216, %v2201, %v2215
    %vm2218 = vcmask 1047559
    %v2219 = vsel %vm2218, %v2205, %v2217
    %2221 = vxpose.xlu0.b32.start [1/16] %v2219, 128
    %2222 = vxpose.xlu0.b32.cont [2/16] 0.0, 128
    %2223 = vxpose.xlu0.b32.cont [3/16] 0.0, 128
    %2224 = vxpose.xlu0.b32.cont [4/16] 0.0, 128
    %2225 = vxpose.xlu0.b32.cont [5/16] 0.0, 128
    %2226 = vxpose.xlu0.b32.cont [6/16] 0.0, 128
    %2227 = vxpose.xlu0.b32.cont [7/16] 0.0, 128
    %2228 = vxpose.xlu0.b32.cont [8/16] 0.0, 128
    %2229 = vxpose.xlu0.b32.cont [9/16] 0.0, 128
    %2230 = vxpose.xlu0.b32.cont [10/16] 0.0, 128
    %2231 = vxpose.xlu0.b32.cont [11/16] 0.0, 128
    %2232 = vxpose.xlu0.b32.cont [12/16] 0.0, 128
    %2233 = vxpose.xlu0.b32.cont [13/16] 0.0, 128
    %2234 = vxpose.xlu0.b32.cont [14/16] 0.0, 128
    %2235 = vxpose.xlu0.b32.cont [15/16] 0.0, 128
    %2236 = vxpose.xlu0.b32.end [16/16] 0.0, 128
    %v2237 = vpop.trf.xlu0
    %v2238 = vpop.trf.xlu0
    %v2239 = vpop.trf.xlu0
    %v2240 = vpop.trf.xlu0
    %v2241 = vpop.trf.xlu0
    %v2242 = vpop.trf.xlu0
    %v2243 = vpop.trf.xlu0
    %v2244 = vpop.trf.xlu0
    %v2245 = vpop.trf.xlu0
    %v2246 = vpop.trf.xlu0
    %v2247 = vpop.trf.xlu0
    %v2248 = vpop.trf.xlu0
    %v2249 = vpop.trf.xlu0
    %v2250 = vpop.trf.xlu0
    %v2251 = vpop.trf.xlu0
    %v2252 = vpop.trf.xlu0
    %vm2253 = vcmask 64512
    %2254 = vst.msk [vmem:[#allocation7] sm:$0xff] %vm2253, %v2237
    // Predicated region
    $region58: #{tpu_custom_call.1} parent=1 // pred_check
      _
    $region59: #{tpu_custom_call.1} parent=1 // pred_check_branch
      %2256 = sbr.rel (0) target = $region61
    $region60: #{tpu_custom_call.1} parent=1 // pred_region
      %s2258 = ssub.s32 128, 128
      %2259 = vsyncadd [#allocation8], %s2258
      %s2261 = sshll.u32 [#allocation7], 4
      %s2262 = int_to_ptr.vmem [resolvable:$true] %s2261
      %2264 = dma.vmem_to_hbm [thread:$0]  %s2262, 128, %s13, [#allocation8]
    $region61: #{tpu_custom_call.1} parent=1 // pred_fallthru
      _
    // Predicated region
    $region62: #{tpu_custom_call.1} parent=1 // pred_check
      _
    $region63: #{tpu_custom_call.1} parent=1 // pred_check_branch
      %2266 = sbr.rel (0) target = $region65
    $region64: #{tpu_custom_call.1} parent=1 // pred_region
      %2267 = dma.done [#allocation8], 128
    $region65: #{tpu_custom_call.1} parent=1 // pred_fallthru
      _
    %2268 = vsyncpa [#allocation8], 1

</llo_original>
